<compile_context>
chip_gen: v7x
topology: tpu7x:2x2x1
jax: 0.10.0
libtpu: 0.0.40
codegen_flags: <defaults>
</compile_context>

<pallas_src>
import jax
import jax.numpy as jnp
from jax.experimental import pallas as pl
from jax.experimental.pallas import tpu as pltpu

BN_EPS = 1e-5
HIDDEN = (1024, 512, 256, 128, 64)


def _make_kernel(d_x, d_p):
    """Build the kernel closed over the static feature split (d_x, d_p)."""

    def kernel(x_ref, p_ref, w1_ref, w2_ref, w3_ref, w4_ref, w5_ref,
               aff_ref, out_ref):
        inv_b = 1.0 / x_ref.shape[0]

        def bn_relu(h, layer, n):
            # Training-mode BN (batch stats, biased variance) + ReLU, fused.
            # Centered two-pass variance; rsqrt runs on the EUP slot.
            gamma = aff_ref[2 * layer: 2 * layer + 1, :n]
            beta = aff_ref[2 * layer + 1: 2 * layer + 2, :n]
            mean = jnp.sum(h, axis=0, keepdims=True) * inv_b
            d = h - mean
            var = jnp.sum(d * d, axis=0, keepdims=True) * inv_b
            scale = gamma * jax.lax.rsqrt(var + BN_EPS)
            # Downcast fused into the epilogue: result is the next matmul's LHS.
            return jnp.maximum(d * scale + beta, 0.0).astype(jnp.bfloat16)

        # In-kernel bf16 cast of the (tiny) activations; weights arrive as bf16.
        x_bf = x_ref[...].astype(jnp.bfloat16)
        p_bf = p_ref[...].astype(jnp.bfloat16)

        # fc1 split across the two inputs: [x | p] @ W1 == x @ W1[:dx] + p @ W1[dx:]
        # (W1 slices are tile-aligned static views of a single VMEM-resident ref).
        # TODO(synk): fuse into one zero-padded K=128 matmul in the batched version.
        h = (jnp.dot(x_bf, w1_ref[0:d_x, :], preferred_element_type=jnp.float32)
             + jnp.dot(p_bf, w1_ref[d_x:d_x + d_p, :],
                       preferred_element_type=jnp.float32))
        h = bn_relu(h, 0, HIDDEN[0])

        for layer, w_ref in enumerate((w2_ref, w3_ref, w4_ref, w5_ref), start=1):
            h = jnp.dot(h, w_ref[...], preferred_element_type=jnp.float32)
            h = bn_relu(h, layer, HIDDEN[layer])

        # fc6 (N=1): VPU multiply + lane reduction instead of a 1-column MXU matmul.
        w6 = aff_ref[10:11, :HIDDEN[-1]]
        b6 = aff_ref[11:12, 0:1]
        logits = jnp.sum(h.astype(jnp.float32) * w6, axis=-1, keepdims=True) + b6
        out_ref[...] = jax.nn.sigmoid(logits)

    return kernel


@jax.jit
def simple_nn_forward(x, protein_data, packed):
    """packed: output of pack_params (bf16 weights + one f32 affine slab)."""
    batch, d_x = x.shape
    p = protein_data.reshape(protein_data.shape[0], -1)   # free reshape in XLA
    d_p = p.shape[1]

    args = (x.astype(jnp.float32), p.astype(jnp.float32),
            packed["w1"], packed["w2"], packed["w3"], packed["w4"], packed["w5"],
            packed["affine"])

    return pl.pallas_call(
        _make_kernel(d_x, d_p),
        out_shape=jax.ShapeDtypeStruct((batch, 1), jnp.float32),
        in_specs=[pl.BlockSpec(memory_space=pltpu.MemorySpace.VMEM)
                  for _ in args],
        out_specs=pl.BlockSpec(memory_space=pltpu.MemorySpace.VMEM),
    )(*args)


def pack_params(params):
    """One-time parameter preparation (outside the per-call hot path).

    params: [(W1, g1, b1), ..., (W5, g5, b5), (W6, b6)] with W_i in (in, out)
    layout (transpose nn.Linear's (out, in) when importing a checkpoint).
    Returns bf16 weights plus a single zero-padded (12, 1024) f32 slab holding
    gamma1..5 / beta1..5 / W6 / b6, so the kernel prologue issues one small DMA
    instead of twelve.
    """
    (w1, g1, b1), (w2, g2, b2), (w3, g3, b3), (w4, g4, b4), (w5, g5, b5), (w6, b6) = params

    slab = jnp.zeros((12, HIDDEN[0]), jnp.float32)
    for i, (g, be) in enumerate(((g1, b1), (g2, b2), (g3, b3), (g4, b4), (g5, b5))):
        n = HIDDEN[i]
        slab = slab.at[2 * i, :n].set(jnp.asarray(g, jnp.float32).reshape(-1))
        slab = slab.at[2 * i + 1, :n].set(jnp.asarray(be, jnp.float32).reshape(-1))
    slab = slab.at[10, :HIDDEN[-1]].set(jnp.asarray(w6, jnp.float32).reshape(-1))
    slab = slab.at[11, 0].set(jnp.asarray(b6, jnp.float32).reshape(()))

    return dict(
        w1=jnp.asarray(w1, jnp.bfloat16),
        w2=jnp.asarray(w2, jnp.bfloat16),
        w3=jnp.asarray(w3, jnp.bfloat16),
        w4=jnp.asarray(w4, jnp.bfloat16),
        w5=jnp.asarray(w5, jnp.bfloat16),
        affine=slab,
    )


def init_params(key, d_in):
    """Random parameters matching the PyTorch module's shapes (W in (in, out)).

    fc1..fc5 biases are omitted: exactly cancelled by training-mode BatchNorm.
    """
    params = []
    dims = (d_in,) + HIDDEN
    for i in range(5):
        k_w, key = jax.random.split(key)
        fan_in, fan_out = dims[i], dims[i + 1]
        bound = 1.0 / jnp.sqrt(float(fan_in))
        w = jax.random.uniform(k_w, (fan_in, fan_out), jnp.float32, -bound, bound)
        gamma = jnp.ones((fan_out,), jnp.float32)
        beta = jnp.zeros((fan_out,), jnp.float32)
        params.append((w, gamma, beta))
    k_w, k_b, key = jax.random.split(key, 3)
    bound = 1.0 / jnp.sqrt(float(HIDDEN[-1]))
    w6 = jax.random.uniform(k_w, (HIDDEN[-1], 1), jnp.float32, -bound, bound)
    b6 = jax.random.uniform(k_b, (1,), jnp.float32, -bound, bound)
    params.append((w6, b6))
    return params


if __name__ == "__main__":
    key = jax.random.PRNGKey(0)
    k_x, k_p, k_params = jax.random.split(key, 3)

    batch = 8
    d_x = 32            # per-sample feature dim of `x`
    p_shape = (4, 16)   # per-sample protein_data shape -> flattens to 64

    x = jax.random.normal(k_x, (batch, d_x), jnp.float32)
    protein_data = jax.random.normal(k_p, (batch, *p_shape), jnp.float32)

    d_in = d_x + p_shape[0] * p_shape[1]
    params = init_params(k_params, d_in)
    packed = pack_params(params)          # one-time prep, outside the hot path

    out = simple_nn_forward(x, protein_data, packed)
    jax.block_until_ready(out)
    assert out.shape == (batch, 1) and out.dtype == jnp.float32
    assert bool(jnp.all(jnp.isfinite(out)))
    print("KERNEL_OK")
</pallas_src>

<mosaic_0001>
module attributes {stable_mosaic.version = 11 : i64} {
  func.func @kernel(%arg0: memref<8x32xf32, #tpu.memory_space<vmem>>, %arg1: memref<8x64xf32, #tpu.memory_space<vmem>>, %arg2: memref<96x1024xbf16, #tpu.memory_space<vmem>>, %arg3: memref<1024x512xbf16, #tpu.memory_space<vmem>>, %arg4: memref<512x256xbf16, #tpu.memory_space<vmem>>, %arg5: memref<256x128xbf16, #tpu.memory_space<vmem>>, %arg6: memref<128x64xbf16, #tpu.memory_space<vmem>>, %arg7: memref<12x1024xf32, #tpu.memory_space<vmem>>, %arg8: memref<8x1xf32, #tpu.memory_space<vmem>>) attributes {dimension_semantics = [], scalar_prefetch = 0 : i64, scratch_operands = 0 : i64, tpu.core_type = #tpu.core_type<tc>} {
    %c0 = arith.constant 0 : index
    %c0_0 = arith.constant 0 : index
    %0 = vector.load %arg0[%c0, %c0_0] : memref<8x32xf32, #tpu.memory_space<vmem>>, vector<8x32xf32>
    %1 = arith.truncf %0 : vector<8x32xf32> to vector<8x32xbf16>
    %c0_1 = arith.constant 0 : index
    %c0_2 = arith.constant 0 : index
    %2 = vector.load %arg1[%c0_1, %c0_2] : memref<8x64xf32, #tpu.memory_space<vmem>>, vector<8x64xf32>
    %3 = arith.truncf %2 : vector<8x64xf32> to vector<8x64xbf16>
    %c0_3 = arith.constant 0 : index
    %c0_4 = arith.constant 0 : index
    %4 = vector.load %arg2[%c0_3, %c0_4] : memref<96x1024xbf16, #tpu.memory_space<vmem>>, vector<32x1024xbf16>
    %cst = arith.constant dense<0.000000e+00> : vector<8x1024xf32>
    %5 = tpu.matmul %1, %4, %cst {dimension_numbers = #tpu.dot_dimension_numbers<[1], [0], [0], [1], [0, 0, 1, 1], [], []>} : vector<8x32xbf16>, vector<32x1024xbf16>, vector<8x1024xf32> -> vector<8x1024xf32>
    %c32 = arith.constant 32 : index
    %c0_5 = arith.constant 0 : index
    %6 = vector.load %arg2[%c32, %c0_5] : memref<96x1024xbf16, #tpu.memory_space<vmem>>, vector<64x1024xbf16>
    %cst_6 = arith.constant dense<0.000000e+00> : vector<8x1024xf32>
    %7 = tpu.matmul %3, %6, %cst_6 {dimension_numbers = #tpu.dot_dimension_numbers<[1], [0], [0], [1], [0, 0, 1, 1], [], []>} : vector<8x64xbf16>, vector<64x1024xbf16>, vector<8x1024xf32> -> vector<8x1024xf32>
    %8 = arith.addf %5, %7 : vector<8x1024xf32>
    %c0_7 = arith.constant 0 : index
    %c0_8 = arith.constant 0 : index
    %9 = vector.load %arg7[%c0_7, %c0_8] : memref<12x1024xf32, #tpu.memory_space<vmem>>, vector<1x1024xf32>
    %c1 = arith.constant 1 : index
    %c0_9 = arith.constant 0 : index
    %10 = vector.load %arg7[%c1, %c0_9] : memref<12x1024xf32, #tpu.memory_space<vmem>>, vector<1x1024xf32>
    %cst_10 = arith.constant dense<0.000000e+00> : vector<1024xf32>
    %11 = vector.multi_reduction <add>, %8, %cst_10 [0] : vector<8x1024xf32> to vector<1024xf32>
    %12 = vector.shape_cast %11 : vector<1024xf32> to vector<1x1024xf32>
    %cst_11 = arith.constant 1.250000e-01 : f32
    %13 = vector.broadcast %cst_11 : f32 to vector<1x1024xf32>
    %14 = arith.mulf %12, %13 : vector<1x1024xf32>
    %15 = vector.broadcast %14 : vector<1x1024xf32> to vector<8x1024xf32>
    %16 = arith.subf %8, %15 : vector<8x1024xf32>
    %17 = arith.mulf %16, %16 : vector<8x1024xf32>
    %cst_12 = arith.constant dense<0.000000e+00> : vector<1024xf32>
    %18 = vector.multi_reduction <add>, %17, %cst_12 [0] : vector<8x1024xf32> to vector<1024xf32>
    %19 = vector.shape_cast %18 : vector<1024xf32> to vector<1x1024xf32>
    %cst_13 = arith.constant 1.250000e-01 : f32
    %20 = vector.broadcast %cst_13 : f32 to vector<1x1024xf32>
    %21 = arith.mulf %19, %20 : vector<1x1024xf32>
    %cst_14 = arith.constant 9.99999974E-6 : f32
    %22 = vector.broadcast %cst_14 : f32 to vector<1x1024xf32>
    %23 = arith.addf %21, %22 : vector<1x1024xf32>
    %24 = math.rsqrt %23 : vector<1x1024xf32>
    %25 = arith.mulf %9, %24 : vector<1x1024xf32>
    %26 = vector.broadcast %25 : vector<1x1024xf32> to vector<8x1024xf32>
    %27 = arith.mulf %16, %26 : vector<8x1024xf32>
    %28 = vector.broadcast %10 : vector<1x1024xf32> to vector<8x1024xf32>
    %29 = arith.addf %27, %28 : vector<8x1024xf32>
    %cst_15 = arith.constant 0.000000e+00 : f32
    %30 = vector.broadcast %cst_15 : f32 to vector<8x1024xf32>
    %31 = arith.maximumf %29, %30 : vector<8x1024xf32>
    %32 = arith.truncf %31 : vector<8x1024xf32> to vector<8x1024xbf16>
    %c0_16 = arith.constant 0 : index
    %c0_17 = arith.constant 0 : index
    %33 = vector.load %arg3[%c0_16, %c0_17] : memref<1024x512xbf16, #tpu.memory_space<vmem>>, vector<1024x512xbf16>
    %cst_18 = arith.constant dense<0.000000e+00> : vector<8x512xf32>
    %34 = tpu.matmul %32, %33, %cst_18 {dimension_numbers = #tpu.dot_dimension_numbers<[1], [0], [0], [1], [0, 0, 1, 1], [], []>} : vector<8x1024xbf16>, vector<1024x512xbf16>, vector<8x512xf32> -> vector<8x512xf32>
    %c2 = arith.constant 2 : index
    %c0_19 = arith.constant 0 : index
    %35 = vector.load %arg7[%c2, %c0_19] : memref<12x1024xf32, #tpu.memory_space<vmem>>, vector<1x512xf32>
    %c3 = arith.constant 3 : index
    %c0_20 = arith.constant 0 : index
    %36 = vector.load %arg7[%c3, %c0_20] : memref<12x1024xf32, #tpu.memory_space<vmem>>, vector<1x512xf32>
    %cst_21 = arith.constant dense<0.000000e+00> : vector<512xf32>
    %37 = vector.multi_reduction <add>, %34, %cst_21 [0] : vector<8x512xf32> to vector<512xf32>
    %38 = vector.shape_cast %37 : vector<512xf32> to vector<1x512xf32>
    %cst_22 = arith.constant 1.250000e-01 : f32
    %39 = vector.broadcast %cst_22 : f32 to vector<1x512xf32>
    %40 = arith.mulf %38, %39 : vector<1x512xf32>
    %41 = vector.broadcast %40 : vector<1x512xf32> to vector<8x512xf32>
    %42 = arith.subf %34, %41 : vector<8x512xf32>
    %43 = arith.mulf %42, %42 : vector<8x512xf32>
    %cst_23 = arith.constant dense<0.000000e+00> : vector<512xf32>
    %44 = vector.multi_reduction <add>, %43, %cst_23 [0] : vector<8x512xf32> to vector<512xf32>
    %45 = vector.shape_cast %44 : vector<512xf32> to vector<1x512xf32>
    %cst_24 = arith.constant 1.250000e-01 : f32
    %46 = vector.broadcast %cst_24 : f32 to vector<1x512xf32>
    %47 = arith.mulf %45, %46 : vector<1x512xf32>
    %cst_25 = arith.constant 9.99999974E-6 : f32
    %48 = vector.broadcast %cst_25 : f32 to vector<1x512xf32>
    %49 = arith.addf %47, %48 : vector<1x512xf32>
    %50 = math.rsqrt %49 : vector<1x512xf32>
    %51 = arith.mulf %35, %50 : vector<1x512xf32>
    %52 = vector.broadcast %51 : vector<1x512xf32> to vector<8x512xf32>
    %53 = arith.mulf %42, %52 : vector<8x512xf32>
    %54 = vector.broadcast %36 : vector<1x512xf32> to vector<8x512xf32>
    %55 = arith.addf %53, %54 : vector<8x512xf32>
    %cst_26 = arith.constant 0.000000e+00 : f32
    %56 = vector.broadcast %cst_26 : f32 to vector<8x512xf32>
    %57 = arith.maximumf %55, %56 : vector<8x512xf32>
    %58 = arith.truncf %57 : vector<8x512xf32> to vector<8x512xbf16>
    %c0_27 = arith.constant 0 : index
    %c0_28 = arith.constant 0 : index
    %59 = vector.load %arg4[%c0_27, %c0_28] : memref<512x256xbf16, #tpu.memory_space<vmem>>, vector<512x256xbf16>
    %cst_29 = arith.constant dense<0.000000e+00> : vector<8x256xf32>
    %60 = tpu.matmul %58, %59, %cst_29 {dimension_numbers = #tpu.dot_dimension_numbers<[1], [0], [0], [1], [0, 0, 1, 1], [], []>} : vector<8x512xbf16>, vector<512x256xbf16>, vector<8x256xf32> -> vector<8x256xf32>
    %c4 = arith.constant 4 : index
    %c0_30 = arith.constant 0 : index
    %61 = vector.load %arg7[%c4, %c0_30] : memref<12x1024xf32, #tpu.memory_space<vmem>>, vector<1x256xf32>
    %c5 = arith.constant 5 : index
    %c0_31 = arith.constant 0 : index
    %62 = vector.load %arg7[%c5, %c0_31] : memref<12x1024xf32, #tpu.memory_space<vmem>>, vector<1x256xf32>
    %cst_32 = arith.constant dense<0.000000e+00> : vector<256xf32>
    %63 = vector.multi_reduction <add>, %60, %cst_32 [0] : vector<8x256xf32> to vector<256xf32>
    %64 = vector.shape_cast %63 : vector<256xf32> to vector<1x256xf32>
    %cst_33 = arith.constant 1.250000e-01 : f32
    %65 = vector.broadcast %cst_33 : f32 to vector<1x256xf32>
    %66 = arith.mulf %64, %65 : vector<1x256xf32>
    %67 = vector.broadcast %66 : vector<1x256xf32> to vector<8x256xf32>
    %68 = arith.subf %60, %67 : vector<8x256xf32>
    %69 = arith.mulf %68, %68 : vector<8x256xf32>
    %cst_34 = arith.constant dense<0.000000e+00> : vector<256xf32>
    %70 = vector.multi_reduction <add>, %69, %cst_34 [0] : vector<8x256xf32> to vector<256xf32>
    %71 = vector.shape_cast %70 : vector<256xf32> to vector<1x256xf32>
    %cst_35 = arith.constant 1.250000e-01 : f32
    %72 = vector.broadcast %cst_35 : f32 to vector<1x256xf32>
    %73 = arith.mulf %71, %72 : vector<1x256xf32>
    %cst_36 = arith.constant 9.99999974E-6 : f32
    %74 = vector.broadcast %cst_36 : f32 to vector<1x256xf32>
    %75 = arith.addf %73, %74 : vector<1x256xf32>
    %76 = math.rsqrt %75 : vector<1x256xf32>
    %77 = arith.mulf %61, %76 : vector<1x256xf32>
    %78 = vector.broadcast %77 : vector<1x256xf32> to vector<8x256xf32>
    %79 = arith.mulf %68, %78 : vector<8x256xf32>
    %80 = vector.broadcast %62 : vector<1x256xf32> to vector<8x256xf32>
    %81 = arith.addf %79, %80 : vector<8x256xf32>
    %cst_37 = arith.constant 0.000000e+00 : f32
    %82 = vector.broadcast %cst_37 : f32 to vector<8x256xf32>
    %83 = arith.maximumf %81, %82 : vector<8x256xf32>
    %84 = arith.truncf %83 : vector<8x256xf32> to vector<8x256xbf16>
    %c0_38 = arith.constant 0 : index
    %c0_39 = arith.constant 0 : index
    %85 = vector.load %arg5[%c0_38, %c0_39] : memref<256x128xbf16, #tpu.memory_space<vmem>>, vector<256x128xbf16>
    %cst_40 = arith.constant dense<0.000000e+00> : vector<8x128xf32>
    %86 = tpu.matmul %84, %85, %cst_40 {dimension_numbers = #tpu.dot_dimension_numbers<[1], [0], [0], [1], [0, 0, 1, 1], [], []>} : vector<8x256xbf16>, vector<256x128xbf16>, vector<8x128xf32> -> vector<8x128xf32>
    %c6 = arith.constant 6 : index
    %c0_41 = arith.constant 0 : index
    %87 = vector.load %arg7[%c6, %c0_41] : memref<12x1024xf32, #tpu.memory_space<vmem>>, vector<1x128xf32>
    %c7 = arith.constant 7 : index
    %c0_42 = arith.constant 0 : index
    %88 = vector.load %arg7[%c7, %c0_42] : memref<12x1024xf32, #tpu.memory_space<vmem>>, vector<1x128xf32>
    %cst_43 = arith.constant dense<0.000000e+00> : vector<128xf32>
    %89 = vector.multi_reduction <add>, %86, %cst_43 [0] : vector<8x128xf32> to vector<128xf32>
    %90 = vector.shape_cast %89 : vector<128xf32> to vector<1x128xf32>
    %cst_44 = arith.constant 1.250000e-01 : f32
    %91 = vector.broadcast %cst_44 : f32 to vector<1x128xf32>
    %92 = arith.mulf %90, %91 : vector<1x128xf32>
    %93 = vector.broadcast %92 : vector<1x128xf32> to vector<8x128xf32>
    %94 = arith.subf %86, %93 : vector<8x128xf32>
    %95 = arith.mulf %94, %94 : vector<8x128xf32>
    %cst_45 = arith.constant dense<0.000000e+00> : vector<128xf32>
    %96 = vector.multi_reduction <add>, %95, %cst_45 [0] : vector<8x128xf32> to vector<128xf32>
    %97 = vector.shape_cast %96 : vector<128xf32> to vector<1x128xf32>
    %cst_46 = arith.constant 1.250000e-01 : f32
    %98 = vector.broadcast %cst_46 : f32 to vector<1x128xf32>
    %99 = arith.mulf %97, %98 : vector<1x128xf32>
    %cst_47 = arith.constant 9.99999974E-6 : f32
    %100 = vector.broadcast %cst_47 : f32 to vector<1x128xf32>
    %101 = arith.addf %99, %100 : vector<1x128xf32>
    %102 = math.rsqrt %101 : vector<1x128xf32>
    %103 = arith.mulf %87, %102 : vector<1x128xf32>
    %104 = vector.broadcast %103 : vector<1x128xf32> to vector<8x128xf32>
    %105 = arith.mulf %94, %104 : vector<8x128xf32>
    %106 = vector.broadcast %88 : vector<1x128xf32> to vector<8x128xf32>
    %107 = arith.addf %105, %106 : vector<8x128xf32>
    %cst_48 = arith.constant 0.000000e+00 : f32
    %108 = vector.broadcast %cst_48 : f32 to vector<8x128xf32>
    %109 = arith.maximumf %107, %108 : vector<8x128xf32>
    %110 = arith.truncf %109 : vector<8x128xf32> to vector<8x128xbf16>
    %c0_49 = arith.constant 0 : index
    %c0_50 = arith.constant 0 : index
    %111 = vector.load %arg6[%c0_49, %c0_50] : memref<128x64xbf16, #tpu.memory_space<vmem>>, vector<128x64xbf16>
    %cst_51 = arith.constant dense<0.000000e+00> : vector<8x64xf32>
    %112 = tpu.matmul %110, %111, %cst_51 {dimension_numbers = #tpu.dot_dimension_numbers<[1], [0], [0], [1], [0, 0, 1, 1], [], []>} : vector<8x128xbf16>, vector<128x64xbf16>, vector<8x64xf32> -> vector<8x64xf32>
    %c8 = arith.constant 8 : index
    %c0_52 = arith.constant 0 : index
    %113 = vector.load %arg7[%c8, %c0_52] : memref<12x1024xf32, #tpu.memory_space<vmem>>, vector<1x64xf32>
    %c9 = arith.constant 9 : index
    %c0_53 = arith.constant 0 : index
    %114 = vector.load %arg7[%c9, %c0_53] : memref<12x1024xf32, #tpu.memory_space<vmem>>, vector<1x64xf32>
    %cst_54 = arith.constant dense<0.000000e+00> : vector<64xf32>
    %115 = vector.multi_reduction <add>, %112, %cst_54 [0] : vector<8x64xf32> to vector<64xf32>
    %116 = vector.shape_cast %115 : vector<64xf32> to vector<1x64xf32>
    %cst_55 = arith.constant 1.250000e-01 : f32
    %117 = vector.broadcast %cst_55 : f32 to vector<1x64xf32>
    %118 = arith.mulf %116, %117 : vector<1x64xf32>
    %119 = vector.broadcast %118 : vector<1x64xf32> to vector<8x64xf32>
    %120 = arith.subf %112, %119 : vector<8x64xf32>
    %121 = arith.mulf %120, %120 : vector<8x64xf32>
    %cst_56 = arith.constant dense<0.000000e+00> : vector<64xf32>
    %122 = vector.multi_reduction <add>, %121, %cst_56 [0] : vector<8x64xf32> to vector<64xf32>
    %123 = vector.shape_cast %122 : vector<64xf32> to vector<1x64xf32>
    %cst_57 = arith.constant 1.250000e-01 : f32
    %124 = vector.broadcast %cst_57 : f32 to vector<1x64xf32>
    %125 = arith.mulf %123, %124 : vector<1x64xf32>
    %cst_58 = arith.constant 9.99999974E-6 : f32
    %126 = vector.broadcast %cst_58 : f32 to vector<1x64xf32>
    %127 = arith.addf %125, %126 : vector<1x64xf32>
    %128 = math.rsqrt %127 : vector<1x64xf32>
    %129 = arith.mulf %113, %128 : vector<1x64xf32>
    %130 = vector.broadcast %129 : vector<1x64xf32> to vector<8x64xf32>
    %131 = arith.mulf %120, %130 : vector<8x64xf32>
    %132 = vector.broadcast %114 : vector<1x64xf32> to vector<8x64xf32>
    %133 = arith.addf %131, %132 : vector<8x64xf32>
    %cst_59 = arith.constant 0.000000e+00 : f32
    %134 = vector.broadcast %cst_59 : f32 to vector<8x64xf32>
    %135 = arith.maximumf %133, %134 : vector<8x64xf32>
    %136 = arith.truncf %135 : vector<8x64xf32> to vector<8x64xbf16>
    %c10 = arith.constant 10 : index
    %c0_60 = arith.constant 0 : index
    %137 = vector.load %arg7[%c10, %c0_60] : memref<12x1024xf32, #tpu.memory_space<vmem>>, vector<1x64xf32>
    %c11 = arith.constant 11 : index
    %c0_61 = arith.constant 0 : index
    %138 = vector.load %arg7[%c11, %c0_61] : memref<12x1024xf32, #tpu.memory_space<vmem>>, vector<1x1xf32>
    %139 = arith.extf %136 : vector<8x64xbf16> to vector<8x64xf32>
    %140 = vector.broadcast %137 : vector<1x64xf32> to vector<8x64xf32>
    %141 = arith.mulf %139, %140 : vector<8x64xf32>
    %cst_62 = arith.constant dense<0.000000e+00> : vector<8xf32>
    %142 = vector.multi_reduction <add>, %141, %cst_62 [1] : vector<8x64xf32> to vector<8xf32>
    %143 = vector.shape_cast %142 : vector<8xf32> to vector<8x1xf32>
    %144 = vector.broadcast %138 : vector<1x1xf32> to vector<8x1xf32>
    %145 = arith.addf %143, %144 : vector<8x1xf32>
    %146 = arith.negf %145 : vector<8x1xf32>
    %147 = math.exp %146 : vector<8x1xf32>
    %cst_63 = arith.constant 1.000000e+00 : f32
    %148 = vector.broadcast %cst_63 : f32 to vector<8x1xf32>
    %149 = arith.addf %148, %147 : vector<8x1xf32>
    %150 = arith.divf %148, %149 : vector<8x1xf32>
    %c0_64 = arith.constant 0 : index
    %c0_65 = arith.constant 0 : index
    %151 = vector.load %arg8[%c0_64, %c0_65] : memref<8x1xf32, #tpu.memory_space<vmem>>, vector<8x1xf32>
    tpu.vector_store %arg8[%c0_64, %c0_65], %150 {strides = array<i32>} : memref<8x1xf32, #tpu.memory_space<vmem>>, vector<8x1xf32>,
    return
  }
}

</mosaic_0001>

<llo_original>
// kernel: simple_nn_forward.1
$region0: #{simple_nn_forward.1}
  #allocation0 [shape = 'u32[]', space=smem, size = 0x4, offset = 0x4, fixed_abs, tag = 'smem constant byte address 0x4 - core index']
  #allocation1 [shape = 'u32[144,128]{1,0:T(1,128)}', space=vmem, size = 0x12000, scoped, tag = 'internal scratch']
  %s0 = inlined_call_operand.hbm [shape: f32[8,32], index: 0, kind: input, shape index: {}]
  %s1 = inlined_call_operand.vmem [shape: f32[8,64], index: 1, kind: input, shape index: {}]
  %s2 = inlined_call_operand.hbm [shape: bf16[96,1024], index: 2, kind: input, shape index: {}]
  %s3 = inlined_call_operand.hbm [shape: bf16[1024,512], index: 3, kind: input, shape index: {}]
  %s4 = inlined_call_operand.hbm [shape: bf16[512,256], index: 4, kind: input, shape index: {}]
  %s5 = inlined_call_operand.vmem [shape: bf16[256,128], index: 5, kind: input, shape index: {}]
  %s6 = inlined_call_operand.vmem [shape: bf16[128,64], index: 6, kind: input, shape index: {}]
  %s7 = inlined_call_operand.hbm [shape: f32[12,1024], index: 7, kind: input, shape index: {}]
  %s8 = inlined_call_operand.vmem [shape: f32[8,1], index: 8, kind: output, shape index: {}]
  %s9 = sld [smem:[#allocation0]]
  $region62: #{simple_nn_forward.1} parent=0
    _
  %s11 = ssub.s32 1, %s9
  %s12 = scalar_select 0, %s11, %s9
  $region1: #{simple_nn_forward.1} parent=0
    #allocation2 [shape = 'u8[4096]{0}', space=vmem, size = 0x1000, scoped, tag = 'input window, operand 0, single buffered']
    #allocation3 [shape = 's32[1]{0}', space=sflag, size = 0x4, scoped, tag = 'scoped memory for simple_nn_forward.1']
    #allocation4 [shape = 'u8[196608]{0}', space=vmem, size = 0x30000, scoped, tag = 'input window, operand 2, single buffered']
    #allocation5 [shape = 's32[1]{0}', space=sflag, size = 0x4, scoped, tag = 'scoped memory for simple_nn_forward.1']
    #allocation6 [shape = 'u8[1048576]{0}', space=vmem, size = 0x100000, scoped, tag = 'input window, operand 3, single buffered']
    #allocation7 [shape = 'u8[262144]{0}', space=vmem, size = 0x40000, scoped, tag = 'input window, operand 4, single buffered']
    #allocation8 [shape = 's32[1]{0}', space=sflag, size = 0x4, scoped, tag = 'scoped memory for simple_nn_forward.1']
    #allocation9 [shape = 'u8[65536]{0}', space=vmem, size = 0x10000, scoped, tag = 'input window, operand 7, single buffered']
    %13 = vsyncpa [#allocation3], 0
    %14 = vsyncpa [#allocation5], 0
    %15 = vsyncpa [#allocation8], 0
    // Predicated region
    $region2: #{simple_nn_forward.1} parent=1 // pred_check
      _
    $region3: #{simple_nn_forward.1} parent=1 // pred_check_branch
      %17 = sbr.rel (0) target = $region5
    $region4: #{simple_nn_forward.1} parent=1 // pred_region
      %s19 = ssub.s32 128, 128
      %20 = vsyncadd [#allocation3], %s19
      %s22 = sshll.u32 [#allocation2], 4
      %s23 = int_to_ptr.vmem [resolvable:$true] %s22
      %25 = dma.hbm_to_vmem [thread:$0]  %s0, 128, %s23, [#allocation3]
    $region5: #{simple_nn_forward.1} parent=1 // pred_fallthru
      _
    // Predicated region
    $region6: #{simple_nn_forward.1} parent=1 // pred_check
      _
    $region7: #{simple_nn_forward.1} parent=1 // pred_check_branch
      %27 = sbr.rel (0) target = $region9
    $region8: #{simple_nn_forward.1} parent=1 // pred_region
      _
    $region9: #{simple_nn_forward.1} parent=1 // pred_fallthru
      _
    // Predicated region
    $region10: #{simple_nn_forward.1} parent=1 // pred_check
      _
    $region11: #{simple_nn_forward.1} parent=1 // pred_check_branch
      %29 = sbr.rel (0) target = $region13
    $region12: #{simple_nn_forward.1} parent=1 // pred_region
      %s31 = ssub.s32 6144, 6144
      %32 = vsyncadd [#allocation5], %s31
      %s33 = sshll.u32 [#allocation4], 4
      %s34 = int_to_ptr.vmem [resolvable:$true] %s33
      %39 = dma.hbm_to_vmem [thread:$0]  %s2, 6144, %s34, [#allocation5], 512, 512, 32
    $region13: #{simple_nn_forward.1} parent=1 // pred_fallthru
      _
    // Predicated region
    $region14: #{simple_nn_forward.1} parent=1 // pred_check
      _
    $region15: #{simple_nn_forward.1} parent=1 // pred_check_branch
      %41 = sbr.rel (0) target = $region17
    $region16: #{simple_nn_forward.1} parent=1 // pred_region
      %s43 = ssub.s32 32768, 32768
      %44 = vsyncadd [#allocation5], %s43
      %s45 = sshll.u32 [#allocation6], 4
      %s46 = int_to_ptr.vmem [resolvable:$true] %s45
      %51 = dma.hbm_to_vmem [thread:$0]  %s3, 32768, %s46, [#allocation5], 256, 256, 16
    $region17: #{simple_nn_forward.1} parent=1 // pred_fallthru
      _
    // Predicated region
    $region18: #{simple_nn_forward.1} parent=1 // pred_check
      _
    $region19: #{simple_nn_forward.1} parent=1 // pred_check_branch
      %53 = sbr.rel (0) target = $region21
    $region20: #{simple_nn_forward.1} parent=1 // pred_region
      %s55 = ssub.s32 8192, 8192
      %56 = vsyncadd [#allocation8], %s55
      %s57 = sshll.u32 [#allocation7], 4
      %s58 = int_to_ptr.vmem [resolvable:$true] %s57
      %63 = dma.hbm_to_vmem [thread:$0]  %s4, 8192, %s58, [#allocation8], 128, 128, 8
    $region21: #{simple_nn_forward.1} parent=1 // pred_fallthru
      _
    // Predicated region
    $region22: #{simple_nn_forward.1} parent=1 // pred_check
      _
    $region23: #{simple_nn_forward.1} parent=1 // pred_check_branch
      %65 = sbr.rel (0) target = $region25
    $region24: #{simple_nn_forward.1} parent=1 // pred_region
      _
    $region25: #{simple_nn_forward.1} parent=1 // pred_fallthru
      _
    // Predicated region
    $region26: #{simple_nn_forward.1} parent=1 // pred_check
      _
    $region27: #{simple_nn_forward.1} parent=1 // pred_check_branch
      %67 = sbr.rel (0) target = $region29
    $region28: #{simple_nn_forward.1} parent=1 // pred_region
      _
    $region29: #{simple_nn_forward.1} parent=1 // pred_fallthru
      _
    // Predicated region
    $region30: #{simple_nn_forward.1} parent=1 // pred_check
      _
    $region31: #{simple_nn_forward.1} parent=1 // pred_check_branch
      %69 = sbr.rel (0) target = $region33
    $region32: #{simple_nn_forward.1} parent=1 // pred_region
      %s71 = ssub.s32 2048, 2048
      %72 = vsyncadd [#allocation8], %s71
      %s73 = sshll.u32 [#allocation9], 4
      %s74 = int_to_ptr.vmem [resolvable:$true] %s73
      %79 = dma.hbm_to_vmem [thread:$0]  %s7, 2048, %s74, [#allocation8], 1024, 1024, 64
    $region33: #{simple_nn_forward.1} parent=1 // pred_fallthru
      _
    // Predicated region
    $region34: #{simple_nn_forward.1} parent=1 // pred_check
      _
    $region35: #{simple_nn_forward.1} parent=1 // pred_check_branch
      %81 = sbr.rel (0) target = $region37
    $region36: #{simple_nn_forward.1} parent=1 // pred_region
      %82 = dma.done [#allocation3], 128
    $region37: #{simple_nn_forward.1} parent=1 // pred_fallthru
      _
    // Predicated region
    $region38: #{simple_nn_forward.1} parent=1 // pred_check
      _
    $region39: #{simple_nn_forward.1} parent=1 // pred_check_branch
      %84 = sbr.rel (0) target = $region41
    $region40: #{simple_nn_forward.1} parent=1 // pred_region
      %85 = dma.done [#allocation5], 6144
    $region41: #{simple_nn_forward.1} parent=1 // pred_fallthru
      _
    // Predicated region
    $region42: #{simple_nn_forward.1} parent=1 // pred_check
      _
    $region43: #{simple_nn_forward.1} parent=1 // pred_check_branch
      %87 = sbr.rel (0) target = $region45
    $region44: #{simple_nn_forward.1} parent=1 // pred_region
      %88 = dma.done [#allocation5], 32768
    $region45: #{simple_nn_forward.1} parent=1 // pred_fallthru
      _
    // Predicated region
    $region46: #{simple_nn_forward.1} parent=1 // pred_check
      _
    $region47: #{simple_nn_forward.1} parent=1 // pred_check_branch
      %90 = sbr.rel (0) target = $region49
    $region48: #{simple_nn_forward.1} parent=1 // pred_region
      %91 = dma.done [#allocation8], 8192
    $region49: #{simple_nn_forward.1} parent=1 // pred_fallthru
      _
    // Predicated region
    $region50: #{simple_nn_forward.1} parent=1 // pred_check
      _
    $region51: #{simple_nn_forward.1} parent=1 // pred_check_branch
      %93 = sbr.rel (0) target = $region53
    $region52: #{simple_nn_forward.1} parent=1 // pred_region
      %94 = dma.done [#allocation8], 2048
    $region53: #{simple_nn_forward.1} parent=1 // pred_fallthru
      _
    %v96 = vld [vmem:[#allocation2] sm:$0xff]
    %v97 = vpack.c.bf16 %v96, %v96
    %v98 = vld [vmem:[%s1] sm:$0xff]
    %v99 = vpack.c.bf16 %v98, %v98
    %v100 = vld [vmem:[#allocation4] sm:$0xff]
    %v101 = vld [vmem:[#allocation4 + $0x8] sm:$0xff]
    %v102 = vld [vmem:[#allocation4 + $0x10] sm:$0xff]
    %v103 = vld [vmem:[#allocation4 + $0x18] sm:$0xff]
    %v104 = vld [vmem:[#allocation4 + $0x20] sm:$0xff]
    %v105 = vld [vmem:[#allocation4 + $0x28] sm:$0xff]
    %v106 = vld [vmem:[#allocation4 + $0x30] sm:$0xff]
    %v107 = vld [vmem:[#allocation4 + $0x38] sm:$0xff]
    %v108 = vld [vmem:[#allocation4 + $0x40] sm:$0xff]
    %v109 = vld [vmem:[#allocation4 + $0x48] sm:$0xff]
    %v110 = vld [vmem:[#allocation4 + $0x50] sm:$0xff]
    %v111 = vld [vmem:[#allocation4 + $0x58] sm:$0xff]
    %v112 = vld [vmem:[#allocation4 + $0x60] sm:$0xff]
    %v113 = vld [vmem:[#allocation4 + $0x68] sm:$0xff]
    %v114 = vld [vmem:[#allocation4 + $0x70] sm:$0xff]
    %v115 = vld [vmem:[#allocation4 + $0x78] sm:$0xff]
    %v116 = vld [vmem:[#allocation4 + $0x80] sm:$0xff]
    %v117 = vld [vmem:[#allocation4 + $0x88] sm:$0xff]
    %v118 = vld [vmem:[#allocation4 + $0x90] sm:$0xff]
    %v119 = vld [vmem:[#allocation4 + $0x98] sm:$0xff]
    %v120 = vld [vmem:[#allocation4 + $0xa0] sm:$0xff]
    %v121 = vld [vmem:[#allocation4 + $0xa8] sm:$0xff]
    %v122 = vld [vmem:[#allocation4 + $0xb0] sm:$0xff]
    %v123 = vld [vmem:[#allocation4 + $0xb8] sm:$0xff]
    %v124 = vld [vmem:[#allocation4 + $0xc0] sm:$0xff]
    %v125 = vld [vmem:[#allocation4 + $0xc8] sm:$0xff]
    %v126 = vld [vmem:[#allocation4 + $0xd0] sm:$0xff]
    %v127 = vld [vmem:[#allocation4 + $0xd8] sm:$0xff]
    %v128 = vld [vmem:[#allocation4 + $0xe0] sm:$0xff]
    %v129 = vld [vmem:[#allocation4 + $0xe8] sm:$0xff]
    %v130 = vld [vmem:[#allocation4 + $0xf0] sm:$0xff]
    %v131 = vld [vmem:[#allocation4 + $0xf8] sm:$0xff]
    %v132 = vld [vmem:[#allocation4 + $0x100] sm:$0xff]
    %v133 = vld [vmem:[#allocation4 + $0x108] sm:$0xff]
    %v134 = vld [vmem:[#allocation4 + $0x110] sm:$0xff]
    %v135 = vld [vmem:[#allocation4 + $0x118] sm:$0xff]
    %v136 = vld [vmem:[#allocation4 + $0x120] sm:$0xff]
    %v137 = vld [vmem:[#allocation4 + $0x128] sm:$0xff]
    %v138 = vld [vmem:[#allocation4 + $0x130] sm:$0xff]
    %v139 = vld [vmem:[#allocation4 + $0x138] sm:$0xff]
    %v140 = vld [vmem:[#allocation4 + $0x140] sm:$0xff]
    %v141 = vld [vmem:[#allocation4 + $0x148] sm:$0xff]
    %v142 = vld [vmem:[#allocation4 + $0x150] sm:$0xff]
    %v143 = vld [vmem:[#allocation4 + $0x158] sm:$0xff]
    %v144 = vld [vmem:[#allocation4 + $0x160] sm:$0xff]
    %v145 = vld [vmem:[#allocation4 + $0x168] sm:$0xff]
    %v146 = vld [vmem:[#allocation4 + $0x170] sm:$0xff]
    %v147 = vld [vmem:[#allocation4 + $0x178] sm:$0xff]
    %v180 = vunpack.c.l.b16 %v116
    %v181 = vunpack.c.h.b16 %v116
    %v182 = vunpack.c.l.b16 %v117
    %v183 = vunpack.c.h.b16 %v117
    %v184 = vunpack.c.l.b16 %v118
    %v185 = vunpack.c.h.b16 %v118
    %v186 = vunpack.c.l.b16 %v119
    %v187 = vunpack.c.h.b16 %v119
    %v188 = vunpack.c.l.b16 %v120
    %v189 = vunpack.c.h.b16 %v120
    %v190 = vunpack.c.l.b16 %v121
    %v191 = vunpack.c.h.b16 %v121
    %v192 = vunpack.c.l.b16 %v122
    %v193 = vunpack.c.h.b16 %v122
    %v194 = vunpack.c.l.b16 %v123
    %v195 = vunpack.c.h.b16 %v123
    %v196 = vunpack.c.l.b16 %v124
    %v197 = vunpack.c.h.b16 %v124
    %v198 = vunpack.c.l.b16 %v125
    %v199 = vunpack.c.h.b16 %v125
    %v200 = vunpack.c.l.b16 %v126
    %v201 = vunpack.c.h.b16 %v126
    %v202 = vunpack.c.l.b16 %v127
    %v203 = vunpack.c.h.b16 %v127
    %v204 = vunpack.c.l.b16 %v128
    %v205 = vunpack.c.h.b16 %v128
    %v206 = vunpack.c.l.b16 %v129
    %v207 = vunpack.c.h.b16 %v129
    %v208 = vunpack.c.l.b16 %v130
    %v209 = vunpack.c.h.b16 %v130
    %v210 = vunpack.c.l.b16 %v131
    %v211 = vunpack.c.h.b16 %v131
    %v212 = vunpack.c.l.b16 %v132
    %v213 = vunpack.c.h.b16 %v132
    %v214 = vunpack.c.l.b16 %v133
    %v215 = vunpack.c.h.b16 %v133
    %v216 = vunpack.c.l.b16 %v134
    %v217 = vunpack.c.h.b16 %v134
    %v218 = vunpack.c.l.b16 %v135
    %v219 = vunpack.c.h.b16 %v135
    %v220 = vunpack.c.l.b16 %v136
    %v221 = vunpack.c.h.b16 %v136
    %v222 = vunpack.c.l.b16 %v137
    %v223 = vunpack.c.h.b16 %v137
    %v224 = vunpack.c.l.b16 %v138
    %v225 = vunpack.c.h.b16 %v138
    %v226 = vunpack.c.l.b16 %v139
    %v227 = vunpack.c.h.b16 %v139
    %v228 = vunpack.c.l.b16 %v140
    %v229 = vunpack.c.h.b16 %v140
    %v230 = vunpack.c.l.b16 %v141
    %v231 = vunpack.c.h.b16 %v141
    %v232 = vunpack.c.l.b16 %v142
    %v233 = vunpack.c.h.b16 %v142
    %v234 = vunpack.c.l.b16 %v143
    %v235 = vunpack.c.h.b16 %v143
    %v236 = vunpack.c.l.b16 %v144
    %v237 = vunpack.c.h.b16 %v144
    %v238 = vunpack.c.l.b16 %v145
    %v239 = vunpack.c.h.b16 %v145
    %v240 = vunpack.c.l.b16 %v146
    %v241 = vunpack.c.h.b16 %v146
    %v242 = vunpack.c.l.b16 %v147
    %v243 = vunpack.c.h.b16 %v147
    %v244 = vpack.c.b16 %v188, %v180
    %v245 = vpack.c.b16 %v189, %v181
    %v246 = vpack.c.b16 %v190, %v182
    %v247 = vpack.c.b16 %v191, %v183
    %v248 = vpack.c.b16 %v192, %v184
    %v249 = vpack.c.b16 %v193, %v185
    %v250 = vpack.c.b16 %v194, %v186
    %v251 = vpack.c.b16 %v195, %v187
    %v252 = vpack.c.b16 %v204, %v196
    %v253 = vpack.c.b16 %v205, %v197
    %v254 = vpack.c.b16 %v206, %v198
    %v255 = vpack.c.b16 %v207, %v199
    %v256 = vpack.c.b16 %v208, %v200
    %v257 = vpack.c.b16 %v209, %v201
    %v258 = vpack.c.b16 %v210, %v202
    %v259 = vpack.c.b16 %v211, %v203
    %v260 = vpack.c.b16 %v220, %v212
    %v261 = vpack.c.b16 %v221, %v213
    %v262 = vpack.c.b16 %v222, %v214
    %v263 = vpack.c.b16 %v223, %v215
    %v264 = vpack.c.b16 %v224, %v216
    %v265 = vpack.c.b16 %v225, %v217
    %v266 = vpack.c.b16 %v226, %v218
    %v267 = vpack.c.b16 %v227, %v219
    %v268 = vpack.c.b16 %v236, %v228
    %v269 = vpack.c.b16 %v237, %v229
    %v270 = vpack.c.b16 %v238, %v230
    %v271 = vpack.c.b16 %v239, %v231
    %v272 = vpack.c.b16 %v240, %v232
    %v273 = vpack.c.b16 %v241, %v233
    %v274 = vpack.c.b16 %v242, %v234
    %v275 = vpack.c.b16 %v243, %v235
    %vm308 = vcmask 523264
    %v310 = vsel %vm308, %v99, 0
    %312 = vmatprep.subr.bf16.mxu0 %v245
    %313 = vmatpush1.bf16.msra.mxu0 %v244
    %314 = vmatprep.subr.bf16.mxu0 %v253
    %315 = vmatpush1.bf16.msra.mxu0 %v252
    %316 = vmatprep.subr.bf16.mxu0 %v261
    %317 = vmatpush1.bf16.msra.mxu0 %v260
    %318 = vmatprep.subr.bf16.mxu0 %v269
    %319 = vmatpush1.bf16.msra.mxu0 %v268
    %320 = vmatprep.subr.bf16.mxu0 0
    %321 = vmatpush1.bf16.msra.mxu0 0
    %322 = vmatprep.subr.bf16.mxu0 0
    %323 = vmatpush1.bf16.msra.mxu0 0
    %324 = vmatprep.subr.bf16.mxu0 0
    %325 = vmatpush1.bf16.msra.mxu0 0
    %326 = vmatprep.subr.bf16.mxu0 0
    %327 = vmatpush1.bf16.msra.mxu0 0
    %328 = vmatprep.subr.bf16.mxu0 0
    %329 = vmatpush1.bf16.msra.mxu0 0
    %330 = vmatprep.subr.bf16.mxu0 0
    %331 = vmatpush1.bf16.msra.mxu0 0
    %332 = vmatprep.subr.bf16.mxu0 0
    %333 = vmatpush1.bf16.msra.mxu0 0
    %334 = vmatprep.subr.bf16.mxu0 0
    %335 = vmatpush1.bf16.msra.mxu0 0
    %336 = vmatprep.subr.bf16.mxu0 0
    %337 = vmatpush1.bf16.msra.mxu0 0
    %338 = vmatprep.subr.bf16.mxu0 0
    %339 = vmatpush1.bf16.msra.mxu0 0
    %340 = vmatprep.subr.bf16.mxu0 0
    %341 = vmatpush1.bf16.msra.mxu0 0
    %342 = vmatprep.subr.bf16.mxu0 0
    %343 = vmatpush1.bf16.msra.mxu0 0
    %344 = vmatprep.mubr.bf16.mxu0 0
    %345 = vmatmul.mubr.bf16.gmra.mrb[0].mxu0 %v310
    %v346 = vpop.f32.mrb[0].mxu0
    %v347 = vadd.f32 0.0, %v346
    %v348 = vpop.f32.mrb[0].mxu0
    %v349 = vadd.f32 0.0, %v348
    %v350 = vpop.f32.mrb[0].mxu0
    %v351 = vpop.f32.mrb[0].mxu0
    %352 = vdwg.mxu0
    %353 = vmatprep.subr.bf16.mxu0 %v247
    %354 = vmatpush1.bf16.msra.mxu0 %v246
    %355 = vmatprep.subr.bf16.mxu0 %v255
    %356 = vmatpush1.bf16.msra.mxu0 %v254
    %357 = vmatprep.subr.bf16.mxu0 %v263
    %358 = vmatpush1.bf16.msra.mxu0 %v262
    %359 = vmatprep.subr.bf16.mxu0 %v271
    %360 = vmatpush1.bf16.msra.mxu0 %v270
    %361 = vmatprep.subr.bf16.mxu0 0
    %362 = vmatpush1.bf16.msra.mxu0 0
    %363 = vmatprep.subr.bf16.mxu0 0
    %364 = vmatpush1.bf16.msra.mxu0 0
    %365 = vmatprep.subr.bf16.mxu0 0
    %366 = vmatpush1.bf16.msra.mxu0 0
    %367 = vmatprep.subr.bf16.mxu0 0
    %368 = vmatpush1.bf16.msra.mxu0 0
    %369 = vmatprep.subr.bf16.mxu0 0
    %370 = vmatpush1.bf16.msra.mxu0 0
    %371 = vmatprep.subr.bf16.mxu0 0
    %372 = vmatpush1.bf16.msra.mxu0 0
    %373 = vmatprep.subr.bf16.mxu0 0
    %374 = vmatpush1.bf16.msra.mxu0 0
    %375 = vmatprep.subr.bf16.mxu0 0
    %376 = vmatpush1.bf16.msra.mxu0 0
    %377 = vmatprep.subr.bf16.mxu0 0
    %378 = vmatpush1.bf16.msra.mxu0 0
    %379 = vmatprep.subr.bf16.mxu0 0
    %380 = vmatpush1.bf16.msra.mxu0 0
    %381 = vmatprep.subr.bf16.mxu0 0
    %382 = vmatpush1.bf16.msra.mxu0 0
    %383 = vmatprep.subr.bf16.mxu0 0
    %384 = vmatpush1.bf16.msra.mxu0 0
    %385 = vmatprep.mubr.bf16.mxu0 0
    %386 = vmatmul.mubr.bf16.gmra.mrb[0].mxu0 %v310
    %v387 = vpop.f32.mrb[0].mxu0
    %v388 = vadd.f32 0.0, %v387
    %v389 = vpop.f32.mrb[0].mxu0
    %v390 = vadd.f32 0.0, %v389
    %v391 = vpop.f32.mrb[0].mxu0
    %v392 = vpop.f32.mrb[0].mxu0
    %393 = vdwg.mxu0
    %394 = vmatprep.subr.bf16.mxu0 %v249
    %395 = vmatpush1.bf16.msra.mxu0 %v248
    %396 = vmatprep.subr.bf16.mxu0 %v257
    %397 = vmatpush1.bf16.msra.mxu0 %v256
    %398 = vmatprep.subr.bf16.mxu0 %v265
    %399 = vmatpush1.bf16.msra.mxu0 %v264
    %400 = vmatprep.subr.bf16.mxu0 %v273
    %401 = vmatpush1.bf16.msra.mxu0 %v272
    %402 = vmatprep.subr.bf16.mxu0 0
    %403 = vmatpush1.bf16.msra.mxu0 0
    %404 = vmatprep.subr.bf16.mxu0 0
    %405 = vmatpush1.bf16.msra.mxu0 0
    %406 = vmatprep.subr.bf16.mxu0 0
    %407 = vmatpush1.bf16.msra.mxu0 0
    %408 = vmatprep.subr.bf16.mxu0 0
    %409 = vmatpush1.bf16.msra.mxu0 0
    %410 = vmatprep.subr.bf16.mxu0 0
    %411 = vmatpush1.bf16.msra.mxu0 0
    %412 = vmatprep.subr.bf16.mxu0 0
    %413 = vmatpush1.bf16.msra.mxu0 0
    %414 = vmatprep.subr.bf16.mxu0 0
    %415 = vmatpush1.bf16.msra.mxu0 0
    %416 = vmatprep.subr.bf16.mxu0 0
    %417 = vmatpush1.bf16.msra.mxu0 0
    %418 = vmatprep.subr.bf16.mxu0 0
    %419 = vmatpush1.bf16.msra.mxu0 0
    %420 = vmatprep.subr.bf16.mxu0 0
    %421 = vmatpush1.bf16.msra.mxu0 0
    %422 = vmatprep.subr.bf16.mxu0 0
    %423 = vmatpush1.bf16.msra.mxu0 0
    %424 = vmatprep.subr.bf16.mxu0 0
    %425 = vmatpush1.bf16.msra.mxu0 0
    %426 = vmatprep.mubr.bf16.mxu0 0
    %427 = vmatmul.mubr.bf16.gmra.mrb[0].mxu0 %v310
    %v428 = vpop.f32.mrb[0].mxu0
    %v429 = vadd.f32 0.0, %v428
    %v430 = vpop.f32.mrb[0].mxu0
    %v431 = vadd.f32 0.0, %v430
    %v432 = vpop.f32.mrb[0].mxu0
    %v433 = vpop.f32.mrb[0].mxu0
    %434 = vdwg.mxu0
    %435 = vmatprep.subr.bf16.mxu0 %v251
    %436 = vmatpush1.bf16.msra.mxu0 %v250
    %437 = vmatprep.subr.bf16.mxu0 %v259
    %438 = vmatpush1.bf16.msra.mxu0 %v258
    %439 = vmatprep.subr.bf16.mxu0 %v267
    %440 = vmatpush1.bf16.msra.mxu0 %v266
    %441 = vmatprep.subr.bf16.mxu0 %v275
    %442 = vmatpush1.bf16.msra.mxu0 %v274
    %443 = vmatprep.subr.bf16.mxu0 0
    %444 = vmatpush1.bf16.msra.mxu0 0
    %445 = vmatprep.subr.bf16.mxu0 0
    %446 = vmatpush1.bf16.msra.mxu0 0
    %447 = vmatprep.subr.bf16.mxu0 0
    %448 = vmatpush1.bf16.msra.mxu0 0
    %449 = vmatprep.subr.bf16.mxu0 0
    %450 = vmatpush1.bf16.msra.mxu0 0
    %451 = vmatprep.subr.bf16.mxu0 0
    %452 = vmatpush1.bf16.msra.mxu0 0
    %453 = vmatprep.subr.bf16.mxu0 0
    %454 = vmatpush1.bf16.msra.mxu0 0
    %455 = vmatprep.subr.bf16.mxu0 0
    %456 = vmatpush1.bf16.msra.mxu0 0
    %457 = vmatprep.subr.bf16.mxu0 0
    %458 = vmatpush1.bf16.msra.mxu0 0
    %459 = vmatprep.subr.bf16.mxu0 0
    %460 = vmatpush1.bf16.msra.mxu0 0
    %461 = vmatprep.subr.bf16.mxu0 0
    %462 = vmatpush1.bf16.msra.mxu0 0
    %463 = vmatprep.subr.bf16.mxu0 0
    %464 = vmatpush1.bf16.msra.mxu0 0
    %465 = vmatprep.subr.bf16.mxu0 0
    %466 = vmatpush1.bf16.msra.mxu0 0
    %467 = vmatprep.mubr.bf16.mxu0 0
    %468 = vmatmul.mubr.bf16.gmra.mrb[0].mxu0 %v310
    %v469 = vpop.f32.mrb[0].mxu0
    %v470 = vadd.f32 0.0, %v469
    %v471 = vpop.f32.mrb[0].mxu0
    %v472 = vadd.f32 0.0, %v471
    %v473 = vpop.f32.mrb[0].mxu0
    %v474 = vpop.f32.mrb[0].mxu0
    %475 = vdwg.mxu0
    %v492 = vunpack.c.l.b16 %v100
    %v493 = vunpack.c.h.b16 %v100
    %v494 = vunpack.c.l.b16 %v101
    %v495 = vunpack.c.h.b16 %v101
    %v496 = vunpack.c.l.b16 %v102
    %v497 = vunpack.c.h.b16 %v102
    %v498 = vunpack.c.l.b16 %v103
    %v499 = vunpack.c.h.b16 %v103
    %v500 = vunpack.c.l.b16 %v104
    %v501 = vunpack.c.h.b16 %v104
    %v502 = vunpack.c.l.b16 %v105
    %v503 = vunpack.c.h.b16 %v105
    %v504 = vunpack.c.l.b16 %v106
    %v505 = vunpack.c.h.b16 %v106
    %v506 = vunpack.c.l.b16 %v107
    %v507 = vunpack.c.h.b16 %v107
    %v508 = vunpack.c.l.b16 %v108
    %v509 = vunpack.c.h.b16 %v108
    %v510 = vunpack.c.l.b16 %v109
    %v511 = vunpack.c.h.b16 %v109
    %v512 = vunpack.c.l.b16 %v110
    %v513 = vunpack.c.h.b16 %v110
    %v514 = vunpack.c.l.b16 %v111
    %v515 = vunpack.c.h.b16 %v111
    %v516 = vunpack.c.l.b16 %v112
    %v517 = vunpack.c.h.b16 %v112
    %v518 = vunpack.c.l.b16 %v113
    %v519 = vunpack.c.h.b16 %v113
    %v520 = vunpack.c.l.b16 %v114
    %v521 = vunpack.c.h.b16 %v114
    %v522 = vunpack.c.l.b16 %v115
    %v523 = vunpack.c.h.b16 %v115
    %v524 = vpack.c.b16 %v500, %v492
    %v525 = vpack.c.b16 %v501, %v493
    %v526 = vpack.c.b16 %v502, %v494
    %v527 = vpack.c.b16 %v503, %v495
    %v528 = vpack.c.b16 %v504, %v496
    %v529 = vpack.c.b16 %v505, %v497
    %v530 = vpack.c.b16 %v506, %v498
    %v531 = vpack.c.b16 %v507, %v499
    %v532 = vpack.c.b16 %v516, %v508
    %v533 = vpack.c.b16 %v517, %v509
    %v534 = vpack.c.b16 %v518, %v510
    %v535 = vpack.c.b16 %v519, %v511
    %v536 = vpack.c.b16 %v520, %v512
    %v537 = vpack.c.b16 %v521, %v513
    %v538 = vpack.c.b16 %v522, %v514
    %v539 = vpack.c.b16 %v523, %v515
    %vm556 = vcmask 261120
    %v558 = vsel %vm556, %v97, 0
    %560 = vmatprep.subr.bf16.mxu0 %v525
    %561 = vmatpush1.bf16.msra.mxu0 %v524
    %562 = vmatprep.subr.bf16.mxu0 %v533
    %563 = vmatpush1.bf16.msra.mxu0 %v532
    %564 = vmatprep.subr.bf16.mxu0 0
    %565 = vmatpush1.bf16.msra.mxu0 0
    %566 = vmatprep.subr.bf16.mxu0 0
    %567 = vmatpush1.bf16.msra.mxu0 0
    %568 = vmatprep.subr.bf16.mxu0 0
    %569 = vmatpush1.bf16.msra.mxu0 0
    %570 = vmatprep.subr.bf16.mxu0 0
    %571 = vmatpush1.bf16.msra.mxu0 0
    %572 = vmatprep.subr.bf16.mxu0 0
    %573 = vmatpush1.bf16.msra.mxu0 0
    %574 = vmatprep.subr.bf16.mxu0 0
    %575 = vmatpush1.bf16.msra.mxu0 0
    %576 = vmatprep.subr.bf16.mxu0 0
    %577 = vmatpush1.bf16.msra.mxu0 0
    %578 = vmatprep.subr.bf16.mxu0 0
    %579 = vmatpush1.bf16.msra.mxu0 0
    %580 = vmatprep.subr.bf16.mxu0 0
    %581 = vmatpush1.bf16.msra.mxu0 0
    %582 = vmatprep.subr.bf16.mxu0 0
    %583 = vmatpush1.bf16.msra.mxu0 0
    %584 = vmatprep.subr.bf16.mxu0 0
    %585 = vmatpush1.bf16.msra.mxu0 0
    %586 = vmatprep.subr.bf16.mxu0 0
    %587 = vmatpush1.bf16.msra.mxu0 0
    %588 = vmatprep.subr.bf16.mxu0 0
    %589 = vmatpush1.bf16.msra.mxu0 0
    %590 = vmatprep.subr.bf16.mxu0 0
    %591 = vmatpush1.bf16.msra.mxu0 0
    %592 = vmatprep.mubr.bf16.mxu0 0
    %593 = vmatmul.mubr.bf16.gmra.mrb[0].mxu0 %v558
    %v594 = vpop.f32.mrb[0].mxu0
    %v595 = vadd.f32 %v347, %v594
    %v596 = vpop.f32.mrb[0].mxu0
    %v597 = vadd.f32 %v349, %v596
    %v598 = vpop.f32.mrb[0].mxu0
    %v599 = vpop.f32.mrb[0].mxu0
    %600 = vdwg.mxu0
    %601 = vmatprep.subr.bf16.mxu0 %v527
    %602 = vmatpush1.bf16.msra.mxu0 %v526
    %603 = vmatprep.subr.bf16.mxu0 %v535
    %604 = vmatpush1.bf16.msra.mxu0 %v534
    %605 = vmatprep.subr.bf16.mxu0 0
    %606 = vmatpush1.bf16.msra.mxu0 0
    %607 = vmatprep.subr.bf16.mxu0 0
    %608 = vmatpush1.bf16.msra.mxu0 0
    %609 = vmatprep.subr.bf16.mxu0 0
    %610 = vmatpush1.bf16.msra.mxu0 0
    %611 = vmatprep.subr.bf16.mxu0 0
    %612 = vmatpush1.bf16.msra.mxu0 0
    %613 = vmatprep.subr.bf16.mxu0 0
    %614 = vmatpush1.bf16.msra.mxu0 0
    %615 = vmatprep.subr.bf16.mxu0 0
    %616 = vmatpush1.bf16.msra.mxu0 0
    %617 = vmatprep.subr.bf16.mxu0 0
    %618 = vmatpush1.bf16.msra.mxu0 0
    %619 = vmatprep.subr.bf16.mxu0 0
    %620 = vmatpush1.bf16.msra.mxu0 0
    %621 = vmatprep.subr.bf16.mxu0 0
    %622 = vmatpush1.bf16.msra.mxu0 0
    %623 = vmatprep.subr.bf16.mxu0 0
    %624 = vmatpush1.bf16.msra.mxu0 0
    %625 = vmatprep.subr.bf16.mxu0 0
    %626 = vmatpush1.bf16.msra.mxu0 0
    %627 = vmatprep.subr.bf16.mxu0 0
    %628 = vmatpush1.bf16.msra.mxu0 0
    %629 = vmatprep.subr.bf16.mxu0 0
    %630 = vmatpush1.bf16.msra.mxu0 0
    %631 = vmatprep.subr.bf16.mxu0 0
    %632 = vmatpush1.bf16.msra.mxu0 0
    %633 = vmatprep.mubr.bf16.mxu0 0
    %634 = vmatmul.mubr.bf16.gmra.mrb[0].mxu0 %v558
    %v635 = vpop.f32.mrb[0].mxu0
    %v636 = vadd.f32 %v388, %v635
    %v637 = vpop.f32.mrb[0].mxu0
    %v638 = vadd.f32 %v390, %v637
    %v639 = vpop.f32.mrb[0].mxu0
    %v640 = vpop.f32.mrb[0].mxu0
    %641 = vdwg.mxu0
    %642 = vmatprep.subr.bf16.mxu0 %v529
    %643 = vmatpush1.bf16.msra.mxu0 %v528
    %644 = vmatprep.subr.bf16.mxu0 %v537
    %645 = vmatpush1.bf16.msra.mxu0 %v536
    %646 = vmatprep.subr.bf16.mxu0 0
    %647 = vmatpush1.bf16.msra.mxu0 0
    %648 = vmatprep.subr.bf16.mxu0 0
    %649 = vmatpush1.bf16.msra.mxu0 0
    %650 = vmatprep.subr.bf16.mxu0 0
    %651 = vmatpush1.bf16.msra.mxu0 0
    %652 = vmatprep.subr.bf16.mxu0 0
    %653 = vmatpush1.bf16.msra.mxu0 0
    %654 = vmatprep.subr.bf16.mxu0 0
    %655 = vmatpush1.bf16.msra.mxu0 0
    %656 = vmatprep.subr.bf16.mxu0 0
    %657 = vmatpush1.bf16.msra.mxu0 0
    %658 = vmatprep.subr.bf16.mxu0 0
    %659 = vmatpush1.bf16.msra.mxu0 0
    %660 = vmatprep.subr.bf16.mxu0 0
    %661 = vmatpush1.bf16.msra.mxu0 0
    %662 = vmatprep.subr.bf16.mxu0 0
    %663 = vmatpush1.bf16.msra.mxu0 0
    %664 = vmatprep.subr.bf16.mxu0 0
    %665 = vmatpush1.bf16.msra.mxu0 0
    %666 = vmatprep.subr.bf16.mxu0 0
    %667 = vmatpush1.bf16.msra.mxu0 0
    %668 = vmatprep.subr.bf16.mxu0 0
    %669 = vmatpush1.bf16.msra.mxu0 0
    %670 = vmatprep.subr.bf16.mxu0 0
    %671 = vmatpush1.bf16.msra.mxu0 0
    %672 = vmatprep.subr.bf16.mxu0 0
    %673 = vmatpush1.bf16.msra.mxu0 0
    %674 = vmatprep.mubr.bf16.mxu0 0
    %675 = vmatmul.mubr.bf16.gmra.mrb[0].mxu0 %v558
    %v676 = vpop.f32.mrb[0].mxu0
    %v677 = vadd.f32 %v429, %v676
    %v678 = vpop.f32.mrb[0].mxu0
    %v679 = vadd.f32 %v431, %v678
    %v680 = vpop.f32.mrb[0].mxu0
    %v681 = vpop.f32.mrb[0].mxu0
    %682 = vdwg.mxu0
    %683 = vmatprep.subr.bf16.mxu0 %v531
    %684 = vmatpush1.bf16.msra.mxu0 %v530
    %685 = vmatprep.subr.bf16.mxu0 %v539
    %686 = vmatpush1.bf16.msra.mxu0 %v538
    %687 = vmatprep.subr.bf16.mxu0 0
    %688 = vmatpush1.bf16.msra.mxu0 0
    %689 = vmatprep.subr.bf16.mxu0 0
    %690 = vmatpush1.bf16.msra.mxu0 0
    %691 = vmatprep.subr.bf16.mxu0 0
    %692 = vmatpush1.bf16.msra.mxu0 0
    %693 = vmatprep.subr.bf16.mxu0 0
    %694 = vmatpush1.bf16.msra.mxu0 0
    %695 = vmatprep.subr.bf16.mxu0 0
    %696 = vmatpush1.bf16.msra.mxu0 0
    %697 = vmatprep.subr.bf16.mxu0 0
    %698 = vmatpush1.bf16.msra.mxu0 0
    %699 = vmatprep.subr.bf16.mxu0 0
    %700 = vmatpush1.bf16.msra.mxu0 0
    %701 = vmatprep.subr.bf16.mxu0 0
    %702 = vmatpush1.bf16.msra.mxu0 0
    %703 = vmatprep.subr.bf16.mxu0 0
    %704 = vmatpush1.bf16.msra.mxu0 0
    %705 = vmatprep.subr.bf16.mxu0 0
    %706 = vmatpush1.bf16.msra.mxu0 0
    %707 = vmatprep.subr.bf16.mxu0 0
    %708 = vmatpush1.bf16.msra.mxu0 0
    %709 = vmatprep.subr.bf16.mxu0 0
    %710 = vmatpush1.bf16.msra.mxu0 0
    %711 = vmatprep.subr.bf16.mxu0 0
    %712 = vmatpush1.bf16.msra.mxu0 0
    %713 = vmatprep.subr.bf16.mxu0 0
    %714 = vmatpush1.bf16.msra.mxu0 0
    %715 = vmatprep.mubr.bf16.mxu0 0
    %716 = vmatmul.mubr.bf16.gmra.mrb[0].mxu0 %v558
    %v717 = vpop.f32.mrb[0].mxu0
    %v718 = vadd.f32 %v470, %v717
    %v719 = vpop.f32.mrb[0].mxu0
    %v720 = vadd.f32 %v472, %v719
    %v721 = vpop.f32.mrb[0].mxu0
    %v722 = vpop.f32.mrb[0].mxu0
    %723 = vdwg.mxu0
    %v724 = vld [vmem:[#allocation9] ss:$8 sm:$0xf]
    %v725 = vld [vmem:[#allocation9] ss:$8 sm:$0xf0]
    %v726 = vor.u32 %v724, %v725
    %s727 = scalar_lea.vmem [#allocation9], 1
    %v728 = vld [vmem:[%s727] ss:$8 sm:$0xf]
    %v729 = vld [vmem:[%s727] ss:$8 sm:$0xf0]
    %v730 = vor.u32 %v728, %v729
    %v731 = vrot.slane %v595, 4
    %v732 = vadd.f32 %v595, %v731
    %v733 = vrot.slane %v732, 2
    %v734 = vadd.f32 %v732, %v733
    %v735 = vrot.slane %v734, 1
    %v736 = vadd.f32 %v734, %v735
    %v737 = vrot.slane %v597, 4
    %v738 = vadd.f32 %v597, %v737
    %v739 = vrot.slane %v738, 2
    %v740 = vadd.f32 %v738, %v739
    %v741 = vrot.slane %v740, 1
    %v742 = vadd.f32 %v740, %v741
    %v743 = vrot.slane %v636, 4
    %v744 = vadd.f32 %v636, %v743
    %v745 = vrot.slane %v744, 2
    %v746 = vadd.f32 %v744, %v745
    %v747 = vrot.slane %v746, 1
    %v748 = vadd.f32 %v746, %v747
    %v749 = vrot.slane %v638, 4
    %v750 = vadd.f32 %v638, %v749
    %v751 = vrot.slane %v750, 2
    %v752 = vadd.f32 %v750, %v751
    %v753 = vrot.slane %v752, 1
    %v754 = vadd.f32 %v752, %v753
    %v755 = vrot.slane %v677, 4
    %v756 = vadd.f32 %v677, %v755
    %v757 = vrot.slane %v756, 2
    %v758 = vadd.f32 %v756, %v757
    %v759 = vrot.slane %v758, 1
    %v760 = vadd.f32 %v758, %v759
    %v761 = vrot.slane %v679, 4
    %v762 = vadd.f32 %v679, %v761
    %v763 = vrot.slane %v762, 2
    %v764 = vadd.f32 %v762, %v763
    %v765 = vrot.slane %v764, 1
    %v766 = vadd.f32 %v764, %v765
    %v767 = vrot.slane %v718, 4
    %v768 = vadd.f32 %v718, %v767
    %v769 = vrot.slane %v768, 2
    %v770 = vadd.f32 %v768, %v769
    %v771 = vrot.slane %v770, 1
    %v772 = vadd.f32 %v770, %v771
    %v773 = vrot.slane %v720, 4
    %v774 = vadd.f32 %v720, %v773
    %v775 = vrot.slane %v774, 2
    %v776 = vadd.f32 %v774, %v775
    %v777 = vrot.slane %v776, 1
    %v778 = vadd.f32 %v776, %v777
    %v779 = vmul.f32 %v736, 0.125
    %v780 = vmul.f32 %v742, 0.125
    %v781 = vmul.f32 %v748, 0.125
    %v782 = vmul.f32 %v754, 0.125
    %v783 = vmul.f32 %v760, 0.125
    %v784 = vmul.f32 %v766, 0.125
    %v785 = vmul.f32 %v772, 0.125
    %v786 = vmul.f32 %v778, 0.125
    %v787 = vsub.f32 %v595, %v779
    %v788 = vsub.f32 %v597, %v780
    %v789 = vsub.f32 %v636, %v781
    %v790 = vsub.f32 %v638, %v782
    %v791 = vsub.f32 %v677, %v783
    %v792 = vsub.f32 %v679, %v784
    %v793 = vsub.f32 %v718, %v785
    %v794 = vsub.f32 %v720, %v786
    %v795 = vmul.f32 %v787, %v787
    %v796 = vmul.f32 %v788, %v788
    %v797 = vmul.f32 %v789, %v789
    %v798 = vmul.f32 %v790, %v790
    %v799 = vmul.f32 %v791, %v791
    %v800 = vmul.f32 %v792, %v792
    %v801 = vmul.f32 %v793, %v793
    %v802 = vmul.f32 %v794, %v794
    %v803 = vrot.slane %v795, 4
    %v804 = vadd.f32 %v795, %v803
    %v805 = vrot.slane %v804, 2
    %v806 = vadd.f32 %v804, %v805
    %v807 = vrot.slane %v806, 1
    %v808 = vadd.f32 %v806, %v807
    %v809 = vrot.slane %v796, 4
    %v810 = vadd.f32 %v796, %v809
    %v811 = vrot.slane %v810, 2
    %v812 = vadd.f32 %v810, %v811
    %v813 = vrot.slane %v812, 1
    %v814 = vadd.f32 %v812, %v813
    %v815 = vrot.slane %v797, 4
    %v816 = vadd.f32 %v797, %v815
    %v817 = vrot.slane %v816, 2
    %v818 = vadd.f32 %v816, %v817
    %v819 = vrot.slane %v818, 1
    %v820 = vadd.f32 %v818, %v819
    %v821 = vrot.slane %v798, 4
    %v822 = vadd.f32 %v798, %v821
    %v823 = vrot.slane %v822, 2
    %v824 = vadd.f32 %v822, %v823
    %v825 = vrot.slane %v824, 1
    %v826 = vadd.f32 %v824, %v825
    %v827 = vrot.slane %v799, 4
    %v828 = vadd.f32 %v799, %v827
    %v829 = vrot.slane %v828, 2
    %v830 = vadd.f32 %v828, %v829
    %v831 = vrot.slane %v830, 1
    %v832 = vadd.f32 %v830, %v831
    %v833 = vrot.slane %v800, 4
    %v834 = vadd.f32 %v800, %v833
    %v835 = vrot.slane %v834, 2
    %v836 = vadd.f32 %v834, %v835
    %v837 = vrot.slane %v836, 1
    %v838 = vadd.f32 %v836, %v837
    %v839 = vrot.slane %v801, 4
    %v840 = vadd.f32 %v801, %v839
    %v841 = vrot.slane %v840, 2
    %v842 = vadd.f32 %v840, %v841
    %v843 = vrot.slane %v842, 1
    %v844 = vadd.f32 %v842, %v843
    %v845 = vrot.slane %v802, 4
    %v846 = vadd.f32 %v802, %v845
    %v847 = vrot.slane %v846, 2
    %v848 = vadd.f32 %v846, %v847
    %v849 = vrot.slane %v848, 1
    %v850 = vadd.f32 %v848, %v849
    %v851 = vmul.f32 %v808, 0.125
    %v852 = vmul.f32 %v814, 0.125
    %v853 = vmul.f32 %v820, 0.125
    %v854 = vmul.f32 %v826, 0.125
    %v855 = vmul.f32 %v832, 0.125
    %v856 = vmul.f32 %v838, 0.125
    %v857 = vmul.f32 %v844, 0.125
    %v858 = vmul.f32 %v850, 0.125
    %v859 = vadd.f32 %v851, 1e-05
    %v860 = vadd.f32 %v852, 1e-05
    %v861 = vadd.f32 %v853, 1e-05
    %v862 = vadd.f32 %v854, 1e-05
    %v863 = vadd.f32 %v855, 1e-05
    %v864 = vadd.f32 %v856, 1e-05
    %v865 = vadd.f32 %v857, 1e-05
    %v866 = vadd.f32 %v858, 1e-05
    %v867 = vrsqrt.pop %v859
    %v868 = vrsqrt.pop %v860
    %v869 = vrsqrt.pop %v861
    %v870 = vrsqrt.pop %v862
    %v871 = vrsqrt.pop %v863
    %v872 = vrsqrt.pop %v864
    %v873 = vrsqrt.pop %v865
    %v874 = vrsqrt.pop %v866
    %v883 = vcombine.low %v867, %v868
    %v884 = vcombine.low %v869, %v870
    %v885 = vcombine.low %v871, %v872
    %v886 = vcombine.low %v873, %v874
    %v888 = vunpack.c.l.s4 1966171168
    %v889 = vunpack.c.0.s8 %v888
    %v890 = vlaneseq
    %v891 = vshrl.u32 %v890, 7
    %v892 = vsub.s32 %v889, %v891
    %v893 = vrot.slane %v883, %v892
    %v895 = vunpack.c.l.s4 1966171168
    %v896 = vunpack.c.0.s8 %v895
    %v897 = vlaneseq
    %v898 = vshrl.u32 %v897, 7
    %v899 = vsub.s32 %v896, %v898
    %v900 = vrot.slane %v884, %v899
    %v902 = vunpack.c.l.s4 1966171168
    %v903 = vunpack.c.0.s8 %v902
    %v904 = vlaneseq
    %v905 = vshrl.u32 %v904, 7
    %v906 = vsub.s32 %v903, %v905
    %v907 = vrot.slane %v885, %v906
    %v909 = vunpack.c.l.s4 1966171168
    %v910 = vunpack.c.0.s8 %v909
    %v911 = vlaneseq
    %v912 = vshrl.u32 %v911, 7
    %v913 = vsub.s32 %v910, %v912
    %v914 = vrot.slane %v886, %v913
    %v915 = vcombine.low %v893, %v900
    %v916 = vcombine.low %v907, %v914
    %v918 = vunpack.c.l.s4 1966171168
    %v919 = vunpack.c.0.s8 %v918
    %v920 = vlaneseq
    %v921 = vshrl.u32 %v920, 7
    %v922 = vsub.s32 %v919, %v921
    %v923 = vrot.slane %v915, %v922
    %v925 = vunpack.c.l.s4 1966171168
    %v926 = vunpack.c.0.s8 %v925
    %v927 = vlaneseq
    %v928 = vshrl.u32 %v927, 7
    %v929 = vsub.s32 %v926, %v928
    %v930 = vrot.slane %v916, %v929
    %v931 = vcombine.low %v923, %v930
    %v933 = vmul.f32 %v726, %v931
    %v935 = vlaneseq
    %v936 = vshrl.u32 %v935, 7
    %v937 = vsub.s32 0, %v936
    %v938 = vrot.slane %v933, %v937
    %v939 = vlaneseq
    %v940 = vshrl.u32 %v939, 7
    %v941 = vsub.s32 1, %v940
    %v942 = vrot.slane %v933, %v941
    %v943 = vlaneseq
    %v944 = vshrl.u32 %v943, 7
    %v945 = vsub.s32 2, %v944
    %v946 = vrot.slane %v933, %v945
    %v947 = vlaneseq
    %v948 = vshrl.u32 %v947, 7
    %v949 = vsub.s32 3, %v948
    %v950 = vrot.slane %v933, %v949
    %v951 = vlaneseq
    %v952 = vshrl.u32 %v951, 7
    %v953 = vsub.s32 4, %v952
    %v954 = vrot.slane %v933, %v953
    %v955 = vlaneseq
    %v956 = vshrl.u32 %v955, 7
    %v957 = vsub.s32 5, %v956
    %v958 = vrot.slane %v933, %v957
    %v959 = vlaneseq
    %v960 = vshrl.u32 %v959, 7
    %v961 = vsub.s32 6, %v960
    %v962 = vrot.slane %v933, %v961
    %v963 = vlaneseq
    %v964 = vshrl.u32 %v963, 7
    %v965 = vsub.s32 7, %v964
    %v966 = vrot.slane %v933, %v965
    %v975 = vmul.f32 %v787, %v938
    %v976 = vmul.f32 %v788, %v942
    %v977 = vmul.f32 %v789, %v946
    %v978 = vmul.f32 %v790, %v950
    %v979 = vmul.f32 %v791, %v954
    %v980 = vmul.f32 %v792, %v958
    %v981 = vmul.f32 %v793, %v962
    %v982 = vmul.f32 %v794, %v966
    %v984 = vlaneseq
    %v985 = vshrl.u32 %v984, 7
    %v986 = vsub.s32 0, %v985
    %v987 = vrot.slane %v730, %v986
    %v988 = vlaneseq
    %v989 = vshrl.u32 %v988, 7
    %v990 = vsub.s32 1, %v989
    %v991 = vrot.slane %v730, %v990
    %v992 = vlaneseq
    %v993 = vshrl.u32 %v992, 7
    %v994 = vsub.s32 2, %v993
    %v995 = vrot.slane %v730, %v994
    %v996 = vlaneseq
    %v997 = vshrl.u32 %v996, 7
    %v998 = vsub.s32 3, %v997
    %v999 = vrot.slane %v730, %v998
    %v1000 = vlaneseq
    %v1001 = vshrl.u32 %v1000, 7
    %v1002 = vsub.s32 4, %v1001
    %v1003 = vrot.slane %v730, %v1002
    %v1004 = vlaneseq
    %v1005 = vshrl.u32 %v1004, 7
    %v1006 = vsub.s32 5, %v1005
    %v1007 = vrot.slane %v730, %v1006
    %v1008 = vlaneseq
    %v1009 = vshrl.u32 %v1008, 7
    %v1010 = vsub.s32 6, %v1009
    %v1011 = vrot.slane %v730, %v1010
    %v1012 = vlaneseq
    %v1013 = vshrl.u32 %v1012, 7
    %v1014 = vsub.s32 7, %v1013
    %v1015 = vrot.slane %v730, %v1014
    %v1024 = vadd.f32 %v975, %v987
    %v1025 = vadd.f32 %v976, %v991
    %v1026 = vadd.f32 %v977, %v995
    %v1027 = vadd.f32 %v978, %v999
    %v1028 = vadd.f32 %v979, %v1003
    %v1029 = vadd.f32 %v980, %v1007
    %v1030 = vadd.f32 %v981, %v1011
    %v1031 = vadd.f32 %v982, %v1015
    %v1032 = vmax.f32 %v1024, 0.0
    %v1033 = vmax.f32 %v1025, 0.0
    %v1034 = vmax.f32 %v1026, 0.0
    %v1035 = vmax.f32 %v1027, 0.0
    %v1036 = vmax.f32 %v1028, 0.0
    %v1037 = vmax.f32 %v1029, 0.0
    %v1038 = vmax.f32 %v1030, 0.0
    %v1039 = vmax.f32 %v1031, 0.0
    %v1040 = vpack.c.bf16 %v1032, %v1032
    %v1041 = vpack.c.bf16 %v1033, %v1033
    %v1042 = vpack.c.bf16 %v1034, %v1034
    %v1043 = vpack.c.bf16 %v1035, %v1035
    %v1044 = vpack.c.bf16 %v1036, %v1036
    %v1045 = vpack.c.bf16 %v1037, %v1037
    %v1046 = vpack.c.bf16 %v1038, %v1038
    %v1047 = vpack.c.bf16 %v1039, %v1039
    %v1048 = vld [vmem:[#allocation6] sm:$0xff]
    %v1049 = vld [vmem:[#allocation6 + $0x8] sm:$0xff]
    %v1050 = vld [vmem:[#allocation6 + $0x10] sm:$0xff]
    %v1051 = vld [vmem:[#allocation6 + $0x18] sm:$0xff]
    %v1052 = vld [vmem:[#allocation6 + $0x20] sm:$0xff]
    %v1053 = vld [vmem:[#allocation6 + $0x28] sm:$0xff]
    %v1054 = vld [vmem:[#allocation6 + $0x30] sm:$0xff]
    %v1055 = vld [vmem:[#allocation6 + $0x38] sm:$0xff]
    %v1056 = vld [vmem:[#allocation6 + $0x40] sm:$0xff]
    %v1057 = vld [vmem:[#allocation6 + $0x48] sm:$0xff]
    %v1058 = vld [vmem:[#allocation6 + $0x50] sm:$0xff]
    %v1059 = vld [vmem:[#allocation6 + $0x58] sm:$0xff]
    %v1060 = vld [vmem:[#allocation6 + $0x60] sm:$0xff]
    %v1061 = vld [vmem:[#allocation6 + $0x68] sm:$0xff]
    %v1062 = vld [vmem:[#allocation6 + $0x70] sm:$0xff]
    %v1063 = vld [vmem:[#allocation6 + $0x78] sm:$0xff]
    %v1064 = vld [vmem:[#allocation6 + $0x80] sm:$0xff]
    %v1065 = vld [vmem:[#allocation6 + $0x88] sm:$0xff]
    %v1066 = vld [vmem:[#allocation6 + $0x90] sm:$0xff]
    %v1067 = vld [vmem:[#allocation6 + $0x98] sm:$0xff]
    %v1068 = vld [vmem:[#allocation6 + $0xa0] sm:$0xff]
    %v1069 = vld [vmem:[#allocation6 + $0xa8] sm:$0xff]
    %v1070 = vld [vmem:[#allocation6 + $0xb0] sm:$0xff]
    %v1071 = vld [vmem:[#allocation6 + $0xb8] sm:$0xff]
    %v1072 = vld [vmem:[#allocation6 + $0xc0] sm:$0xff]
    %v1073 = vld [vmem:[#allocation6 + $0xc8] sm:$0xff]
    %v1074 = vld [vmem:[#allocation6 + $0xd0] sm:$0xff]
    %v1075 = vld [vmem:[#allocation6 + $0xd8] sm:$0xff]
    %v1076 = vld [vmem:[#allocation6 + $0xe0] sm:$0xff]
    %v1077 = vld [vmem:[#allocation6 + $0xe8] sm:$0xff]
    %v1078 = vld [vmem:[#allocation6 + $0xf0] sm:$0xff]
    %v1079 = vld [vmem:[#allocation6 + $0xf8] sm:$0xff]
    %v1080 = vld [vmem:[#allocation6 + $0x100] sm:$0xff]
    %v1081 = vld [vmem:[#allocation6 + $0x108] sm:$0xff]
    %v1082 = vld [vmem:[#allocation6 + $0x110] sm:$0xff]
    %v1083 = vld [vmem:[#allocation6 + $0x118] sm:$0xff]
    %v1084 = vld [vmem:[#allocation6 + $0x120] sm:$0xff]
    %v1085 = vld [vmem:[#allocation6 + $0x128] sm:$0xff]
    %v1086 = vld [vmem:[#allocation6 + $0x130] sm:$0xff]
    %v1087 = vld [vmem:[#allocation6 + $0x138] sm:$0xff]
    %v1088 = vld [vmem:[#allocation6 + $0x140] sm:$0xff]
    %v1089 = vld [vmem:[#allocation6 + $0x148] sm:$0xff]
    %v1090 = vld [vmem:[#allocation6 + $0x150] sm:$0xff]
    %v1091 = vld [vmem:[#allocation6 + $0x158] sm:$0xff]
    %v1092 = vld [vmem:[#allocation6 + $0x160] sm:$0xff]
    %v1093 = vld [vmem:[#allocation6 + $0x168] sm:$0xff]
    %v1094 = vld [vmem:[#allocation6 + $0x170] sm:$0xff]
    %v1095 = vld [vmem:[#allocation6 + $0x178] sm:$0xff]
    %v1096 = vld [vmem:[#allocation6 + $0x180] sm:$0xff]
    %v1097 = vld [vmem:[#allocation6 + $0x188] sm:$0xff]
    %v1098 = vld [vmem:[#allocation6 + $0x190] sm:$0xff]
    %v1099 = vld [vmem:[#allocation6 + $0x198] sm:$0xff]
    %v1100 = vld [vmem:[#allocation6 + $0x1a0] sm:$0xff]
    %v1101 = vld [vmem:[#allocation6 + $0x1a8] sm:$0xff]
    %v1102 = vld [vmem:[#allocation6 + $0x1b0] sm:$0xff]
    %v1103 = vld [vmem:[#allocation6 + $0x1b8] sm:$0xff]
    %v1104 = vld [vmem:[#allocation6 + $0x1c0] sm:$0xff]
    %v1105 = vld [vmem:[#allocation6 + $0x1c8] sm:$0xff]
    %v1106 = vld [vmem:[#allocation6 + $0x1d0] sm:$0xff]
    %v1107 = vld [vmem:[#allocation6 + $0x1d8] sm:$0xff]
    %v1108 = vld [vmem:[#allocation6 + $0x1e0] sm:$0xff]
    %v1109 = vld [vmem:[#allocation6 + $0x1e8] sm:$0xff]
    %v1110 = vld [vmem:[#allocation6 + $0x1f0] sm:$0xff]
    %v1111 = vld [vmem:[#allocation6 + $0x1f8] sm:$0xff]
    %v1112 = vld [vmem:[#allocation6 + $0x200] sm:$0xff]
    %v1113 = vld [vmem:[#allocation6 + $0x208] sm:$0xff]
    %v1114 = vld [vmem:[#allocation6 + $0x210] sm:$0xff]
    %v1115 = vld [vmem:[#allocation6 + $0x218] sm:$0xff]
    %v1116 = vld [vmem:[#allocation6 + $0x220] sm:$0xff]
    %v1117 = vld [vmem:[#allocation6 + $0x228] sm:$0xff]
    %v1118 = vld [vmem:[#allocation6 + $0x230] sm:$0xff]
    %v1119 = vld [vmem:[#allocation6 + $0x238] sm:$0xff]
    %v1120 = vld [vmem:[#allocation6 + $0x240] sm:$0xff]
    %v1121 = vld [vmem:[#allocation6 + $0x248] sm:$0xff]
    %v1122 = vld [vmem:[#allocation6 + $0x250] sm:$0xff]
    %v1123 = vld [vmem:[#allocation6 + $0x258] sm:$0xff]
    %v1124 = vld [vmem:[#allocation6 + $0x260] sm:$0xff]
    %v1125 = vld [vmem:[#allocation6 + $0x268] sm:$0xff]
    %v1126 = vld [vmem:[#allocation6 + $0x270] sm:$0xff]
    %v1127 = vld [vmem:[#allocation6 + $0x278] sm:$0xff]
    %v1128 = vld [vmem:[#allocation6 + $0x280] sm:$0xff]
    %v1129 = vld [vmem:[#allocation6 + $0x288] sm:$0xff]
    %v1130 = vld [vmem:[#allocation6 + $0x290] sm:$0xff]
    %v1131 = vld [vmem:[#allocation6 + $0x298] sm:$0xff]
    %v1132 = vld [vmem:[#allocation6 + $0x2a0] sm:$0xff]
    %v1133 = vld [vmem:[#allocation6 + $0x2a8] sm:$0xff]
    %v1134 = vld [vmem:[#allocation6 + $0x2b0] sm:$0xff]
    %v1135 = vld [vmem:[#allocation6 + $0x2b8] sm:$0xff]
    %v1136 = vld [vmem:[#allocation6 + $0x2c0] sm:$0xff]
    %v1137 = vld [vmem:[#allocation6 + $0x2c8] sm:$0xff]
    %v1138 = vld [vmem:[#allocation6 + $0x2d0] sm:$0xff]
    %v1139 = vld [vmem:[#allocation6 + $0x2d8] sm:$0xff]
    %v1140 = vld [vmem:[#allocation6 + $0x2e0] sm:$0xff]
    %v1141 = vld [vmem:[#allocation6 + $0x2e8] sm:$0xff]
    %v1142 = vld [vmem:[#allocation6 + $0x2f0] sm:$0xff]
    %v1143 = vld [vmem:[#allocation6 + $0x2f8] sm:$0xff]
    %v1144 = vld [vmem:[#allocation6 + $0x300] sm:$0xff]
    %v1145 = vld [vmem:[#allocation6 + $0x308] sm:$0xff]
    %v1146 = vld [vmem:[#allocation6 + $0x310] sm:$0xff]
    %v1147 = vld [vmem:[#allocation6 + $0x318] sm:$0xff]
    %v1148 = vld [vmem:[#allocation6 + $0x320] sm:$0xff]
    %v1149 = vld [vmem:[#allocation6 + $0x328] sm:$0xff]
    %v1150 = vld [vmem:[#allocation6 + $0x330] sm:$0xff]
    %v1151 = vld [vmem:[#allocation6 + $0x338] sm:$0xff]
    %v1152 = vld [vmem:[#allocation6 + $0x340] sm:$0xff]
    %v1153 = vld [vmem:[#allocation6 + $0x348] sm:$0xff]
    %v1154 = vld [vmem:[#allocation6 + $0x350] sm:$0xff]
    %v1155 = vld [vmem:[#allocation6 + $0x358] sm:$0xff]
    %v1156 = vld [vmem:[#allocation6 + $0x360] sm:$0xff]
    %v1157 = vld [vmem:[#allocation6 + $0x368] sm:$0xff]
    %v1158 = vld [vmem:[#allocation6 + $0x370] sm:$0xff]
    %v1159 = vld [vmem:[#allocation6 + $0x378] sm:$0xff]
    %v1160 = vld [vmem:[#allocation6 + $0x380] sm:$0xff]
    %v1161 = vld [vmem:[#allocation6 + $0x388] sm:$0xff]
    %v1162 = vld [vmem:[#allocation6 + $0x390] sm:$0xff]
    %v1163 = vld [vmem:[#allocation6 + $0x398] sm:$0xff]
    %v1164 = vld [vmem:[#allocation6 + $0x3a0] sm:$0xff]
    %v1165 = vld [vmem:[#allocation6 + $0x3a8] sm:$0xff]
    %v1166 = vld [vmem:[#allocation6 + $0x3b0] sm:$0xff]
    %v1167 = vld [vmem:[#allocation6 + $0x3b8] sm:$0xff]
    %v1168 = vld [vmem:[#allocation6 + $0x3c0] sm:$0xff]
    %v1169 = vld [vmem:[#allocation6 + $0x3c8] sm:$0xff]
    %v1170 = vld [vmem:[#allocation6 + $0x3d0] sm:$0xff]
    %v1171 = vld [vmem:[#allocation6 + $0x3d8] sm:$0xff]
    %v1172 = vld [vmem:[#allocation6 + $0x3e0] sm:$0xff]
    %v1173 = vld [vmem:[#allocation6 + $0x3e8] sm:$0xff]
    %v1174 = vld [vmem:[#allocation6 + $0x3f0] sm:$0xff]
    %v1175 = vld [vmem:[#allocation6 + $0x3f8] sm:$0xff]
    %v1176 = vld [vmem:[#allocation6 + $0x400] sm:$0xff]
    %v1177 = vld [vmem:[#allocation6 + $0x408] sm:$0xff]
    %v1178 = vld [vmem:[#allocation6 + $0x410] sm:$0xff]
    %v1179 = vld [vmem:[#allocation6 + $0x418] sm:$0xff]
    %v1180 = vld [vmem:[#allocation6 + $0x420] sm:$0xff]
    %v1181 = vld [vmem:[#allocation6 + $0x428] sm:$0xff]
    %v1182 = vld [vmem:[#allocation6 + $0x430] sm:$0xff]
    %v1183 = vld [vmem:[#allocation6 + $0x438] sm:$0xff]
    %v1184 = vld [vmem:[#allocation6 + $0x440] sm:$0xff]
    %v1185 = vld [vmem:[#allocation6 + $0x448] sm:$0xff]
    %v1186 = vld [vmem:[#allocation6 + $0x450] sm:$0xff]
    %v1187 = vld [vmem:[#allocation6 + $0x458] sm:$0xff]
    %v1188 = vld [vmem:[#allocation6 + $0x460] sm:$0xff]
    %v1189 = vld [vmem:[#allocation6 + $0x468] sm:$0xff]
    %v1190 = vld [vmem:[#allocation6 + $0x470] sm:$0xff]
    %v1191 = vld [vmem:[#allocation6 + $0x478] sm:$0xff]
    %v1192 = vld [vmem:[#allocation6 + $0x480] sm:$0xff]
    %v1193 = vld [vmem:[#allocation6 + $0x488] sm:$0xff]
    %v1194 = vld [vmem:[#allocation6 + $0x490] sm:$0xff]
    %v1195 = vld [vmem:[#allocation6 + $0x498] sm:$0xff]
    %v1196 = vld [vmem:[#allocation6 + $0x4a0] sm:$0xff]
    %v1197 = vld [vmem:[#allocation6 + $0x4a8] sm:$0xff]
    %v1198 = vld [vmem:[#allocation6 + $0x4b0] sm:$0xff]
    %v1199 = vld [vmem:[#allocation6 + $0x4b8] sm:$0xff]
    %v1200 = vld [vmem:[#allocation6 + $0x4c0] sm:$0xff]
    %v1201 = vld [vmem:[#allocation6 + $0x4c8] sm:$0xff]
    %v1202 = vld [vmem:[#allocation6 + $0x4d0] sm:$0xff]
    %v1203 = vld [vmem:[#allocation6 + $0x4d8] sm:$0xff]
    %v1204 = vld [vmem:[#allocation6 + $0x4e0] sm:$0xff]
    %v1205 = vld [vmem:[#allocation6 + $0x4e8] sm:$0xff]
    %v1206 = vld [vmem:[#allocation6 + $0x4f0] sm:$0xff]
    %v1207 = vld [vmem:[#allocation6 + $0x4f8] sm:$0xff]
    %v1208 = vld [vmem:[#allocation6 + $0x500] sm:$0xff]
    %v1209 = vld [vmem:[#allocation6 + $0x508] sm:$0xff]
    %v1210 = vld [vmem:[#allocation6 + $0x510] sm:$0xff]
    %v1211 = vld [vmem:[#allocation6 + $0x518] sm:$0xff]
    %v1212 = vld [vmem:[#allocation6 + $0x520] sm:$0xff]
    %v1213 = vld [vmem:[#allocation6 + $0x528] sm:$0xff]
    %v1214 = vld [vmem:[#allocation6 + $0x530] sm:$0xff]
    %v1215 = vld [vmem:[#allocation6 + $0x538] sm:$0xff]
    %v1216 = vld [vmem:[#allocation6 + $0x540] sm:$0xff]
    %v1217 = vld [vmem:[#allocation6 + $0x548] sm:$0xff]
    %v1218 = vld [vmem:[#allocation6 + $0x550] sm:$0xff]
    %v1219 = vld [vmem:[#allocation6 + $0x558] sm:$0xff]
    %v1220 = vld [vmem:[#allocation6 + $0x560] sm:$0xff]
    %v1221 = vld [vmem:[#allocation6 + $0x568] sm:$0xff]
    %v1222 = vld [vmem:[#allocation6 + $0x570] sm:$0xff]
    %v1223 = vld [vmem:[#allocation6 + $0x578] sm:$0xff]
    %v1224 = vld [vmem:[#allocation6 + $0x580] sm:$0xff]
    %v1225 = vld [vmem:[#allocation6 + $0x588] sm:$0xff]
    %v1226 = vld [vmem:[#allocation6 + $0x590] sm:$0xff]
    %v1227 = vld [vmem:[#allocation6 + $0x598] sm:$0xff]
    %v1228 = vld [vmem:[#allocation6 + $0x5a0] sm:$0xff]
    %v1229 = vld [vmem:[#allocation6 + $0x5a8] sm:$0xff]
    %v1230 = vld [vmem:[#allocation6 + $0x5b0] sm:$0xff]
    %v1231 = vld [vmem:[#allocation6 + $0x5b8] sm:$0xff]
    %v1232 = vld [vmem:[#allocation6 + $0x5c0] sm:$0xff]
    %v1233 = vld [vmem:[#allocation6 + $0x5c8] sm:$0xff]
    %v1234 = vld [vmem:[#allocation6 + $0x5d0] sm:$0xff]
    %v1235 = vld [vmem:[#allocation6 + $0x5d8] sm:$0xff]
    %v1236 = vld [vmem:[#allocation6 + $0x5e0] sm:$0xff]
    %v1237 = vld [vmem:[#allocation6 + $0x5e8] sm:$0xff]
    %v1238 = vld [vmem:[#allocation6 + $0x5f0] sm:$0xff]
    %v1239 = vld [vmem:[#allocation6 + $0x5f8] sm:$0xff]
    %v1240 = vld [vmem:[#allocation6 + $0x600] sm:$0xff]
    %v1241 = vld [vmem:[#allocation6 + $0x608] sm:$0xff]
    %v1242 = vld [vmem:[#allocation6 + $0x610] sm:$0xff]
    %v1243 = vld [vmem:[#allocation6 + $0x618] sm:$0xff]
    %v1244 = vld [vmem:[#allocation6 + $0x620] sm:$0xff]
    %v1245 = vld [vmem:[#allocation6 + $0x628] sm:$0xff]
    %v1246 = vld [vmem:[#allocation6 + $0x630] sm:$0xff]
    %v1247 = vld [vmem:[#allocation6 + $0x638] sm:$0xff]
    %v1248 = vld [vmem:[#allocation6 + $0x640] sm:$0xff]
    %v1249 = vld [vmem:[#allocation6 + $0x648] sm:$0xff]
    %v1250 = vld [vmem:[#allocation6 + $0x650] sm:$0xff]
    %v1251 = vld [vmem:[#allocation6 + $0x658] sm:$0xff]
    %v1252 = vld [vmem:[#allocation6 + $0x660] sm:$0xff]
    %v1253 = vld [vmem:[#allocation6 + $0x668] sm:$0xff]
    %v1254 = vld [vmem:[#allocation6 + $0x670] sm:$0xff]
    %v1255 = vld [vmem:[#allocation6 + $0x678] sm:$0xff]
    %v1256 = vld [vmem:[#allocation6 + $0x680] sm:$0xff]
    %v1257 = vld [vmem:[#allocation6 + $0x688] sm:$0xff]
    %v1258 = vld [vmem:[#allocation6 + $0x690] sm:$0xff]
    %v1259 = vld [vmem:[#allocation6 + $0x698] sm:$0xff]
    %v1260 = vld [vmem:[#allocation6 + $0x6a0] sm:$0xff]
    %v1261 = vld [vmem:[#allocation6 + $0x6a8] sm:$0xff]
    %v1262 = vld [vmem:[#allocation6 + $0x6b0] sm:$0xff]
    %v1263 = vld [vmem:[#allocation6 + $0x6b8] sm:$0xff]
    %v1264 = vld [vmem:[#allocation6 + $0x6c0] sm:$0xff]
    %v1265 = vld [vmem:[#allocation6 + $0x6c8] sm:$0xff]
    %v1266 = vld [vmem:[#allocation6 + $0x6d0] sm:$0xff]
    %v1267 = vld [vmem:[#allocation6 + $0x6d8] sm:$0xff]
    %v1268 = vld [vmem:[#allocation6 + $0x6e0] sm:$0xff]
    %v1269 = vld [vmem:[#allocation6 + $0x6e8] sm:$0xff]
    %v1270 = vld [vmem:[#allocation6 + $0x6f0] sm:$0xff]
    %v1271 = vld [vmem:[#allocation6 + $0x6f8] sm:$0xff]
    %v1272 = vld [vmem:[#allocation6 + $0x700] sm:$0xff]
    %v1273 = vld [vmem:[#allocation6 + $0x708] sm:$0xff]
    %v1274 = vld [vmem:[#allocation6 + $0x710] sm:$0xff]
    %v1275 = vld [vmem:[#allocation6 + $0x718] sm:$0xff]
    %v1276 = vld [vmem:[#allocation6 + $0x720] sm:$0xff]
    %v1277 = vld [vmem:[#allocation6 + $0x728] sm:$0xff]
    %v1278 = vld [vmem:[#allocation6 + $0x730] sm:$0xff]
    %v1279 = vld [vmem:[#allocation6 + $0x738] sm:$0xff]
    %v1280 = vld [vmem:[#allocation6 + $0x740] sm:$0xff]
    %v1281 = vld [vmem:[#allocation6 + $0x748] sm:$0xff]
    %v1282 = vld [vmem:[#allocation6 + $0x750] sm:$0xff]
    %v1283 = vld [vmem:[#allocation6 + $0x758] sm:$0xff]
    %v1284 = vld [vmem:[#allocation6 + $0x760] sm:$0xff]
    %v1285 = vld [vmem:[#allocation6 + $0x768] sm:$0xff]
    %v1286 = vld [vmem:[#allocation6 + $0x770] sm:$0xff]
    %v1287 = vld [vmem:[#allocation6 + $0x778] sm:$0xff]
    %v1288 = vld [vmem:[#allocation6 + $0x780] sm:$0xff]
    %v1289 = vld [vmem:[#allocation6 + $0x788] sm:$0xff]
    %v1290 = vld [vmem:[#allocation6 + $0x790] sm:$0xff]
    %v1291 = vld [vmem:[#allocation6 + $0x798] sm:$0xff]
    %v1292 = vld [vmem:[#allocation6 + $0x7a0] sm:$0xff]
    %v1293 = vld [vmem:[#allocation6 + $0x7a8] sm:$0xff]
    %v1294 = vld [vmem:[#allocation6 + $0x7b0] sm:$0xff]
    %v1295 = vld [vmem:[#allocation6 + $0x7b8] sm:$0xff]
    %v1296 = vld [vmem:[#allocation6 + $0x7c0] sm:$0xff]
    %v1297 = vld [vmem:[#allocation6 + $0x7c8] sm:$0xff]
    %v1298 = vld [vmem:[#allocation6 + $0x7d0] sm:$0xff]
    %v1299 = vld [vmem:[#allocation6 + $0x7d8] sm:$0xff]
    %v1300 = vld [vmem:[#allocation6 + $0x7e0] sm:$0xff]
    %v1301 = vld [vmem:[#allocation6 + $0x7e8] sm:$0xff]
    %v1302 = vld [vmem:[#allocation6 + $0x7f0] sm:$0xff]
    %v1303 = vld [vmem:[#allocation6 + $0x7f8] sm:$0xff]
    %v1560 = vunpack.c.l.b16 %v1048
    %v1561 = vunpack.c.h.b16 %v1048
    %v1562 = vunpack.c.l.b16 %v1049
    %v1563 = vunpack.c.h.b16 %v1049
    %v1564 = vunpack.c.l.b16 %v1050
    %v1565 = vunpack.c.h.b16 %v1050
    %v1566 = vunpack.c.l.b16 %v1051
    %v1567 = vunpack.c.h.b16 %v1051
    %v1568 = vunpack.c.l.b16 %v1052
    %v1569 = vunpack.c.h.b16 %v1052
    %v1570 = vunpack.c.l.b16 %v1053
    %v1571 = vunpack.c.h.b16 %v1053
    %v1572 = vunpack.c.l.b16 %v1054
    %v1573 = vunpack.c.h.b16 %v1054
    %v1574 = vunpack.c.l.b16 %v1055
    %v1575 = vunpack.c.h.b16 %v1055
    %v1576 = vunpack.c.l.b16 %v1056
    %v1577 = vunpack.c.h.b16 %v1056
    %v1578 = vunpack.c.l.b16 %v1057
    %v1579 = vunpack.c.h.b16 %v1057
    %v1580 = vunpack.c.l.b16 %v1058
    %v1581 = vunpack.c.h.b16 %v1058
    %v1582 = vunpack.c.l.b16 %v1059
    %v1583 = vunpack.c.h.b16 %v1059
    %v1584 = vunpack.c.l.b16 %v1060
    %v1585 = vunpack.c.h.b16 %v1060
    %v1586 = vunpack.c.l.b16 %v1061
    %v1587 = vunpack.c.h.b16 %v1061
    %v1588 = vunpack.c.l.b16 %v1062
    %v1589 = vunpack.c.h.b16 %v1062
    %v1590 = vunpack.c.l.b16 %v1063
    %v1591 = vunpack.c.h.b16 %v1063
    %v1592 = vunpack.c.l.b16 %v1064
    %v1593 = vunpack.c.h.b16 %v1064
    %v1594 = vunpack.c.l.b16 %v1065
    %v1595 = vunpack.c.h.b16 %v1065
    %v1596 = vunpack.c.l.b16 %v1066
    %v1597 = vunpack.c.h.b16 %v1066
    %v1598 = vunpack.c.l.b16 %v1067
    %v1599 = vunpack.c.h.b16 %v1067
    %v1600 = vunpack.c.l.b16 %v1068
    %v1601 = vunpack.c.h.b16 %v1068
    %v1602 = vunpack.c.l.b16 %v1069
    %v1603 = vunpack.c.h.b16 %v1069
    %v1604 = vunpack.c.l.b16 %v1070
    %v1605 = vunpack.c.h.b16 %v1070
    %v1606 = vunpack.c.l.b16 %v1071
    %v1607 = vunpack.c.h.b16 %v1071
    %v1608 = vunpack.c.l.b16 %v1072
    %v1609 = vunpack.c.h.b16 %v1072
    %v1610 = vunpack.c.l.b16 %v1073
    %v1611 = vunpack.c.h.b16 %v1073
    %v1612 = vunpack.c.l.b16 %v1074
    %v1613 = vunpack.c.h.b16 %v1074
    %v1614 = vunpack.c.l.b16 %v1075
    %v1615 = vunpack.c.h.b16 %v1075
    %v1616 = vunpack.c.l.b16 %v1076
    %v1617 = vunpack.c.h.b16 %v1076
    %v1618 = vunpack.c.l.b16 %v1077
    %v1619 = vunpack.c.h.b16 %v1077
    %v1620 = vunpack.c.l.b16 %v1078
    %v1621 = vunpack.c.h.b16 %v1078
    %v1622 = vunpack.c.l.b16 %v1079
    %v1623 = vunpack.c.h.b16 %v1079
    %v1624 = vunpack.c.l.b16 %v1080
    %v1625 = vunpack.c.h.b16 %v1080
    %v1626 = vunpack.c.l.b16 %v1081
    %v1627 = vunpack.c.h.b16 %v1081
    %v1628 = vunpack.c.l.b16 %v1082
    %v1629 = vunpack.c.h.b16 %v1082
    %v1630 = vunpack.c.l.b16 %v1083
    %v1631 = vunpack.c.h.b16 %v1083
    %v1632 = vunpack.c.l.b16 %v1084
    %v1633 = vunpack.c.h.b16 %v1084
    %v1634 = vunpack.c.l.b16 %v1085
    %v1635 = vunpack.c.h.b16 %v1085
    %v1636 = vunpack.c.l.b16 %v1086
    %v1637 = vunpack.c.h.b16 %v1086
    %v1638 = vunpack.c.l.b16 %v1087
    %v1639 = vunpack.c.h.b16 %v1087
    %v1640 = vunpack.c.l.b16 %v1088
    %v1641 = vunpack.c.h.b16 %v1088
    %v1642 = vunpack.c.l.b16 %v1089
    %v1643 = vunpack.c.h.b16 %v1089
    %v1644 = vunpack.c.l.b16 %v1090
    %v1645 = vunpack.c.h.b16 %v1090
    %v1646 = vunpack.c.l.b16 %v1091
    %v1647 = vunpack.c.h.b16 %v1091
    %v1648 = vunpack.c.l.b16 %v1092
    %v1649 = vunpack.c.h.b16 %v1092
    %v1650 = vunpack.c.l.b16 %v1093
    %v1651 = vunpack.c.h.b16 %v1093
    %v1652 = vunpack.c.l.b16 %v1094
    %v1653 = vunpack.c.h.b16 %v1094
    %v1654 = vunpack.c.l.b16 %v1095
    %v1655 = vunpack.c.h.b16 %v1095
    %v1656 = vunpack.c.l.b16 %v1096
    %v1657 = vunpack.c.h.b16 %v1096
    %v1658 = vunpack.c.l.b16 %v1097
    %v1659 = vunpack.c.h.b16 %v1097
    %v1660 = vunpack.c.l.b16 %v1098
    %v1661 = vunpack.c.h.b16 %v1098
    %v1662 = vunpack.c.l.b16 %v1099
    %v1663 = vunpack.c.h.b16 %v1099
    %v1664 = vunpack.c.l.b16 %v1100
    %v1665 = vunpack.c.h.b16 %v1100
    %v1666 = vunpack.c.l.b16 %v1101
    %v1667 = vunpack.c.h.b16 %v1101
    %v1668 = vunpack.c.l.b16 %v1102
    %v1669 = vunpack.c.h.b16 %v1102
    %v1670 = vunpack.c.l.b16 %v1103
    %v1671 = vunpack.c.h.b16 %v1103
    %v1672 = vunpack.c.l.b16 %v1104
    %v1673 = vunpack.c.h.b16 %v1104
    %v1674 = vunpack.c.l.b16 %v1105
    %v1675 = vunpack.c.h.b16 %v1105
    %v1676 = vunpack.c.l.b16 %v1106
    %v1677 = vunpack.c.h.b16 %v1106
    %v1678 = vunpack.c.l.b16 %v1107
    %v1679 = vunpack.c.h.b16 %v1107
    %v1680 = vunpack.c.l.b16 %v1108
    %v1681 = vunpack.c.h.b16 %v1108
    %v1682 = vunpack.c.l.b16 %v1109
    %v1683 = vunpack.c.h.b16 %v1109
    %v1684 = vunpack.c.l.b16 %v1110
    %v1685 = vunpack.c.h.b16 %v1110
    %v1686 = vunpack.c.l.b16 %v1111
    %v1687 = vunpack.c.h.b16 %v1111
    %v1688 = vunpack.c.l.b16 %v1112
    %v1689 = vunpack.c.h.b16 %v1112
    %v1690 = vunpack.c.l.b16 %v1113
    %v1691 = vunpack.c.h.b16 %v1113
    %v1692 = vunpack.c.l.b16 %v1114
    %v1693 = vunpack.c.h.b16 %v1114
    %v1694 = vunpack.c.l.b16 %v1115
    %v1695 = vunpack.c.h.b16 %v1115
    %v1696 = vunpack.c.l.b16 %v1116
    %v1697 = vunpack.c.h.b16 %v1116
    %v1698 = vunpack.c.l.b16 %v1117
    %v1699 = vunpack.c.h.b16 %v1117
    %v1700 = vunpack.c.l.b16 %v1118
    %v1701 = vunpack.c.h.b16 %v1118
    %v1702 = vunpack.c.l.b16 %v1119
    %v1703 = vunpack.c.h.b16 %v1119
    %v1704 = vunpack.c.l.b16 %v1120
    %v1705 = vunpack.c.h.b16 %v1120
    %v1706 = vunpack.c.l.b16 %v1121
    %v1707 = vunpack.c.h.b16 %v1121
    %v1708 = vunpack.c.l.b16 %v1122
    %v1709 = vunpack.c.h.b16 %v1122
    %v1710 = vunpack.c.l.b16 %v1123
    %v1711 = vunpack.c.h.b16 %v1123
    %v1712 = vunpack.c.l.b16 %v1124
    %v1713 = vunpack.c.h.b16 %v1124
    %v1714 = vunpack.c.l.b16 %v1125
    %v1715 = vunpack.c.h.b16 %v1125
    %v1716 = vunpack.c.l.b16 %v1126
    %v1717 = vunpack.c.h.b16 %v1126
    %v1718 = vunpack.c.l.b16 %v1127
    %v1719 = vunpack.c.h.b16 %v1127
    %v1720 = vunpack.c.l.b16 %v1128
    %v1721 = vunpack.c.h.b16 %v1128
    %v1722 = vunpack.c.l.b16 %v1129
    %v1723 = vunpack.c.h.b16 %v1129
    %v1724 = vunpack.c.l.b16 %v1130
    %v1725 = vunpack.c.h.b16 %v1130
    %v1726 = vunpack.c.l.b16 %v1131
    %v1727 = vunpack.c.h.b16 %v1131
    %v1728 = vunpack.c.l.b16 %v1132
    %v1729 = vunpack.c.h.b16 %v1132
    %v1730 = vunpack.c.l.b16 %v1133
    %v1731 = vunpack.c.h.b16 %v1133
    %v1732 = vunpack.c.l.b16 %v1134
    %v1733 = vunpack.c.h.b16 %v1134
    %v1734 = vunpack.c.l.b16 %v1135
    %v1735 = vunpack.c.h.b16 %v1135
    %v1736 = vunpack.c.l.b16 %v1136
    %v1737 = vunpack.c.h.b16 %v1136
    %v1738 = vunpack.c.l.b16 %v1137
    %v1739 = vunpack.c.h.b16 %v1137
    %v1740 = vunpack.c.l.b16 %v1138
    %v1741 = vunpack.c.h.b16 %v1138
    %v1742 = vunpack.c.l.b16 %v1139
    %v1743 = vunpack.c.h.b16 %v1139
    %v1744 = vunpack.c.l.b16 %v1140
    %v1745 = vunpack.c.h.b16 %v1140
    %v1746 = vunpack.c.l.b16 %v1141
    %v1747 = vunpack.c.h.b16 %v1141
    %v1748 = vunpack.c.l.b16 %v1142
    %v1749 = vunpack.c.h.b16 %v1142
    %v1750 = vunpack.c.l.b16 %v1143
    %v1751 = vunpack.c.h.b16 %v1143
    %v1752 = vunpack.c.l.b16 %v1144
    %v1753 = vunpack.c.h.b16 %v1144
    %v1754 = vunpack.c.l.b16 %v1145
    %v1755 = vunpack.c.h.b16 %v1145
    %v1756 = vunpack.c.l.b16 %v1146
    %v1757 = vunpack.c.h.b16 %v1146
    %v1758 = vunpack.c.l.b16 %v1147
    %v1759 = vunpack.c.h.b16 %v1147
    %v1760 = vunpack.c.l.b16 %v1148
    %v1761 = vunpack.c.h.b16 %v1148
    %v1762 = vunpack.c.l.b16 %v1149
    %v1763 = vunpack.c.h.b16 %v1149
    %v1764 = vunpack.c.l.b16 %v1150
    %v1765 = vunpack.c.h.b16 %v1150
    %v1766 = vunpack.c.l.b16 %v1151
    %v1767 = vunpack.c.h.b16 %v1151
    %v1768 = vunpack.c.l.b16 %v1152
    %v1769 = vunpack.c.h.b16 %v1152
    %v1770 = vunpack.c.l.b16 %v1153
    %v1771 = vunpack.c.h.b16 %v1153
    %v1772 = vunpack.c.l.b16 %v1154
    %v1773 = vunpack.c.h.b16 %v1154
    %v1774 = vunpack.c.l.b16 %v1155
    %v1775 = vunpack.c.h.b16 %v1155
    %v1776 = vunpack.c.l.b16 %v1156
    %v1777 = vunpack.c.h.b16 %v1156
    %v1778 = vunpack.c.l.b16 %v1157
    %v1779 = vunpack.c.h.b16 %v1157
    %v1780 = vunpack.c.l.b16 %v1158
    %v1781 = vunpack.c.h.b16 %v1158
    %v1782 = vunpack.c.l.b16 %v1159
    %v1783 = vunpack.c.h.b16 %v1159
    %v1784 = vunpack.c.l.b16 %v1160
    %v1785 = vunpack.c.h.b16 %v1160
    %v1786 = vunpack.c.l.b16 %v1161
    %v1787 = vunpack.c.h.b16 %v1161
    %v1788 = vunpack.c.l.b16 %v1162
    %v1789 = vunpack.c.h.b16 %v1162
    %v1790 = vunpack.c.l.b16 %v1163
    %v1791 = vunpack.c.h.b16 %v1163
    %v1792 = vunpack.c.l.b16 %v1164
    %v1793 = vunpack.c.h.b16 %v1164
    %v1794 = vunpack.c.l.b16 %v1165
    %v1795 = vunpack.c.h.b16 %v1165
    %v1796 = vunpack.c.l.b16 %v1166
    %v1797 = vunpack.c.h.b16 %v1166
    %v1798 = vunpack.c.l.b16 %v1167
    %v1799 = vunpack.c.h.b16 %v1167
    %v1800 = vunpack.c.l.b16 %v1168
    %v1801 = vunpack.c.h.b16 %v1168
    %v1802 = vunpack.c.l.b16 %v1169
    %v1803 = vunpack.c.h.b16 %v1169
    %v1804 = vunpack.c.l.b16 %v1170
    %v1805 = vunpack.c.h.b16 %v1170
    %v1806 = vunpack.c.l.b16 %v1171
    %v1807 = vunpack.c.h.b16 %v1171
    %v1808 = vunpack.c.l.b16 %v1172
    %v1809 = vunpack.c.h.b16 %v1172
    %v1810 = vunpack.c.l.b16 %v1173
    %v1811 = vunpack.c.h.b16 %v1173
    %v1812 = vunpack.c.l.b16 %v1174
    %v1813 = vunpack.c.h.b16 %v1174
    %v1814 = vunpack.c.l.b16 %v1175
    %v1815 = vunpack.c.h.b16 %v1175
    %v1816 = vunpack.c.l.b16 %v1176
    %v1817 = vunpack.c.h.b16 %v1176
    %v1818 = vunpack.c.l.b16 %v1177
    %v1819 = vunpack.c.h.b16 %v1177
    %v1820 = vunpack.c.l.b16 %v1178
    %v1821 = vunpack.c.h.b16 %v1178
    %v1822 = vunpack.c.l.b16 %v1179
    %v1823 = vunpack.c.h.b16 %v1179
    %v1824 = vunpack.c.l.b16 %v1180
    %v1825 = vunpack.c.h.b16 %v1180
    %v1826 = vunpack.c.l.b16 %v1181
    %v1827 = vunpack.c.h.b16 %v1181
    %v1828 = vunpack.c.l.b16 %v1182
    %v1829 = vunpack.c.h.b16 %v1182
    %v1830 = vunpack.c.l.b16 %v1183
    %v1831 = vunpack.c.h.b16 %v1183
    %v1832 = vunpack.c.l.b16 %v1184
    %v1833 = vunpack.c.h.b16 %v1184
    %v1834 = vunpack.c.l.b16 %v1185
    %v1835 = vunpack.c.h.b16 %v1185
    %v1836 = vunpack.c.l.b16 %v1186
    %v1837 = vunpack.c.h.b16 %v1186
    %v1838 = vunpack.c.l.b16 %v1187
    %v1839 = vunpack.c.h.b16 %v1187
    %v1840 = vunpack.c.l.b16 %v1188
    %v1841 = vunpack.c.h.b16 %v1188
    %v1842 = vunpack.c.l.b16 %v1189
    %v1843 = vunpack.c.h.b16 %v1189
    %v1844 = vunpack.c.l.b16 %v1190
    %v1845 = vunpack.c.h.b16 %v1190
    %v1846 = vunpack.c.l.b16 %v1191
    %v1847 = vunpack.c.h.b16 %v1191
    %v1848 = vunpack.c.l.b16 %v1192
    %v1849 = vunpack.c.h.b16 %v1192
    %v1850 = vunpack.c.l.b16 %v1193
    %v1851 = vunpack.c.h.b16 %v1193
    %v1852 = vunpack.c.l.b16 %v1194
    %v1853 = vunpack.c.h.b16 %v1194
    %v1854 = vunpack.c.l.b16 %v1195
    %v1855 = vunpack.c.h.b16 %v1195
    %v1856 = vunpack.c.l.b16 %v1196
    %v1857 = vunpack.c.h.b16 %v1196
    %v1858 = vunpack.c.l.b16 %v1197
    %v1859 = vunpack.c.h.b16 %v1197
    %v1860 = vunpack.c.l.b16 %v1198
    %v1861 = vunpack.c.h.b16 %v1198
    %v1862 = vunpack.c.l.b16 %v1199
    %v1863 = vunpack.c.h.b16 %v1199
    %v1864 = vunpack.c.l.b16 %v1200
    %v1865 = vunpack.c.h.b16 %v1200
    %v1866 = vunpack.c.l.b16 %v1201
    %v1867 = vunpack.c.h.b16 %v1201
    %v1868 = vunpack.c.l.b16 %v1202
    %v1869 = vunpack.c.h.b16 %v1202
    %v1870 = vunpack.c.l.b16 %v1203
    %v1871 = vunpack.c.h.b16 %v1203
    %v1872 = vunpack.c.l.b16 %v1204
    %v1873 = vunpack.c.h.b16 %v1204
    %v1874 = vunpack.c.l.b16 %v1205
    %v1875 = vunpack.c.h.b16 %v1205
    %v1876 = vunpack.c.l.b16 %v1206
    %v1877 = vunpack.c.h.b16 %v1206
    %v1878 = vunpack.c.l.b16 %v1207
    %v1879 = vunpack.c.h.b16 %v1207
    %v1880 = vunpack.c.l.b16 %v1208
    %v1881 = vunpack.c.h.b16 %v1208
    %v1882 = vunpack.c.l.b16 %v1209
    %v1883 = vunpack.c.h.b16 %v1209
    %v1884 = vunpack.c.l.b16 %v1210
    %v1885 = vunpack.c.h.b16 %v1210
    %v1886 = vunpack.c.l.b16 %v1211
    %v1887 = vunpack.c.h.b16 %v1211
    %v1888 = vunpack.c.l.b16 %v1212
    %v1889 = vunpack.c.h.b16 %v1212
    %v1890 = vunpack.c.l.b16 %v1213
    %v1891 = vunpack.c.h.b16 %v1213
    %v1892 = vunpack.c.l.b16 %v1214
    %v1893 = vunpack.c.h.b16 %v1214
    %v1894 = vunpack.c.l.b16 %v1215
    %v1895 = vunpack.c.h.b16 %v1215
    %v1896 = vunpack.c.l.b16 %v1216
    %v1897 = vunpack.c.h.b16 %v1216
    %v1898 = vunpack.c.l.b16 %v1217
    %v1899 = vunpack.c.h.b16 %v1217
    %v1900 = vunpack.c.l.b16 %v1218
    %v1901 = vunpack.c.h.b16 %v1218
    %v1902 = vunpack.c.l.b16 %v1219
    %v1903 = vunpack.c.h.b16 %v1219
    %v1904 = vunpack.c.l.b16 %v1220
    %v1905 = vunpack.c.h.b16 %v1220
    %v1906 = vunpack.c.l.b16 %v1221
    %v1907 = vunpack.c.h.b16 %v1221
    %v1908 = vunpack.c.l.b16 %v1222
    %v1909 = vunpack.c.h.b16 %v1222
    %v1910 = vunpack.c.l.b16 %v1223
    %v1911 = vunpack.c.h.b16 %v1223
    %v1912 = vunpack.c.l.b16 %v1224
    %v1913 = vunpack.c.h.b16 %v1224
    %v1914 = vunpack.c.l.b16 %v1225
    %v1915 = vunpack.c.h.b16 %v1225
    %v1916 = vunpack.c.l.b16 %v1226
    %v1917 = vunpack.c.h.b16 %v1226
    %v1918 = vunpack.c.l.b16 %v1227
    %v1919 = vunpack.c.h.b16 %v1227
    %v1920 = vunpack.c.l.b16 %v1228
    %v1921 = vunpack.c.h.b16 %v1228
    %v1922 = vunpack.c.l.b16 %v1229
    %v1923 = vunpack.c.h.b16 %v1229
    %v1924 = vunpack.c.l.b16 %v1230
    %v1925 = vunpack.c.h.b16 %v1230
    %v1926 = vunpack.c.l.b16 %v1231
    %v1927 = vunpack.c.h.b16 %v1231
    %v1928 = vunpack.c.l.b16 %v1232
    %v1929 = vunpack.c.h.b16 %v1232
    %v1930 = vunpack.c.l.b16 %v1233
    %v1931 = vunpack.c.h.b16 %v1233
    %v1932 = vunpack.c.l.b16 %v1234
    %v1933 = vunpack.c.h.b16 %v1234
    %v1934 = vunpack.c.l.b16 %v1235
    %v1935 = vunpack.c.h.b16 %v1235
    %v1936 = vunpack.c.l.b16 %v1236
    %v1937 = vunpack.c.h.b16 %v1236
    %v1938 = vunpack.c.l.b16 %v1237
    %v1939 = vunpack.c.h.b16 %v1237
    %v1940 = vunpack.c.l.b16 %v1238
    %v1941 = vunpack.c.h.b16 %v1238
    %v1942 = vunpack.c.l.b16 %v1239
    %v1943 = vunpack.c.h.b16 %v1239
    %v1944 = vunpack.c.l.b16 %v1240
    %v1945 = vunpack.c.h.b16 %v1240
    %v1946 = vunpack.c.l.b16 %v1241
    %v1947 = vunpack.c.h.b16 %v1241
    %v1948 = vunpack.c.l.b16 %v1242
    %v1949 = vunpack.c.h.b16 %v1242
    %v1950 = vunpack.c.l.b16 %v1243
    %v1951 = vunpack.c.h.b16 %v1243
    %v1952 = vunpack.c.l.b16 %v1244
    %v1953 = vunpack.c.h.b16 %v1244
    %v1954 = vunpack.c.l.b16 %v1245
    %v1955 = vunpack.c.h.b16 %v1245
    %v1956 = vunpack.c.l.b16 %v1246
    %v1957 = vunpack.c.h.b16 %v1246
    %v1958 = vunpack.c.l.b16 %v1247
    %v1959 = vunpack.c.h.b16 %v1247
    %v1960 = vunpack.c.l.b16 %v1248
    %v1961 = vunpack.c.h.b16 %v1248
    %v1962 = vunpack.c.l.b16 %v1249
    %v1963 = vunpack.c.h.b16 %v1249
    %v1964 = vunpack.c.l.b16 %v1250
    %v1965 = vunpack.c.h.b16 %v1250
    %v1966 = vunpack.c.l.b16 %v1251
    %v1967 = vunpack.c.h.b16 %v1251
    %v1968 = vunpack.c.l.b16 %v1252
    %v1969 = vunpack.c.h.b16 %v1252
    %v1970 = vunpack.c.l.b16 %v1253
    %v1971 = vunpack.c.h.b16 %v1253
    %v1972 = vunpack.c.l.b16 %v1254
    %v1973 = vunpack.c.h.b16 %v1254
    %v1974 = vunpack.c.l.b16 %v1255
    %v1975 = vunpack.c.h.b16 %v1255
    %v1976 = vunpack.c.l.b16 %v1256
    %v1977 = vunpack.c.h.b16 %v1256
    %v1978 = vunpack.c.l.b16 %v1257
    %v1979 = vunpack.c.h.b16 %v1257
    %v1980 = vunpack.c.l.b16 %v1258
    %v1981 = vunpack.c.h.b16 %v1258
    %v1982 = vunpack.c.l.b16 %v1259
    %v1983 = vunpack.c.h.b16 %v1259
    %v1984 = vunpack.c.l.b16 %v1260
    %v1985 = vunpack.c.h.b16 %v1260
    %v1986 = vunpack.c.l.b16 %v1261
    %v1987 = vunpack.c.h.b16 %v1261
    %v1988 = vunpack.c.l.b16 %v1262
    %v1989 = vunpack.c.h.b16 %v1262
    %v1990 = vunpack.c.l.b16 %v1263
    %v1991 = vunpack.c.h.b16 %v1263
    %v1992 = vunpack.c.l.b16 %v1264
    %v1993 = vunpack.c.h.b16 %v1264
    %v1994 = vunpack.c.l.b16 %v1265
    %v1995 = vunpack.c.h.b16 %v1265
    %v1996 = vunpack.c.l.b16 %v1266
    %v1997 = vunpack.c.h.b16 %v1266
    %v1998 = vunpack.c.l.b16 %v1267
    %v1999 = vunpack.c.h.b16 %v1267
    %v2000 = vunpack.c.l.b16 %v1268
    %v2001 = vunpack.c.h.b16 %v1268
    %v2002 = vunpack.c.l.b16 %v1269
    %v2003 = vunpack.c.h.b16 %v1269
    %v2004 = vunpack.c.l.b16 %v1270
    %v2005 = vunpack.c.h.b16 %v1270
    %v2006 = vunpack.c.l.b16 %v1271
    %v2007 = vunpack.c.h.b16 %v1271
    %v2008 = vunpack.c.l.b16 %v1272
    %v2009 = vunpack.c.h.b16 %v1272
    %v2010 = vunpack.c.l.b16 %v1273
    %v2011 = vunpack.c.h.b16 %v1273
    %v2012 = vunpack.c.l.b16 %v1274
    %v2013 = vunpack.c.h.b16 %v1274
    %v2014 = vunpack.c.l.b16 %v1275
    %v2015 = vunpack.c.h.b16 %v1275
    %v2016 = vunpack.c.l.b16 %v1276
    %v2017 = vunpack.c.h.b16 %v1276
    %v2018 = vunpack.c.l.b16 %v1277
    %v2019 = vunpack.c.h.b16 %v1277
    %v2020 = vunpack.c.l.b16 %v1278
    %v2021 = vunpack.c.h.b16 %v1278
    %v2022 = vunpack.c.l.b16 %v1279
    %v2023 = vunpack.c.h.b16 %v1279
    %v2024 = vunpack.c.l.b16 %v1280
    %v2025 = vunpack.c.h.b16 %v1280
    %v2026 = vunpack.c.l.b16 %v1281
    %v2027 = vunpack.c.h.b16 %v1281
    %v2028 = vunpack.c.l.b16 %v1282
    %v2029 = vunpack.c.h.b16 %v1282
    %v2030 = vunpack.c.l.b16 %v1283
    %v2031 = vunpack.c.h.b16 %v1283
    %v2032 = vunpack.c.l.b16 %v1284
    %v2033 = vunpack.c.h.b16 %v1284
    %v2034 = vunpack.c.l.b16 %v1285
    %v2035 = vunpack.c.h.b16 %v1285
    %v2036 = vunpack.c.l.b16 %v1286
    %v2037 = vunpack.c.h.b16 %v1286
    %v2038 = vunpack.c.l.b16 %v1287
    %v2039 = vunpack.c.h.b16 %v1287
    %v2040 = vunpack.c.l.b16 %v1288
    %v2041 = vunpack.c.h.b16 %v1288
    %v2042 = vunpack.c.l.b16 %v1289
    %v2043 = vunpack.c.h.b16 %v1289
    %v2044 = vunpack.c.l.b16 %v1290
    %v2045 = vunpack.c.h.b16 %v1290
    %v2046 = vunpack.c.l.b16 %v1291
    %v2047 = vunpack.c.h.b16 %v1291
    %v2048 = vunpack.c.l.b16 %v1292
    %v2049 = vunpack.c.h.b16 %v1292
    %v2050 = vunpack.c.l.b16 %v1293
    %v2051 = vunpack.c.h.b16 %v1293
    %v2052 = vunpack.c.l.b16 %v1294
    %v2053 = vunpack.c.h.b16 %v1294
    %v2054 = vunpack.c.l.b16 %v1295
    %v2055 = vunpack.c.h.b16 %v1295
    %v2056 = vunpack.c.l.b16 %v1296
    %v2057 = vunpack.c.h.b16 %v1296
    %v2058 = vunpack.c.l.b16 %v1297
    %v2059 = vunpack.c.h.b16 %v1297
    %v2060 = vunpack.c.l.b16 %v1298
    %v2061 = vunpack.c.h.b16 %v1298
    %v2062 = vunpack.c.l.b16 %v1299
    %v2063 = vunpack.c.h.b16 %v1299
    %v2064 = vunpack.c.l.b16 %v1300
    %v2065 = vunpack.c.h.b16 %v1300
    %v2066 = vunpack.c.l.b16 %v1301
    %v2067 = vunpack.c.h.b16 %v1301
    %v2068 = vunpack.c.l.b16 %v1302
    %v2069 = vunpack.c.h.b16 %v1302
    %v2070 = vunpack.c.l.b16 %v1303
    %v2071 = vunpack.c.h.b16 %v1303
    %v2072 = vpack.c.b16 %v1564, %v1560
    %v2073 = vpack.c.b16 %v1565, %v1561
    %v2074 = vpack.c.b16 %v1566, %v1562
    %v2075 = vpack.c.b16 %v1567, %v1563
    %v2076 = vpack.c.b16 %v1572, %v1568
    %v2077 = vpack.c.b16 %v1573, %v1569
    %v2078 = vpack.c.b16 %v1574, %v1570
    %v2079 = vpack.c.b16 %v1575, %v1571
    %v2080 = vpack.c.b16 %v1580, %v1576
    %v2081 = vpack.c.b16 %v1581, %v1577
    %v2082 = vpack.c.b16 %v1582, %v1578
    %v2083 = vpack.c.b16 %v1583, %v1579
    %v2084 = vpack.c.b16 %v1588, %v1584
    %v2085 = vpack.c.b16 %v1589, %v1585
    %v2086 = vpack.c.b16 %v1590, %v1586
    %v2087 = vpack.c.b16 %v1591, %v1587
    %v2088 = vpack.c.b16 %v1596, %v1592
    %v2089 = vpack.c.b16 %v1597, %v1593
    %v2090 = vpack.c.b16 %v1598, %v1594
    %v2091 = vpack.c.b16 %v1599, %v1595
    %v2092 = vpack.c.b16 %v1604, %v1600
    %v2093 = vpack.c.b16 %v1605, %v1601
    %v2094 = vpack.c.b16 %v1606, %v1602
    %v2095 = vpack.c.b16 %v1607, %v1603
    %v2096 = vpack.c.b16 %v1612, %v1608
    %v2097 = vpack.c.b16 %v1613, %v1609
    %v2098 = vpack.c.b16 %v1614, %v1610
    %v2099 = vpack.c.b16 %v1615, %v1611
    %v2100 = vpack.c.b16 %v1620, %v1616
    %v2101 = vpack.c.b16 %v1621, %v1617
    %v2102 = vpack.c.b16 %v1622, %v1618
    %v2103 = vpack.c.b16 %v1623, %v1619
    %v2104 = vpack.c.b16 %v1628, %v1624
    %v2105 = vpack.c.b16 %v1629, %v1625
    %v2106 = vpack.c.b16 %v1630, %v1626
    %v2107 = vpack.c.b16 %v1631, %v1627
    %v2108 = vpack.c.b16 %v1636, %v1632
    %v2109 = vpack.c.b16 %v1637, %v1633
    %v2110 = vpack.c.b16 %v1638, %v1634
    %v2111 = vpack.c.b16 %v1639, %v1635
    %v2112 = vpack.c.b16 %v1644, %v1640
    %v2113 = vpack.c.b16 %v1645, %v1641
    %v2114 = vpack.c.b16 %v1646, %v1642
    %v2115 = vpack.c.b16 %v1647, %v1643
    %v2116 = vpack.c.b16 %v1652, %v1648
    %v2117 = vpack.c.b16 %v1653, %v1649
    %v2118 = vpack.c.b16 %v1654, %v1650
    %v2119 = vpack.c.b16 %v1655, %v1651
    %v2120 = vpack.c.b16 %v1660, %v1656
    %v2121 = vpack.c.b16 %v1661, %v1657
    %v2122 = vpack.c.b16 %v1662, %v1658
    %v2123 = vpack.c.b16 %v1663, %v1659
    %v2124 = vpack.c.b16 %v1668, %v1664
    %v2125 = vpack.c.b16 %v1669, %v1665
    %v2126 = vpack.c.b16 %v1670, %v1666
    %v2127 = vpack.c.b16 %v1671, %v1667
    %v2128 = vpack.c.b16 %v1676, %v1672
    %v2129 = vpack.c.b16 %v1677, %v1673
    %v2130 = vpack.c.b16 %v1678, %v1674
    %v2131 = vpack.c.b16 %v1679, %v1675
    %v2132 = vpack.c.b16 %v1684, %v1680
    %v2133 = vpack.c.b16 %v1685, %v1681
    %v2134 = vpack.c.b16 %v1686, %v1682
    %v2135 = vpack.c.b16 %v1687, %v1683
    %v2136 = vpack.c.b16 %v1692, %v1688
    %v2137 = vpack.c.b16 %v1693, %v1689
    %v2138 = vpack.c.b16 %v1694, %v1690
    %v2139 = vpack.c.b16 %v1695, %v1691
    %v2140 = vpack.c.b16 %v1700, %v1696
    %v2141 = vpack.c.b16 %v1701, %v1697
    %v2142 = vpack.c.b16 %v1702, %v1698
    %v2143 = vpack.c.b16 %v1703, %v1699
    %v2144 = vpack.c.b16 %v1708, %v1704
    %v2145 = vpack.c.b16 %v1709, %v1705
    %v2146 = vpack.c.b16 %v1710, %v1706
    %v2147 = vpack.c.b16 %v1711, %v1707
    %v2148 = vpack.c.b16 %v1716, %v1712
    %v2149 = vpack.c.b16 %v1717, %v1713
    %v2150 = vpack.c.b16 %v1718, %v1714
    %v2151 = vpack.c.b16 %v1719, %v1715
    %v2152 = vpack.c.b16 %v1724, %v1720
    %v2153 = vpack.c.b16 %v1725, %v1721
    %v2154 = vpack.c.b16 %v1726, %v1722
    %v2155 = vpack.c.b16 %v1727, %v1723
    %v2156 = vpack.c.b16 %v1732, %v1728
    %v2157 = vpack.c.b16 %v1733, %v1729
    %v2158 = vpack.c.b16 %v1734, %v1730
    %v2159 = vpack.c.b16 %v1735, %v1731
    %v2160 = vpack.c.b16 %v1740, %v1736
    %v2161 = vpack.c.b16 %v1741, %v1737
    %v2162 = vpack.c.b16 %v1742, %v1738
    %v2163 = vpack.c.b16 %v1743, %v1739
    %v2164 = vpack.c.b16 %v1748, %v1744
    %v2165 = vpack.c.b16 %v1749, %v1745
    %v2166 = vpack.c.b16 %v1750, %v1746
    %v2167 = vpack.c.b16 %v1751, %v1747
    %v2168 = vpack.c.b16 %v1756, %v1752
    %v2169 = vpack.c.b16 %v1757, %v1753
    %v2170 = vpack.c.b16 %v1758, %v1754
    %v2171 = vpack.c.b16 %v1759, %v1755
    %v2172 = vpack.c.b16 %v1764, %v1760
    %v2173 = vpack.c.b16 %v1765, %v1761
    %v2174 = vpack.c.b16 %v1766, %v1762
    %v2175 = vpack.c.b16 %v1767, %v1763
    %v2176 = vpack.c.b16 %v1772, %v1768
    %v2177 = vpack.c.b16 %v1773, %v1769
    %v2178 = vpack.c.b16 %v1774, %v1770
    %v2179 = vpack.c.b16 %v1775, %v1771
    %v2180 = vpack.c.b16 %v1780, %v1776
    %v2181 = vpack.c.b16 %v1781, %v1777
    %v2182 = vpack.c.b16 %v1782, %v1778
    %v2183 = vpack.c.b16 %v1783, %v1779
    %v2184 = vpack.c.b16 %v1788, %v1784
    %v2185 = vpack.c.b16 %v1789, %v1785
    %v2186 = vpack.c.b16 %v1790, %v1786
    %v2187 = vpack.c.b16 %v1791, %v1787
    %v2188 = vpack.c.b16 %v1796, %v1792
    %v2189 = vpack.c.b16 %v1797, %v1793
    %v2190 = vpack.c.b16 %v1798, %v1794
    %v2191 = vpack.c.b16 %v1799, %v1795
    %v2192 = vpack.c.b16 %v1804, %v1800
    %v2193 = vpack.c.b16 %v1805, %v1801
    %v2194 = vpack.c.b16 %v1806, %v1802
    %v2195 = vpack.c.b16 %v1807, %v1803
    %v2196 = vpack.c.b16 %v1812, %v1808
    %v2197 = vpack.c.b16 %v1813, %v1809
    %v2198 = vpack.c.b16 %v1814, %v1810
    %v2199 = vpack.c.b16 %v1815, %v1811
    %v2200 = vpack.c.b16 %v1820, %v1816
    %v2201 = vpack.c.b16 %v1821, %v1817
    %v2202 = vpack.c.b16 %v1822, %v1818
    %v2203 = vpack.c.b16 %v1823, %v1819
    %v2204 = vpack.c.b16 %v1828, %v1824
    %v2205 = vpack.c.b16 %v1829, %v1825
    %v2206 = vpack.c.b16 %v1830, %v1826
    %v2207 = vpack.c.b16 %v1831, %v1827
    %v2208 = vpack.c.b16 %v1836, %v1832
    %v2209 = vpack.c.b16 %v1837, %v1833
    %v2210 = vpack.c.b16 %v1838, %v1834
    %v2211 = vpack.c.b16 %v1839, %v1835
    %v2212 = vpack.c.b16 %v1844, %v1840
    %v2213 = vpack.c.b16 %v1845, %v1841
    %v2214 = vpack.c.b16 %v1846, %v1842
    %v2215 = vpack.c.b16 %v1847, %v1843
    %v2216 = vpack.c.b16 %v1852, %v1848
    %v2217 = vpack.c.b16 %v1853, %v1849
    %v2218 = vpack.c.b16 %v1854, %v1850
    %v2219 = vpack.c.b16 %v1855, %v1851
    %v2220 = vpack.c.b16 %v1860, %v1856
    %v2221 = vpack.c.b16 %v1861, %v1857
    %v2222 = vpack.c.b16 %v1862, %v1858
    %v2223 = vpack.c.b16 %v1863, %v1859
    %v2224 = vpack.c.b16 %v1868, %v1864
    %v2225 = vpack.c.b16 %v1869, %v1865
    %v2226 = vpack.c.b16 %v1870, %v1866
    %v2227 = vpack.c.b16 %v1871, %v1867
    %v2228 = vpack.c.b16 %v1876, %v1872
    %v2229 = vpack.c.b16 %v1877, %v1873
    %v2230 = vpack.c.b16 %v1878, %v1874
    %v2231 = vpack.c.b16 %v1879, %v1875
    %v2232 = vpack.c.b16 %v1884, %v1880
    %v2233 = vpack.c.b16 %v1885, %v1881
    %v2234 = vpack.c.b16 %v1886, %v1882
    %v2235 = vpack.c.b16 %v1887, %v1883
    %v2236 = vpack.c.b16 %v1892, %v1888
    %v2237 = vpack.c.b16 %v1893, %v1889
    %v2238 = vpack.c.b16 %v1894, %v1890
    %v2239 = vpack.c.b16 %v1895, %v1891
    %v2240 = vpack.c.b16 %v1900, %v1896
    %v2241 = vpack.c.b16 %v1901, %v1897
    %v2242 = vpack.c.b16 %v1902, %v1898
    %v2243 = vpack.c.b16 %v1903, %v1899
    %v2244 = vpack.c.b16 %v1908, %v1904
    %v2245 = vpack.c.b16 %v1909, %v1905
    %v2246 = vpack.c.b16 %v1910, %v1906
    %v2247 = vpack.c.b16 %v1911, %v1907
    %v2248 = vpack.c.b16 %v1916, %v1912
    %v2249 = vpack.c.b16 %v1917, %v1913
    %v2250 = vpack.c.b16 %v1918, %v1914
    %v2251 = vpack.c.b16 %v1919, %v1915
    %v2252 = vpack.c.b16 %v1924, %v1920
    %v2253 = vpack.c.b16 %v1925, %v1921
    %v2254 = vpack.c.b16 %v1926, %v1922
    %v2255 = vpack.c.b16 %v1927, %v1923
    %v2256 = vpack.c.b16 %v1932, %v1928
    %v2257 = vpack.c.b16 %v1933, %v1929
    %v2258 = vpack.c.b16 %v1934, %v1930
    %v2259 = vpack.c.b16 %v1935, %v1931
    %v2260 = vpack.c.b16 %v1940, %v1936
    %v2261 = vpack.c.b16 %v1941, %v1937
    %v2262 = vpack.c.b16 %v1942, %v1938
    %v2263 = vpack.c.b16 %v1943, %v1939
    %v2264 = vpack.c.b16 %v1948, %v1944
    %v2265 = vpack.c.b16 %v1949, %v1945
    %v2266 = vpack.c.b16 %v1950, %v1946
    %v2267 = vpack.c.b16 %v1951, %v1947
    %v2268 = vpack.c.b16 %v1956, %v1952
    %v2269 = vpack.c.b16 %v1957, %v1953
    %v2270 = vpack.c.b16 %v1958, %v1954
    %v2271 = vpack.c.b16 %v1959, %v1955
    %v2272 = vpack.c.b16 %v1964, %v1960
    %v2273 = vpack.c.b16 %v1965, %v1961
    %v2274 = vpack.c.b16 %v1966, %v1962
    %v2275 = vpack.c.b16 %v1967, %v1963
    %v2276 = vpack.c.b16 %v1972, %v1968
    %v2277 = vpack.c.b16 %v1973, %v1969
    %v2278 = vpack.c.b16 %v1974, %v1970
    %v2279 = vpack.c.b16 %v1975, %v1971
    %v2280 = vpack.c.b16 %v1980, %v1976
    %v2281 = vpack.c.b16 %v1981, %v1977
    %v2282 = vpack.c.b16 %v1982, %v1978
    %v2283 = vpack.c.b16 %v1983, %v1979
    %v2284 = vpack.c.b16 %v1988, %v1984
    %v2285 = vpack.c.b16 %v1989, %v1985
    %v2286 = vpack.c.b16 %v1990, %v1986
    %v2287 = vpack.c.b16 %v1991, %v1987
    %v2288 = vpack.c.b16 %v1996, %v1992
    %v2289 = vpack.c.b16 %v1997, %v1993
    %v2290 = vpack.c.b16 %v1998, %v1994
    %v2291 = vpack.c.b16 %v1999, %v1995
    %v2292 = vpack.c.b16 %v2004, %v2000
    %v2293 = vpack.c.b16 %v2005, %v2001
    %v2294 = vpack.c.b16 %v2006, %v2002
    %v2295 = vpack.c.b16 %v2007, %v2003
    %v2296 = vpack.c.b16 %v2012, %v2008
    %v2297 = vpack.c.b16 %v2013, %v2009
    %v2298 = vpack.c.b16 %v2014, %v2010
    %v2299 = vpack.c.b16 %v2015, %v2011
    %v2300 = vpack.c.b16 %v2020, %v2016
    %v2301 = vpack.c.b16 %v2021, %v2017
    %v2302 = vpack.c.b16 %v2022, %v2018
    %v2303 = vpack.c.b16 %v2023, %v2019
    %v2304 = vpack.c.b16 %v2028, %v2024
    %v2305 = vpack.c.b16 %v2029, %v2025
    %v2306 = vpack.c.b16 %v2030, %v2026
    %v2307 = vpack.c.b16 %v2031, %v2027
    %v2308 = vpack.c.b16 %v2036, %v2032
    %v2309 = vpack.c.b16 %v2037, %v2033
    %v2310 = vpack.c.b16 %v2038, %v2034
    %v2311 = vpack.c.b16 %v2039, %v2035
    %v2312 = vpack.c.b16 %v2044, %v2040
    %v2313 = vpack.c.b16 %v2045, %v2041
    %v2314 = vpack.c.b16 %v2046, %v2042
    %v2315 = vpack.c.b16 %v2047, %v2043
    %v2316 = vpack.c.b16 %v2052, %v2048
    %v2317 = vpack.c.b16 %v2053, %v2049
    %v2318 = vpack.c.b16 %v2054, %v2050
    %v2319 = vpack.c.b16 %v2055, %v2051
    %v2320 = vpack.c.b16 %v2060, %v2056
    %v2321 = vpack.c.b16 %v2061, %v2057
    %v2322 = vpack.c.b16 %v2062, %v2058
    %v2323 = vpack.c.b16 %v2063, %v2059
    %v2324 = vpack.c.b16 %v2068, %v2064
    %v2325 = vpack.c.b16 %v2069, %v2065
    %v2326 = vpack.c.b16 %v2070, %v2066
    %v2327 = vpack.c.b16 %v2071, %v2067
    %2584 = vmatprep.subr.bf16.mxu0 %v2073
    %2585 = vmatpush1.bf16.msra.mxu0 %v2072
    %2586 = vmatprep.subr.bf16.mxu0 %v2077
    %2587 = vmatpush1.bf16.msra.mxu0 %v2076
    %2588 = vmatprep.subr.bf16.mxu0 %v2081
    %2589 = vmatpush1.bf16.msra.mxu0 %v2080
    %2590 = vmatprep.subr.bf16.mxu0 %v2085
    %2591 = vmatpush1.bf16.msra.mxu0 %v2084
    %2592 = vmatprep.subr.bf16.mxu0 %v2089
    %2593 = vmatpush1.bf16.msra.mxu0 %v2088
    %2594 = vmatprep.subr.bf16.mxu0 %v2093
    %2595 = vmatpush1.bf16.msra.mxu0 %v2092
    %2596 = vmatprep.subr.bf16.mxu0 %v2097
    %2597 = vmatpush1.bf16.msra.mxu0 %v2096
    %2598 = vmatprep.subr.bf16.mxu0 %v2101
    %2599 = vmatpush1.bf16.msra.mxu0 %v2100
    %2600 = vmatprep.subr.bf16.mxu0 %v2105
    %2601 = vmatpush1.bf16.msra.mxu0 %v2104
    %2602 = vmatprep.subr.bf16.mxu0 %v2109
    %2603 = vmatpush1.bf16.msra.mxu0 %v2108
    %2604 = vmatprep.subr.bf16.mxu0 %v2113
    %2605 = vmatpush1.bf16.msra.mxu0 %v2112
    %2606 = vmatprep.subr.bf16.mxu0 %v2117
    %2607 = vmatpush1.bf16.msra.mxu0 %v2116
    %2608 = vmatprep.subr.bf16.mxu0 %v2121
    %2609 = vmatpush1.bf16.msra.mxu0 %v2120
    %2610 = vmatprep.subr.bf16.mxu0 %v2125
    %2611 = vmatpush1.bf16.msra.mxu0 %v2124
    %2612 = vmatprep.subr.bf16.mxu0 %v2129
    %2613 = vmatpush1.bf16.msra.mxu0 %v2128
    %2614 = vmatprep.subr.bf16.mxu0 %v2133
    %2615 = vmatpush1.bf16.msra.mxu0 %v2132
    %2616 = vmatprep.mubr.bf16.mxu0 %v1041
    %2617 = vmatmul.mubr.bf16.gmra.mrb[0].mxu0 %v1040
    %v2618 = vpop.f32.mrb[0].mxu0
    %v2619 = vadd.f32 0.0, %v2618
    %v2620 = vpop.f32.mrb[0].mxu0
    %v2621 = vadd.f32 0.0, %v2620
    %v2622 = vpop.f32.mrb[0].mxu0
    %v2623 = vpop.f32.mrb[0].mxu0
    %2624 = vdwg.mxu0
    %2625 = vmatprep.subr.bf16.mxu0 %v2137
    %2626 = vmatpush1.bf16.msra.mxu0 %v2136
    %2627 = vmatprep.subr.bf16.mxu0 %v2141
    %2628 = vmatpush1.bf16.msra.mxu0 %v2140
    %2629 = vmatprep.subr.bf16.mxu0 %v2145
    %2630 = vmatpush1.bf16.msra.mxu0 %v2144
    %2631 = vmatprep.subr.bf16.mxu0 %v2149
    %2632 = vmatpush1.bf16.msra.mxu0 %v2148
    %2633 = vmatprep.subr.bf16.mxu0 %v2153
    %2634 = vmatpush1.bf16.msra.mxu0 %v2152
    %2635 = vmatprep.subr.bf16.mxu0 %v2157
    %2636 = vmatpush1.bf16.msra.mxu0 %v2156
    %2637 = vmatprep.subr.bf16.mxu0 %v2161
    %2638 = vmatpush1.bf16.msra.mxu0 %v2160
    %2639 = vmatprep.subr.bf16.mxu0 %v2165
    %2640 = vmatpush1.bf16.msra.mxu0 %v2164
    %2641 = vmatprep.subr.bf16.mxu0 %v2169
    %2642 = vmatpush1.bf16.msra.mxu0 %v2168
    %2643 = vmatprep.subr.bf16.mxu0 %v2173
    %2644 = vmatpush1.bf16.msra.mxu0 %v2172
    %2645 = vmatprep.subr.bf16.mxu0 %v2177
    %2646 = vmatpush1.bf16.msra.mxu0 %v2176
    %2647 = vmatprep.subr.bf16.mxu0 %v2181
    %2648 = vmatpush1.bf16.msra.mxu0 %v2180
    %2649 = vmatprep.subr.bf16.mxu0 %v2185
    %2650 = vmatpush1.bf16.msra.mxu0 %v2184
    %2651 = vmatprep.subr.bf16.mxu0 %v2189
    %2652 = vmatpush1.bf16.msra.mxu0 %v2188
    %2653 = vmatprep.subr.bf16.mxu0 %v2193
    %2654 = vmatpush1.bf16.msra.mxu0 %v2192
    %2655 = vmatprep.subr.bf16.mxu0 %v2197
    %2656 = vmatpush1.bf16.msra.mxu0 %v2196
    %2657 = vmatprep.mubr.bf16.mxu0 %v1043
    %2658 = vmatmul.mubr.bf16.gmra.mrb[0].mxu0 %v1042
    %v2659 = vpop.f32.mrb[0].mxu0
    %v2660 = vadd.f32 %v2619, %v2659
    %v2661 = vpop.f32.mrb[0].mxu0
    %v2662 = vadd.f32 %v2621, %v2661
    %v2663 = vpop.f32.mrb[0].mxu0
    %v2664 = vpop.f32.mrb[0].mxu0
    %2665 = vdwg.mxu0
    %2666 = vmatprep.subr.bf16.mxu0 %v2201
    %2667 = vmatpush1.bf16.msra.mxu0 %v2200
    %2668 = vmatprep.subr.bf16.mxu0 %v2205
    %2669 = vmatpush1.bf16.msra.mxu0 %v2204
    %2670 = vmatprep.subr.bf16.mxu0 %v2209
    %2671 = vmatpush1.bf16.msra.mxu0 %v2208
    %2672 = vmatprep.subr.bf16.mxu0 %v2213
    %2673 = vmatpush1.bf16.msra.mxu0 %v2212
    %2674 = vmatprep.subr.bf16.mxu0 %v2217
    %2675 = vmatpush1.bf16.msra.mxu0 %v2216
    %2676 = vmatprep.subr.bf16.mxu0 %v2221
    %2677 = vmatpush1.bf16.msra.mxu0 %v2220
    %2678 = vmatprep.subr.bf16.mxu0 %v2225
    %2679 = vmatpush1.bf16.msra.mxu0 %v2224
    %2680 = vmatprep.subr.bf16.mxu0 %v2229
    %2681 = vmatpush1.bf16.msra.mxu0 %v2228
    %2682 = vmatprep.subr.bf16.mxu0 %v2233
    %2683 = vmatpush1.bf16.msra.mxu0 %v2232
    %2684 = vmatprep.subr.bf16.mxu0 %v2237
    %2685 = vmatpush1.bf16.msra.mxu0 %v2236
    %2686 = vmatprep.subr.bf16.mxu0 %v2241
    %2687 = vmatpush1.bf16.msra.mxu0 %v2240
    %2688 = vmatprep.subr.bf16.mxu0 %v2245
    %2689 = vmatpush1.bf16.msra.mxu0 %v2244
    %2690 = vmatprep.subr.bf16.mxu0 %v2249
    %2691 = vmatpush1.bf16.msra.mxu0 %v2248
    %2692 = vmatprep.subr.bf16.mxu0 %v2253
    %2693 = vmatpush1.bf16.msra.mxu0 %v2252
    %2694 = vmatprep.subr.bf16.mxu0 %v2257
    %2695 = vmatpush1.bf16.msra.mxu0 %v2256
    %2696 = vmatprep.subr.bf16.mxu0 %v2261
    %2697 = vmatpush1.bf16.msra.mxu0 %v2260
    %2698 = vmatprep.mubr.bf16.mxu0 %v1045
    %2699 = vmatmul.mubr.bf16.gmra.mrb[0].mxu0 %v1044
    %v2700 = vpop.f32.mrb[0].mxu0
    %v2701 = vadd.f32 %v2660, %v2700
    %v2702 = vpop.f32.mrb[0].mxu0
    %v2703 = vadd.f32 %v2662, %v2702
    %v2704 = vpop.f32.mrb[0].mxu0
    %v2705 = vpop.f32.mrb[0].mxu0
    %2706 = vdwg.mxu0
    %2707 = vmatprep.subr.bf16.mxu0 %v2265
    %2708 = vmatpush1.bf16.msra.mxu0 %v2264
    %2709 = vmatprep.subr.bf16.mxu0 %v2269
    %2710 = vmatpush1.bf16.msra.mxu0 %v2268
    %2711 = vmatprep.subr.bf16.mxu0 %v2273
    %2712 = vmatpush1.bf16.msra.mxu0 %v2272
    %2713 = vmatprep.subr.bf16.mxu0 %v2277
    %2714 = vmatpush1.bf16.msra.mxu0 %v2276
    %2715 = vmatprep.subr.bf16.mxu0 %v2281
    %2716 = vmatpush1.bf16.msra.mxu0 %v2280
    %2717 = vmatprep.subr.bf16.mxu0 %v2285
    %2718 = vmatpush1.bf16.msra.mxu0 %v2284
    %2719 = vmatprep.subr.bf16.mxu0 %v2289
    %2720 = vmatpush1.bf16.msra.mxu0 %v2288
    %2721 = vmatprep.subr.bf16.mxu0 %v2293
    %2722 = vmatpush1.bf16.msra.mxu0 %v2292
    %2723 = vmatprep.subr.bf16.mxu0 %v2297
    %2724 = vmatpush1.bf16.msra.mxu0 %v2296
    %2725 = vmatprep.subr.bf16.mxu0 %v2301
    %2726 = vmatpush1.bf16.msra.mxu0 %v2300
    %2727 = vmatprep.subr.bf16.mxu0 %v2305
    %2728 = vmatpush1.bf16.msra.mxu0 %v2304
    %2729 = vmatprep.subr.bf16.mxu0 %v2309
    %2730 = vmatpush1.bf16.msra.mxu0 %v2308
    %2731 = vmatprep.subr.bf16.mxu0 %v2313
    %2732 = vmatpush1.bf16.msra.mxu0 %v2312
    %2733 = vmatprep.subr.bf16.mxu0 %v2317
    %2734 = vmatpush1.bf16.msra.mxu0 %v2316
    %2735 = vmatprep.subr.bf16.mxu0 %v2321
    %2736 = vmatpush1.bf16.msra.mxu0 %v2320
    %2737 = vmatprep.subr.bf16.mxu0 %v2325
    %2738 = vmatpush1.bf16.msra.mxu0 %v2324
    %2739 = vmatprep.mubr.bf16.mxu0 %v1047
    %2740 = vmatmul.mubr.bf16.gmra.mrb[0].mxu0 %v1046
    %v2741 = vpop.f32.mrb[0].mxu0
    %v2742 = vadd.f32 %v2701, %v2741
    %v2743 = vpop.f32.mrb[0].mxu0
    %v2744 = vadd.f32 %v2703, %v2743
    %v2745 = vpop.f32.mrb[0].mxu0
    %v2746 = vpop.f32.mrb[0].mxu0
    %2747 = vdwg.mxu0
    %2748 = vmatprep.subr.bf16.mxu0 %v2075
    %2749 = vmatpush1.bf16.msra.mxu0 %v2074
    %2750 = vmatprep.subr.bf16.mxu0 %v2079
    %2751 = vmatpush1.bf16.msra.mxu0 %v2078
    %2752 = vmatprep.subr.bf16.mxu0 %v2083
    %2753 = vmatpush1.bf16.msra.mxu0 %v2082
    %2754 = vmatprep.subr.bf16.mxu0 %v2087
    %2755 = vmatpush1.bf16.msra.mxu0 %v2086
    %2756 = vmatprep.subr.bf16.mxu0 %v2091
    %2757 = vmatpush1.bf16.msra.mxu0 %v2090
    %2758 = vmatprep.subr.bf16.mxu0 %v2095
    %2759 = vmatpush1.bf16.msra.mxu0 %v2094
    %2760 = vmatprep.subr.bf16.mxu0 %v2099
    %2761 = vmatpush1.bf16.msra.mxu0 %v2098
    %2762 = vmatprep.subr.bf16.mxu0 %v2103
    %2763 = vmatpush1.bf16.msra.mxu0 %v2102
    %2764 = vmatprep.subr.bf16.mxu0 %v2107
    %2765 = vmatpush1.bf16.msra.mxu0 %v2106
    %2766 = vmatprep.subr.bf16.mxu0 %v2111
    %2767 = vmatpush1.bf16.msra.mxu0 %v2110
    %2768 = vmatprep.subr.bf16.mxu0 %v2115
    %2769 = vmatpush1.bf16.msra.mxu0 %v2114
    %2770 = vmatprep.subr.bf16.mxu0 %v2119
    %2771 = vmatpush1.bf16.msra.mxu0 %v2118
    %2772 = vmatprep.subr.bf16.mxu0 %v2123
    %2773 = vmatpush1.bf16.msra.mxu0 %v2122
    %2774 = vmatprep.subr.bf16.mxu0 %v2127
    %2775 = vmatpush1.bf16.msra.mxu0 %v2126
    %2776 = vmatprep.subr.bf16.mxu0 %v2131
    %2777 = vmatpush1.bf16.msra.mxu0 %v2130
    %2778 = vmatprep.subr.bf16.mxu0 %v2135
    %2779 = vmatpush1.bf16.msra.mxu0 %v2134
    %2780 = vmatprep.mubr.bf16.mxu0 %v1041
    %2781 = vmatmul.mubr.bf16.gmra.mrb[0].mxu0 %v1040
    %v2782 = vpop.f32.mrb[0].mxu0
    %v2783 = vadd.f32 0.0, %v2782
    %v2784 = vpop.f32.mrb[0].mxu0
    %v2785 = vadd.f32 0.0, %v2784
    %v2786 = vpop.f32.mrb[0].mxu0
    %v2787 = vpop.f32.mrb[0].mxu0
    %2788 = vdwg.mxu0
    %2789 = vmatprep.subr.bf16.mxu0 %v2139
    %2790 = vmatpush1.bf16.msra.mxu0 %v2138
    %2791 = vmatprep.subr.bf16.mxu0 %v2143
    %2792 = vmatpush1.bf16.msra.mxu0 %v2142
    %2793 = vmatprep.subr.bf16.mxu0 %v2147
    %2794 = vmatpush1.bf16.msra.mxu0 %v2146
    %2795 = vmatprep.subr.bf16.mxu0 %v2151
    %2796 = vmatpush1.bf16.msra.mxu0 %v2150
    %2797 = vmatprep.subr.bf16.mxu0 %v2155
    %2798 = vmatpush1.bf16.msra.mxu0 %v2154
    %2799 = vmatprep.subr.bf16.mxu0 %v2159
    %2800 = vmatpush1.bf16.msra.mxu0 %v2158
    %2801 = vmatprep.subr.bf16.mxu0 %v2163
    %2802 = vmatpush1.bf16.msra.mxu0 %v2162
    %2803 = vmatprep.subr.bf16.mxu0 %v2167
    %2804 = vmatpush1.bf16.msra.mxu0 %v2166
    %2805 = vmatprep.subr.bf16.mxu0 %v2171
    %2806 = vmatpush1.bf16.msra.mxu0 %v2170
    %2807 = vmatprep.subr.bf16.mxu0 %v2175
    %2808 = vmatpush1.bf16.msra.mxu0 %v2174
    %2809 = vmatprep.subr.bf16.mxu0 %v2179
    %2810 = vmatpush1.bf16.msra.mxu0 %v2178
    %2811 = vmatprep.subr.bf16.mxu0 %v2183
    %2812 = vmatpush1.bf16.msra.mxu0 %v2182
    %2813 = vmatprep.subr.bf16.mxu0 %v2187
    %2814 = vmatpush1.bf16.msra.mxu0 %v2186
    %2815 = vmatprep.subr.bf16.mxu0 %v2191
    %2816 = vmatpush1.bf16.msra.mxu0 %v2190
    %2817 = vmatprep.subr.bf16.mxu0 %v2195
    %2818 = vmatpush1.bf16.msra.mxu0 %v2194
    %2819 = vmatprep.subr.bf16.mxu0 %v2199
    %2820 = vmatpush1.bf16.msra.mxu0 %v2198
    %2821 = vmatprep.mubr.bf16.mxu0 %v1043
    %2822 = vmatmul.mubr.bf16.gmra.mrb[0].mxu0 %v1042
    %v2823 = vpop.f32.mrb[0].mxu0
    %v2824 = vadd.f32 %v2783, %v2823
    %v2825 = vpop.f32.mrb[0].mxu0
    %v2826 = vadd.f32 %v2785, %v2825
    %v2827 = vpop.f32.mrb[0].mxu0
    %v2828 = vpop.f32.mrb[0].mxu0
    %2829 = vdwg.mxu0
    %2830 = vmatprep.subr.bf16.mxu0 %v2203
    %2831 = vmatpush1.bf16.msra.mxu0 %v2202
    %2832 = vmatprep.subr.bf16.mxu0 %v2207
    %2833 = vmatpush1.bf16.msra.mxu0 %v2206
    %2834 = vmatprep.subr.bf16.mxu0 %v2211
    %2835 = vmatpush1.bf16.msra.mxu0 %v2210
    %2836 = vmatprep.subr.bf16.mxu0 %v2215
    %2837 = vmatpush1.bf16.msra.mxu0 %v2214
    %2838 = vmatprep.subr.bf16.mxu0 %v2219
    %2839 = vmatpush1.bf16.msra.mxu0 %v2218
    %2840 = vmatprep.subr.bf16.mxu0 %v2223
    %2841 = vmatpush1.bf16.msra.mxu0 %v2222
    %2842 = vmatprep.subr.bf16.mxu0 %v2227
    %2843 = vmatpush1.bf16.msra.mxu0 %v2226
    %2844 = vmatprep.subr.bf16.mxu0 %v2231
    %2845 = vmatpush1.bf16.msra.mxu0 %v2230
    %2846 = vmatprep.subr.bf16.mxu0 %v2235
    %2847 = vmatpush1.bf16.msra.mxu0 %v2234
    %2848 = vmatprep.subr.bf16.mxu0 %v2239
    %2849 = vmatpush1.bf16.msra.mxu0 %v2238
    %2850 = vmatprep.subr.bf16.mxu0 %v2243
    %2851 = vmatpush1.bf16.msra.mxu0 %v2242
    %2852 = vmatprep.subr.bf16.mxu0 %v2247
    %2853 = vmatpush1.bf16.msra.mxu0 %v2246
    %2854 = vmatprep.subr.bf16.mxu0 %v2251
    %2855 = vmatpush1.bf16.msra.mxu0 %v2250
    %2856 = vmatprep.subr.bf16.mxu0 %v2255
    %2857 = vmatpush1.bf16.msra.mxu0 %v2254
    %2858 = vmatprep.subr.bf16.mxu0 %v2259
    %2859 = vmatpush1.bf16.msra.mxu0 %v2258
    %2860 = vmatprep.subr.bf16.mxu0 %v2263
    %2861 = vmatpush1.bf16.msra.mxu0 %v2262
    %2862 = vmatprep.mubr.bf16.mxu0 %v1045
    %2863 = vmatmul.mubr.bf16.gmra.mrb[0].mxu0 %v1044
    %v2864 = vpop.f32.mrb[0].mxu0
    %v2865 = vadd.f32 %v2824, %v2864
    %v2866 = vpop.f32.mrb[0].mxu0
    %v2867 = vadd.f32 %v2826, %v2866
    %v2868 = vpop.f32.mrb[0].mxu0
    %v2869 = vpop.f32.mrb[0].mxu0
    %2870 = vdwg.mxu0
    %2871 = vmatprep.subr.bf16.mxu0 %v2267
    %2872 = vmatpush1.bf16.msra.mxu0 %v2266
    %2873 = vmatprep.subr.bf16.mxu0 %v2271
    %2874 = vmatpush1.bf16.msra.mxu0 %v2270
    %2875 = vmatprep.subr.bf16.mxu0 %v2275
    %2876 = vmatpush1.bf16.msra.mxu0 %v2274
    %2877 = vmatprep.subr.bf16.mxu0 %v2279
    %2878 = vmatpush1.bf16.msra.mxu0 %v2278
    %2879 = vmatprep.subr.bf16.mxu0 %v2283
    %2880 = vmatpush1.bf16.msra.mxu0 %v2282
    %2881 = vmatprep.subr.bf16.mxu0 %v2287
    %2882 = vmatpush1.bf16.msra.mxu0 %v2286
    %2883 = vmatprep.subr.bf16.mxu0 %v2291
    %2884 = vmatpush1.bf16.msra.mxu0 %v2290
    %2885 = vmatprep.subr.bf16.mxu0 %v2295
    %2886 = vmatpush1.bf16.msra.mxu0 %v2294
    %2887 = vmatprep.subr.bf16.mxu0 %v2299
    %2888 = vmatpush1.bf16.msra.mxu0 %v2298
    %2889 = vmatprep.subr.bf16.mxu0 %v2303
    %2890 = vmatpush1.bf16.msra.mxu0 %v2302
    %2891 = vmatprep.subr.bf16.mxu0 %v2307
    %2892 = vmatpush1.bf16.msra.mxu0 %v2306
    %2893 = vmatprep.subr.bf16.mxu0 %v2311
    %2894 = vmatpush1.bf16.msra.mxu0 %v2310
    %2895 = vmatprep.subr.bf16.mxu0 %v2315
    %2896 = vmatpush1.bf16.msra.mxu0 %v2314
    %2897 = vmatprep.subr.bf16.mxu0 %v2319
    %2898 = vmatpush1.bf16.msra.mxu0 %v2318
    %2899 = vmatprep.subr.bf16.mxu0 %v2323
    %2900 = vmatpush1.bf16.msra.mxu0 %v2322
    %2901 = vmatprep.subr.bf16.mxu0 %v2327
    %2902 = vmatpush1.bf16.msra.mxu0 %v2326
    %2903 = vmatprep.mubr.bf16.mxu0 %v1047
    %2904 = vmatmul.mubr.bf16.gmra.mrb[0].mxu0 %v1046
    %v2905 = vpop.f32.mrb[0].mxu0
    %v2906 = vadd.f32 %v2865, %v2905
    %v2907 = vpop.f32.mrb[0].mxu0
    %v2908 = vadd.f32 %v2867, %v2907
    %v2909 = vpop.f32.mrb[0].mxu0
    %v2910 = vpop.f32.mrb[0].mxu0
    %2911 = vdwg.mxu0
    %s2912 = scalar_lea.vmem [#allocation9], 2
    %v2913 = vld [vmem:[%s2912] ss:$8 sm:$0xf]
    %s2914 = scalar_lea.vmem [#allocation9], 3
    %v2915 = vld [vmem:[%s2914] ss:$8 sm:$0xf]
    %v2916 = vrot.slane %v2742, 4
    %v2917 = vadd.f32 %v2742, %v2916
    %v2918 = vrot.slane %v2917, 2
    %v2919 = vadd.f32 %v2917, %v2918
    %v2920 = vrot.slane %v2919, 1
    %v2921 = vadd.f32 %v2919, %v2920
    %v2922 = vrot.slane %v2744, 4
    %v2923 = vadd.f32 %v2744, %v2922
    %v2924 = vrot.slane %v2923, 2
    %v2925 = vadd.f32 %v2923, %v2924
    %v2926 = vrot.slane %v2925, 1
    %v2927 = vadd.f32 %v2925, %v2926
    %v2928 = vrot.slane %v2906, 4
    %v2929 = vadd.f32 %v2906, %v2928
    %v2930 = vrot.slane %v2929, 2
    %v2931 = vadd.f32 %v2929, %v2930
    %v2932 = vrot.slane %v2931, 1
    %v2933 = vadd.f32 %v2931, %v2932
    %v2934 = vrot.slane %v2908, 4
    %v2935 = vadd.f32 %v2908, %v2934
    %v2936 = vrot.slane %v2935, 2
    %v2937 = vadd.f32 %v2935, %v2936
    %v2938 = vrot.slane %v2937, 1
    %v2939 = vadd.f32 %v2937, %v2938
    %v2940 = vmul.f32 %v2921, 0.125
    %v2941 = vmul.f32 %v2927, 0.125
    %v2942 = vmul.f32 %v2933, 0.125
    %v2943 = vmul.f32 %v2939, 0.125
    %v2944 = vsub.f32 %v2742, %v2940
    %v2945 = vsub.f32 %v2744, %v2941
    %v2946 = vsub.f32 %v2906, %v2942
    %v2947 = vsub.f32 %v2908, %v2943
    %v2948 = vmul.f32 %v2944, %v2944
    %v2949 = vmul.f32 %v2945, %v2945
    %v2950 = vmul.f32 %v2946, %v2946
    %v2951 = vmul.f32 %v2947, %v2947
    %v2952 = vrot.slane %v2948, 4
    %v2953 = vadd.f32 %v2948, %v2952
    %v2954 = vrot.slane %v2953, 2
    %v2955 = vadd.f32 %v2953, %v2954
    %v2956 = vrot.slane %v2955, 1
    %v2957 = vadd.f32 %v2955, %v2956
    %v2958 = vrot.slane %v2949, 4
    %v2959 = vadd.f32 %v2949, %v2958
    %v2960 = vrot.slane %v2959, 2
    %v2961 = vadd.f32 %v2959, %v2960
    %v2962 = vrot.slane %v2961, 1
    %v2963 = vadd.f32 %v2961, %v2962
    %v2964 = vrot.slane %v2950, 4
    %v2965 = vadd.f32 %v2950, %v2964
    %v2966 = vrot.slane %v2965, 2
    %v2967 = vadd.f32 %v2965, %v2966
    %v2968 = vrot.slane %v2967, 1
    %v2969 = vadd.f32 %v2967, %v2968
    %v2970 = vrot.slane %v2951, 4
    %v2971 = vadd.f32 %v2951, %v2970
    %v2972 = vrot.slane %v2971, 2
    %v2973 = vadd.f32 %v2971, %v2972
    %v2974 = vrot.slane %v2973, 1
    %v2975 = vadd.f32 %v2973, %v2974
    %v2976 = vmul.f32 %v2957, 0.125
    %v2977 = vmul.f32 %v2963, 0.125
    %v2978 = vmul.f32 %v2969, 0.125
    %v2979 = vmul.f32 %v2975, 0.125
    %v2980 = vadd.f32 %v2976, 1e-05
    %v2981 = vadd.f32 %v2977, 1e-05
    %v2982 = vadd.f32 %v2978, 1e-05
    %v2983 = vadd.f32 %v2979, 1e-05
    %v2984 = vrsqrt.pop %v2980
    %v2985 = vrsqrt.pop %v2981
    %v2986 = vrsqrt.pop %v2982
    %v2987 = vrsqrt.pop %v2983
    %v2992 = vcombine.low %v2984, %v2985
    %v2993 = vcombine.low %v2986, %v2987
    %v2995 = vunpack.c.l.s4 1966171168
    %v2996 = vunpack.c.0.s8 %v2995
    %v2997 = vlaneseq
    %v2998 = vshrl.u32 %v2997, 7
    %v2999 = vsub.s32 %v2996, %v2998
    %v3000 = vrot.slane %v2992, %v2999
    %v3002 = vunpack.c.l.s4 1966171168
    %v3003 = vunpack.c.0.s8 %v3002
    %v3004 = vlaneseq
    %v3005 = vshrl.u32 %v3004, 7
    %v3006 = vsub.s32 %v3003, %v3005
    %v3007 = vrot.slane %v2993, %v3006
    %v3008 = vcombine.low %v3000, %v3007
    %v3010 = vunpack.c.l.s4 1966171168
    %v3011 = vunpack.c.0.s8 %v3010
    %v3012 = vlaneseq
    %v3013 = vshrl.u32 %v3012, 7
    %v3014 = vsub.s32 %v3011, %v3013
    %v3015 = vrot.slane %v3008, %v3014
    %v3017 = vmul.f32 %v2913, %v3015
    %v3019 = vlaneseq
    %v3020 = vshrl.u32 %v3019, 7
    %v3021 = vsub.s32 0, %v3020
    %v3022 = vrot.slane %v3017, %v3021
    %v3023 = vlaneseq
    %v3024 = vshrl.u32 %v3023, 7
    %v3025 = vsub.s32 1, %v3024
    %v3026 = vrot.slane %v3017, %v3025
    %v3027 = vlaneseq
    %v3028 = vshrl.u32 %v3027, 7
    %v3029 = vsub.s32 2, %v3028
    %v3030 = vrot.slane %v3017, %v3029
    %v3031 = vlaneseq
    %v3032 = vshrl.u32 %v3031, 7
    %v3033 = vsub.s32 3, %v3032
    %v3034 = vrot.slane %v3017, %v3033
    %v3039 = vmul.f32 %v2944, %v3022
    %v3040 = vmul.f32 %v2945, %v3026
    %v3041 = vmul.f32 %v2946, %v3030
    %v3042 = vmul.f32 %v2947, %v3034
    %v3044 = vlaneseq
    %v3045 = vshrl.u32 %v3044, 7
    %v3046 = vsub.s32 0, %v3045
    %v3047 = vrot.slane %v2915, %v3046
    %v3048 = vlaneseq
    %v3049 = vshrl.u32 %v3048, 7
    %v3050 = vsub.s32 1, %v3049
    %v3051 = vrot.slane %v2915, %v3050
    %v3052 = vlaneseq
    %v3053 = vshrl.u32 %v3052, 7
    %v3054 = vsub.s32 2, %v3053
    %v3055 = vrot.slane %v2915, %v3054
    %v3056 = vlaneseq
    %v3057 = vshrl.u32 %v3056, 7
    %v3058 = vsub.s32 3, %v3057
    %v3059 = vrot.slane %v2915, %v3058
    %v3064 = vadd.f32 %v3039, %v3047
    %v3065 = vadd.f32 %v3040, %v3051
    %v3066 = vadd.f32 %v3041, %v3055
    %v3067 = vadd.f32 %v3042, %v3059
    %v3068 = vmax.f32 %v3064, 0.0
    %v3069 = vmax.f32 %v3065, 0.0
    %v3070 = vmax.f32 %v3066, 0.0
    %v3071 = vmax.f32 %v3067, 0.0
    %v3072 = vpack.c.bf16 %v3068, %v3068
    %v3073 = vpack.c.bf16 %v3069, %v3069
    %v3074 = vpack.c.bf16 %v3070, %v3070
    %v3075 = vpack.c.bf16 %v3071, %v3071
    %v3076 = vld [vmem:[#allocation7] sm:$0xff]
    %v3077 = vld [vmem:[#allocation7 + $0x8] sm:$0xff]
    %v3078 = vld [vmem:[#allocation7 + $0x10] sm:$0xff]
    %v3079 = vld [vmem:[#allocation7 + $0x18] sm:$0xff]
    %v3080 = vld [vmem:[#allocation7 + $0x20] sm:$0xff]
    %v3081 = vld [vmem:[#allocation7 + $0x28] sm:$0xff]
    %v3082 = vld [vmem:[#allocation7 + $0x30] sm:$0xff]
    %v3083 = vld [vmem:[#allocation7 + $0x38] sm:$0xff]
    %v3084 = vld [vmem:[#allocation7 + $0x40] sm:$0xff]
    %v3085 = vld [vmem:[#allocation7 + $0x48] sm:$0xff]
    %v3086 = vld [vmem:[#allocation7 + $0x50] sm:$0xff]
    %v3087 = vld [vmem:[#allocation7 + $0x58] sm:$0xff]
    %v3088 = vld [vmem:[#allocation7 + $0x60] sm:$0xff]
    %v3089 = vld [vmem:[#allocation7 + $0x68] sm:$0xff]
    %v3090 = vld [vmem:[#allocation7 + $0x70] sm:$0xff]
    %v3091 = vld [vmem:[#allocation7 + $0x78] sm:$0xff]
    %v3092 = vld [vmem:[#allocation7 + $0x80] sm:$0xff]
    %v3093 = vld [vmem:[#allocation7 + $0x88] sm:$0xff]
    %v3094 = vld [vmem:[#allocation7 + $0x90] sm:$0xff]
    %v3095 = vld [vmem:[#allocation7 + $0x98] sm:$0xff]
    %v3096 = vld [vmem:[#allocation7 + $0xa0] sm:$0xff]
    %v3097 = vld [vmem:[#allocation7 + $0xa8] sm:$0xff]
    %v3098 = vld [vmem:[#allocation7 + $0xb0] sm:$0xff]
    %v3099 = vld [vmem:[#allocation7 + $0xb8] sm:$0xff]
    %v3100 = vld [vmem:[#allocation7 + $0xc0] sm:$0xff]
    %v3101 = vld [vmem:[#allocation7 + $0xc8] sm:$0xff]
    %v3102 = vld [vmem:[#allocation7 + $0xd0] sm:$0xff]
    %v3103 = vld [vmem:[#allocation7 + $0xd8] sm:$0xff]
    %v3104 = vld [vmem:[#allocation7 + $0xe0] sm:$0xff]
    %v3105 = vld [vmem:[#allocation7 + $0xe8] sm:$0xff]
    %v3106 = vld [vmem:[#allocation7 + $0xf0] sm:$0xff]
    %v3107 = vld [vmem:[#allocation7 + $0xf8] sm:$0xff]
    %v3108 = vld [vmem:[#allocation7 + $0x100] sm:$0xff]
    %v3109 = vld [vmem:[#allocation7 + $0x108] sm:$0xff]
    %v3110 = vld [vmem:[#allocation7 + $0x110] sm:$0xff]
    %v3111 = vld [vmem:[#allocation7 + $0x118] sm:$0xff]
    %v3112 = vld [vmem:[#allocation7 + $0x120] sm:$0xff]
    %v3113 = vld [vmem:[#allocation7 + $0x128] sm:$0xff]
    %v3114 = vld [vmem:[#allocation7 + $0x130] sm:$0xff]
    %v3115 = vld [vmem:[#allocation7 + $0x138] sm:$0xff]
    %v3116 = vld [vmem:[#allocation7 + $0x140] sm:$0xff]
    %v3117 = vld [vmem:[#allocation7 + $0x148] sm:$0xff]
    %v3118 = vld [vmem:[#allocation7 + $0x150] sm:$0xff]
    %v3119 = vld [vmem:[#allocation7 + $0x158] sm:$0xff]
    %v3120 = vld [vmem:[#allocation7 + $0x160] sm:$0xff]
    %v3121 = vld [vmem:[#allocation7 + $0x168] sm:$0xff]
    %v3122 = vld [vmem:[#allocation7 + $0x170] sm:$0xff]
    %v3123 = vld [vmem:[#allocation7 + $0x178] sm:$0xff]
    %v3124 = vld [vmem:[#allocation7 + $0x180] sm:$0xff]
    %v3125 = vld [vmem:[#allocation7 + $0x188] sm:$0xff]
    %v3126 = vld [vmem:[#allocation7 + $0x190] sm:$0xff]
    %v3127 = vld [vmem:[#allocation7 + $0x198] sm:$0xff]
    %v3128 = vld [vmem:[#allocation7 + $0x1a0] sm:$0xff]
    %v3129 = vld [vmem:[#allocation7 + $0x1a8] sm:$0xff]
    %v3130 = vld [vmem:[#allocation7 + $0x1b0] sm:$0xff]
    %v3131 = vld [vmem:[#allocation7 + $0x1b8] sm:$0xff]
    %v3132 = vld [vmem:[#allocation7 + $0x1c0] sm:$0xff]
    %v3133 = vld [vmem:[#allocation7 + $0x1c8] sm:$0xff]
    %v3134 = vld [vmem:[#allocation7 + $0x1d0] sm:$0xff]
    %v3135 = vld [vmem:[#allocation7 + $0x1d8] sm:$0xff]
    %v3136 = vld [vmem:[#allocation7 + $0x1e0] sm:$0xff]
    %v3137 = vld [vmem:[#allocation7 + $0x1e8] sm:$0xff]
    %v3138 = vld [vmem:[#allocation7 + $0x1f0] sm:$0xff]
    %v3139 = vld [vmem:[#allocation7 + $0x1f8] sm:$0xff]
    %v3204 = vunpack.c.l.b16 %v3076
    %v3205 = vunpack.c.h.b16 %v3076
    %v3206 = vunpack.c.l.b16 %v3077
    %v3207 = vunpack.c.h.b16 %v3077
    %v3208 = vunpack.c.l.b16 %v3078
    %v3209 = vunpack.c.h.b16 %v3078
    %v3210 = vunpack.c.l.b16 %v3079
    %v3211 = vunpack.c.h.b16 %v3079
    %v3212 = vunpack.c.l.b16 %v3080
    %v3213 = vunpack.c.h.b16 %v3080
    %v3214 = vunpack.c.l.b16 %v3081
    %v3215 = vunpack.c.h.b16 %v3081
    %v3216 = vunpack.c.l.b16 %v3082
    %v3217 = vunpack.c.h.b16 %v3082
    %v3218 = vunpack.c.l.b16 %v3083
    %v3219 = vunpack.c.h.b16 %v3083
    %v3220 = vunpack.c.l.b16 %v3084
    %v3221 = vunpack.c.h.b16 %v3084
    %v3222 = vunpack.c.l.b16 %v3085
    %v3223 = vunpack.c.h.b16 %v3085
    %v3224 = vunpack.c.l.b16 %v3086
    %v3225 = vunpack.c.h.b16 %v3086
    %v3226 = vunpack.c.l.b16 %v3087
    %v3227 = vunpack.c.h.b16 %v3087
    %v3228 = vunpack.c.l.b16 %v3088
    %v3229 = vunpack.c.h.b16 %v3088
    %v3230 = vunpack.c.l.b16 %v3089
    %v3231 = vunpack.c.h.b16 %v3089
    %v3232 = vunpack.c.l.b16 %v3090
    %v3233 = vunpack.c.h.b16 %v3090
    %v3234 = vunpack.c.l.b16 %v3091
    %v3235 = vunpack.c.h.b16 %v3091
    %v3236 = vunpack.c.l.b16 %v3092
    %v3237 = vunpack.c.h.b16 %v3092
    %v3238 = vunpack.c.l.b16 %v3093
    %v3239 = vunpack.c.h.b16 %v3093
    %v3240 = vunpack.c.l.b16 %v3094
    %v3241 = vunpack.c.h.b16 %v3094
    %v3242 = vunpack.c.l.b16 %v3095
    %v3243 = vunpack.c.h.b16 %v3095
    %v3244 = vunpack.c.l.b16 %v3096
    %v3245 = vunpack.c.h.b16 %v3096
    %v3246 = vunpack.c.l.b16 %v3097
    %v3247 = vunpack.c.h.b16 %v3097
    %v3248 = vunpack.c.l.b16 %v3098
    %v3249 = vunpack.c.h.b16 %v3098
    %v3250 = vunpack.c.l.b16 %v3099
    %v3251 = vunpack.c.h.b16 %v3099
    %v3252 = vunpack.c.l.b16 %v3100
    %v3253 = vunpack.c.h.b16 %v3100
    %v3254 = vunpack.c.l.b16 %v3101
    %v3255 = vunpack.c.h.b16 %v3101
    %v3256 = vunpack.c.l.b16 %v3102
    %v3257 = vunpack.c.h.b16 %v3102
    %v3258 = vunpack.c.l.b16 %v3103
    %v3259 = vunpack.c.h.b16 %v3103
    %v3260 = vunpack.c.l.b16 %v3104
    %v3261 = vunpack.c.h.b16 %v3104
    %v3262 = vunpack.c.l.b16 %v3105
    %v3263 = vunpack.c.h.b16 %v3105
    %v3264 = vunpack.c.l.b16 %v3106
    %v3265 = vunpack.c.h.b16 %v3106
    %v3266 = vunpack.c.l.b16 %v3107
    %v3267 = vunpack.c.h.b16 %v3107
    %v3268 = vunpack.c.l.b16 %v3108
    %v3269 = vunpack.c.h.b16 %v3108
    %v3270 = vunpack.c.l.b16 %v3109
    %v3271 = vunpack.c.h.b16 %v3109
    %v3272 = vunpack.c.l.b16 %v3110
    %v3273 = vunpack.c.h.b16 %v3110
    %v3274 = vunpack.c.l.b16 %v3111
    %v3275 = vunpack.c.h.b16 %v3111
    %v3276 = vunpack.c.l.b16 %v3112
    %v3277 = vunpack.c.h.b16 %v3112
    %v3278 = vunpack.c.l.b16 %v3113
    %v3279 = vunpack.c.h.b16 %v3113
    %v3280 = vunpack.c.l.b16 %v3114
    %v3281 = vunpack.c.h.b16 %v3114
    %v3282 = vunpack.c.l.b16 %v3115
    %v3283 = vunpack.c.h.b16 %v3115
    %v3284 = vunpack.c.l.b16 %v3116
    %v3285 = vunpack.c.h.b16 %v3116
    %v3286 = vunpack.c.l.b16 %v3117
    %v3287 = vunpack.c.h.b16 %v3117
    %v3288 = vunpack.c.l.b16 %v3118
    %v3289 = vunpack.c.h.b16 %v3118
    %v3290 = vunpack.c.l.b16 %v3119
    %v3291 = vunpack.c.h.b16 %v3119
    %v3292 = vunpack.c.l.b16 %v3120
    %v3293 = vunpack.c.h.b16 %v3120
    %v3294 = vunpack.c.l.b16 %v3121
    %v3295 = vunpack.c.h.b16 %v3121
    %v3296 = vunpack.c.l.b16 %v3122
    %v3297 = vunpack.c.h.b16 %v3122
    %v3298 = vunpack.c.l.b16 %v3123
    %v3299 = vunpack.c.h.b16 %v3123
    %v3300 = vunpack.c.l.b16 %v3124
    %v3301 = vunpack.c.h.b16 %v3124
    %v3302 = vunpack.c.l.b16 %v3125
    %v3303 = vunpack.c.h.b16 %v3125
    %v3304 = vunpack.c.l.b16 %v3126
    %v3305 = vunpack.c.h.b16 %v3126
    %v3306 = vunpack.c.l.b16 %v3127
    %v3307 = vunpack.c.h.b16 %v3127
    %v3308 = vunpack.c.l.b16 %v3128
    %v3309 = vunpack.c.h.b16 %v3128
    %v3310 = vunpack.c.l.b16 %v3129
    %v3311 = vunpack.c.h.b16 %v3129
    %v3312 = vunpack.c.l.b16 %v3130
    %v3313 = vunpack.c.h.b16 %v3130
    %v3314 = vunpack.c.l.b16 %v3131
    %v3315 = vunpack.c.h.b16 %v3131
    %v3316 = vunpack.c.l.b16 %v3132
    %v3317 = vunpack.c.h.b16 %v3132
    %v3318 = vunpack.c.l.b16 %v3133
    %v3319 = vunpack.c.h.b16 %v3133
    %v3320 = vunpack.c.l.b16 %v3134
    %v3321 = vunpack.c.h.b16 %v3134
    %v3322 = vunpack.c.l.b16 %v3135
    %v3323 = vunpack.c.h.b16 %v3135
    %v3324 = vunpack.c.l.b16 %v3136
    %v3325 = vunpack.c.h.b16 %v3136
    %v3326 = vunpack.c.l.b16 %v3137
    %v3327 = vunpack.c.h.b16 %v3137
    %v3328 = vunpack.c.l.b16 %v3138
    %v3329 = vunpack.c.h.b16 %v3138
    %v3330 = vunpack.c.l.b16 %v3139
    %v3331 = vunpack.c.h.b16 %v3139
    %v3332 = vpack.c.b16 %v3206, %v3204
    %v3333 = vpack.c.b16 %v3207, %v3205
    %v3334 = vpack.c.b16 %v3210, %v3208
    %v3335 = vpack.c.b16 %v3211, %v3209
    %v3336 = vpack.c.b16 %v3214, %v3212
    %v3337 = vpack.c.b16 %v3215, %v3213
    %v3338 = vpack.c.b16 %v3218, %v3216
    %v3339 = vpack.c.b16 %v3219, %v3217
    %v3340 = vpack.c.b16 %v3222, %v3220
    %v3341 = vpack.c.b16 %v3223, %v3221
    %v3342 = vpack.c.b16 %v3226, %v3224
    %v3343 = vpack.c.b16 %v3227, %v3225
    %v3344 = vpack.c.b16 %v3230, %v3228
    %v3345 = vpack.c.b16 %v3231, %v3229
    %v3346 = vpack.c.b16 %v3234, %v3232
    %v3347 = vpack.c.b16 %v3235, %v3233
    %v3348 = vpack.c.b16 %v3238, %v3236
    %v3349 = vpack.c.b16 %v3239, %v3237
    %v3350 = vpack.c.b16 %v3242, %v3240
    %v3351 = vpack.c.b16 %v3243, %v3241
    %v3352 = vpack.c.b16 %v3246, %v3244
    %v3353 = vpack.c.b16 %v3247, %v3245
    %v3354 = vpack.c.b16 %v3250, %v3248
    %v3355 = vpack.c.b16 %v3251, %v3249
    %v3356 = vpack.c.b16 %v3254, %v3252
    %v3357 = vpack.c.b16 %v3255, %v3253
    %v3358 = vpack.c.b16 %v3258, %v3256
    %v3359 = vpack.c.b16 %v3259, %v3257
    %v3360 = vpack.c.b16 %v3262, %v3260
    %v3361 = vpack.c.b16 %v3263, %v3261
    %v3362 = vpack.c.b16 %v3266, %v3264
    %v3363 = vpack.c.b16 %v3267, %v3265
    %v3364 = vpack.c.b16 %v3270, %v3268
    %v3365 = vpack.c.b16 %v3271, %v3269
    %v3366 = vpack.c.b16 %v3274, %v3272
    %v3367 = vpack.c.b16 %v3275, %v3273
    %v3368 = vpack.c.b16 %v3278, %v3276
    %v3369 = vpack.c.b16 %v3279, %v3277
    %v3370 = vpack.c.b16 %v3282, %v3280
    %v3371 = vpack.c.b16 %v3283, %v3281
    %v3372 = vpack.c.b16 %v3286, %v3284
    %v3373 = vpack.c.b16 %v3287, %v3285
    %v3374 = vpack.c.b16 %v3290, %v3288
    %v3375 = vpack.c.b16 %v3291, %v3289
    %v3376 = vpack.c.b16 %v3294, %v3292
    %v3377 = vpack.c.b16 %v3295, %v3293
    %v3378 = vpack.c.b16 %v3298, %v3296
    %v3379 = vpack.c.b16 %v3299, %v3297
    %v3380 = vpack.c.b16 %v3302, %v3300
    %v3381 = vpack.c.b16 %v3303, %v3301
    %v3382 = vpack.c.b16 %v3306, %v3304
    %v3383 = vpack.c.b16 %v3307, %v3305
    %v3384 = vpack.c.b16 %v3310, %v3308
    %v3385 = vpack.c.b16 %v3311, %v3309
    %v3386 = vpack.c.b16 %v3314, %v3312
    %v3387 = vpack.c.b16 %v3315, %v3313
    %v3388 = vpack.c.b16 %v3318, %v3316
    %v3389 = vpack.c.b16 %v3319, %v3317
    %v3390 = vpack.c.b16 %v3322, %v3320
    %v3391 = vpack.c.b16 %v3323, %v3321
    %v3392 = vpack.c.b16 %v3326, %v3324
    %v3393 = vpack.c.b16 %v3327, %v3325
    %v3394 = vpack.c.b16 %v3330, %v3328
    %v3395 = vpack.c.b16 %v3331, %v3329
    %3460 = vmatprep.subr.bf16.mxu0 %v3333
    %3461 = vmatpush1.bf16.msra.mxu0 %v3332
    %3462 = vmatprep.subr.bf16.mxu0 %v3335
    %3463 = vmatpush1.bf16.msra.mxu0 %v3334
    %3464 = vmatprep.subr.bf16.mxu0 %v3337
    %3465 = vmatpush1.bf16.msra.mxu0 %v3336
    %3466 = vmatprep.subr.bf16.mxu0 %v3339
    %3467 = vmatpush1.bf16.msra.mxu0 %v3338
    %3468 = vmatprep.subr.bf16.mxu0 %v3341
    %3469 = vmatpush1.bf16.msra.mxu0 %v3340
    %3470 = vmatprep.subr.bf16.mxu0 %v3343
    %3471 = vmatpush1.bf16.msra.mxu0 %v3342
    %3472 = vmatprep.subr.bf16.mxu0 %v3345
    %3473 = vmatpush1.bf16.msra.mxu0 %v3344
    %3474 = vmatprep.subr.bf16.mxu0 %v3347
    %3475 = vmatpush1.bf16.msra.mxu0 %v3346
    %3476 = vmatprep.subr.bf16.mxu0 %v3349
    %3477 = vmatpush1.bf16.msra.mxu0 %v3348
    %3478 = vmatprep.subr.bf16.mxu0 %v3351
    %3479 = vmatpush1.bf16.msra.mxu0 %v3350
    %3480 = vmatprep.subr.bf16.mxu0 %v3353
    %3481 = vmatpush1.bf16.msra.mxu0 %v3352
    %3482 = vmatprep.subr.bf16.mxu0 %v3355
    %3483 = vmatpush1.bf16.msra.mxu0 %v3354
    %3484 = vmatprep.subr.bf16.mxu0 %v3357
    %3485 = vmatpush1.bf16.msra.mxu0 %v3356
    %3486 = vmatprep.subr.bf16.mxu0 %v3359
    %3487 = vmatpush1.bf16.msra.mxu0 %v3358
    %3488 = vmatprep.subr.bf16.mxu0 %v3361
    %3489 = vmatpush1.bf16.msra.mxu0 %v3360
    %3490 = vmatprep.subr.bf16.mxu0 %v3363
    %3491 = vmatpush1.bf16.msra.mxu0 %v3362
    %3492 = vmatprep.mubr.bf16.mxu0 %v3073
    %3493 = vmatmul.mubr.bf16.gmra.mrb[0].mxu0 %v3072
    %v3494 = vpop.f32.mrb[0].mxu0
    %v3495 = vadd.f32 0.0, %v3494
    %v3496 = vpop.f32.mrb[0].mxu0
    %v3497 = vadd.f32 0.0, %v3496
    %v3498 = vpop.f32.mrb[0].mxu0
    %v3499 = vpop.f32.mrb[0].mxu0
    %3500 = vdwg.mxu0
    %3501 = vmatprep.subr.bf16.mxu0 %v3365
    %3502 = vmatpush1.bf16.msra.mxu0 %v3364
    %3503 = vmatprep.subr.bf16.mxu0 %v3367
    %3504 = vmatpush1.bf16.msra.mxu0 %v3366
    %3505 = vmatprep.subr.bf16.mxu0 %v3369
    %3506 = vmatpush1.bf16.msra.mxu0 %v3368
    %3507 = vmatprep.subr.bf16.mxu0 %v3371
    %3508 = vmatpush1.bf16.msra.mxu0 %v3370
    %3509 = vmatprep.subr.bf16.mxu0 %v3373
    %3510 = vmatpush1.bf16.msra.mxu0 %v3372
    %3511 = vmatprep.subr.bf16.mxu0 %v3375
    %3512 = vmatpush1.bf16.msra.mxu0 %v3374
    %3513 = vmatprep.subr.bf16.mxu0 %v3377
    %3514 = vmatpush1.bf16.msra.mxu0 %v3376
    %3515 = vmatprep.subr.bf16.mxu0 %v3379
    %3516 = vmatpush1.bf16.msra.mxu0 %v3378
    %3517 = vmatprep.subr.bf16.mxu0 %v3381
    %3518 = vmatpush1.bf16.msra.mxu0 %v3380
    %3519 = vmatprep.subr.bf16.mxu0 %v3383
    %3520 = vmatpush1.bf16.msra.mxu0 %v3382
    %3521 = vmatprep.subr.bf16.mxu0 %v3385
    %3522 = vmatpush1.bf16.msra.mxu0 %v3384
    %3523 = vmatprep.subr.bf16.mxu0 %v3387
    %3524 = vmatpush1.bf16.msra.mxu0 %v3386
    %3525 = vmatprep.subr.bf16.mxu0 %v3389
    %3526 = vmatpush1.bf16.msra.mxu0 %v3388
    %3527 = vmatprep.subr.bf16.mxu0 %v3391
    %3528 = vmatpush1.bf16.msra.mxu0 %v3390
    %3529 = vmatprep.subr.bf16.mxu0 %v3393
    %3530 = vmatpush1.bf16.msra.mxu0 %v3392
    %3531 = vmatprep.subr.bf16.mxu0 %v3395
    %3532 = vmatpush1.bf16.msra.mxu0 %v3394
    %3533 = vmatprep.mubr.bf16.mxu0 %v3075
    %3534 = vmatmul.mubr.bf16.gmra.mrb[0].mxu0 %v3074
    %v3535 = vpop.f32.mrb[0].mxu0
    %v3536 = vadd.f32 %v3495, %v3535
    %v3537 = vpop.f32.mrb[0].mxu0
    %v3538 = vadd.f32 %v3497, %v3537
    %v3539 = vpop.f32.mrb[0].mxu0
    %v3540 = vpop.f32.mrb[0].mxu0
    %3541 = vdwg.mxu0
    %s3542 = scalar_lea.vmem [#allocation9], 4
    %v3543 = vld [vmem:[%s3542] ss:$8 sm:$0x3]
    %s3544 = scalar_lea.vmem [#allocation9], 5
    %v3545 = vld [vmem:[%s3544] ss:$8 sm:$0x3]
    %v3546 = vrot.slane %v3536, 4
    %v3547 = vadd.f32 %v3536, %v3546
    %v3548 = vrot.slane %v3547, 2
    %v3549 = vadd.f32 %v3547, %v3548
    %v3550 = vrot.slane %v3549, 1
    %v3551 = vadd.f32 %v3549, %v3550
    %v3552 = vrot.slane %v3538, 4
    %v3553 = vadd.f32 %v3538, %v3552
    %v3554 = vrot.slane %v3553, 2
    %v3555 = vadd.f32 %v3553, %v3554
    %v3556 = vrot.slane %v3555, 1
    %v3557 = vadd.f32 %v3555, %v3556
    %v3558 = vmul.f32 %v3551, 0.125
    %v3559 = vmul.f32 %v3557, 0.125
    %v3560 = vsub.f32 %v3536, %v3558
    %v3561 = vsub.f32 %v3538, %v3559
    %v3562 = vmul.f32 %v3560, %v3560
    %v3563 = vmul.f32 %v3561, %v3561
    %v3564 = vrot.slane %v3562, 4
    %v3565 = vadd.f32 %v3562, %v3564
    %v3566 = vrot.slane %v3565, 2
    %v3567 = vadd.f32 %v3565, %v3566
    %v3568 = vrot.slane %v3567, 1
    %v3569 = vadd.f32 %v3567, %v3568
    %v3570 = vrot.slane %v3563, 4
    %v3571 = vadd.f32 %v3563, %v3570
    %v3572 = vrot.slane %v3571, 2
    %v3573 = vadd.f32 %v3571, %v3572
    %v3574 = vrot.slane %v3573, 1
    %v3575 = vadd.f32 %v3573, %v3574
    %v3576 = vmul.f32 %v3569, 0.125
    %v3577 = vmul.f32 %v3575, 0.125
    %v3578 = vadd.f32 %v3576, 1e-05
    %v3579 = vadd.f32 %v3577, 1e-05
    %v3580 = vrsqrt.pop %v3578
    %v3581 = vrsqrt.pop %v3579
    %v3584 = vcombine.low %v3580, %v3581
    %v3586 = vunpack.c.l.s4 1966171168
    %v3587 = vunpack.c.0.s8 %v3586
    %v3588 = vlaneseq
    %v3589 = vshrl.u32 %v3588, 7
    %v3590 = vsub.s32 %v3587, %v3589
    %v3591 = vrot.slane %v3584, %v3590
    %v3593 = vunpack.c.l.s4 1966171168
    %v3594 = vunpack.c.0.s8 %v3593
    %v3595 = vlaneseq
    %v3596 = vshrl.u32 %v3595, 7
    %v3597 = vsub.s32 %v3594, %v3596
    %v3598 = vrot.slane %v3591, %v3597
    %v3600 = vmul.f32 %v3543, %v3598
    %v3602 = vlaneseq
    %v3603 = vshrl.u32 %v3602, 7
    %v3604 = vsub.s32 0, %v3603
    %v3605 = vrot.slane %v3600, %v3604
    %v3606 = vlaneseq
    %v3607 = vshrl.u32 %v3606, 7
    %v3608 = vsub.s32 1, %v3607
    %v3609 = vrot.slane %v3600, %v3608
    %v3612 = vmul.f32 %v3560, %v3605
    %v3613 = vmul.f32 %v3561, %v3609
    %v3615 = vlaneseq
    %v3616 = vshrl.u32 %v3615, 7
    %v3617 = vsub.s32 0, %v3616
    %v3618 = vrot.slane %v3545, %v3617
    %v3619 = vlaneseq
    %v3620 = vshrl.u32 %v3619, 7
    %v3621 = vsub.s32 1, %v3620
    %v3622 = vrot.slane %v3545, %v3621
    %v3625 = vadd.f32 %v3612, %v3618
    %v3626 = vadd.f32 %v3613, %v3622
    %v3627 = vmax.f32 %v3625, 0.0
    %v3628 = vmax.f32 %v3626, 0.0
    %v3629 = vpack.c.bf16 %v3627, %v3627
    %v3630 = vpack.c.bf16 %v3628, %v3628
    %v3631 = vld [vmem:[%s5] sm:$0xf]
    %v3632 = vld [vmem:[%s5 + $0x4] sm:$0xf]
    %v3633 = vld [vmem:[%s5 + $0x8] sm:$0xf]
    %v3634 = vld [vmem:[%s5 + $0xc] sm:$0xf]
    %v3635 = vld [vmem:[%s5 + $0x10] sm:$0xf]
    %v3636 = vld [vmem:[%s5 + $0x14] sm:$0xf]
    %v3637 = vld [vmem:[%s5 + $0x18] sm:$0xf]
    %v3638 = vld [vmem:[%s5 + $0x1c] sm:$0xf]
    %v3639 = vld [vmem:[%s5 + $0x20] sm:$0xf]
    %v3640 = vld [vmem:[%s5 + $0x24] sm:$0xf]
    %v3641 = vld [vmem:[%s5 + $0x28] sm:$0xf]
    %v3642 = vld [vmem:[%s5 + $0x2c] sm:$0xf]
    %v3643 = vld [vmem:[%s5 + $0x30] sm:$0xf]
    %v3644 = vld [vmem:[%s5 + $0x34] sm:$0xf]
    %v3645 = vld [vmem:[%s5 + $0x38] sm:$0xf]
    %v3646 = vld [vmem:[%s5 + $0x3c] sm:$0xf]
    %v3647 = vld [vmem:[%s5 + $0x40] sm:$0xf]
    %v3648 = vld [vmem:[%s5 + $0x44] sm:$0xf]
    %v3649 = vld [vmem:[%s5 + $0x48] sm:$0xf]
    %v3650 = vld [vmem:[%s5 + $0x4c] sm:$0xf]
    %v3651 = vld [vmem:[%s5 + $0x50] sm:$0xf]
    %v3652 = vld [vmem:[%s5 + $0x54] sm:$0xf]
    %v3653 = vld [vmem:[%s5 + $0x58] sm:$0xf]
    %v3654 = vld [vmem:[%s5 + $0x5c] sm:$0xf]
    %v3655 = vld [vmem:[%s5 + $0x60] sm:$0xf]
    %v3656 = vld [vmem:[%s5 + $0x64] sm:$0xf]
    %v3657 = vld [vmem:[%s5 + $0x68] sm:$0xf]
    %v3658 = vld [vmem:[%s5 + $0x6c] sm:$0xf]
    %v3659 = vld [vmem:[%s5 + $0x70] sm:$0xf]
    %v3660 = vld [vmem:[%s5 + $0x74] sm:$0xf]
    %v3661 = vld [vmem:[%s5 + $0x78] sm:$0xf]
    %v3662 = vld [vmem:[%s5 + $0x7c] sm:$0xf]
    %v3695 = vunpack.c.l.b16 %v3631
    %v3696 = vunpack.c.l.b16 %v3632
    %v3697 = vunpack.c.l.b16 %v3633
    %v3698 = vunpack.c.l.b16 %v3634
    %v3699 = vunpack.c.l.b16 %v3635
    %v3700 = vunpack.c.l.b16 %v3636
    %v3701 = vunpack.c.l.b16 %v3637
    %v3702 = vunpack.c.l.b16 %v3638
    %v3703 = vunpack.c.l.b16 %v3639
    %v3704 = vunpack.c.l.b16 %v3640
    %v3705 = vunpack.c.l.b16 %v3641
    %v3706 = vunpack.c.l.b16 %v3642
    %v3707 = vunpack.c.l.b16 %v3643
    %v3708 = vunpack.c.l.b16 %v3644
    %v3709 = vunpack.c.l.b16 %v3645
    %v3710 = vunpack.c.l.b16 %v3646
    %v3711 = vunpack.c.l.b16 %v3647
    %v3712 = vunpack.c.l.b16 %v3648
    %v3713 = vunpack.c.l.b16 %v3649
    %v3714 = vunpack.c.l.b16 %v3650
    %v3715 = vunpack.c.l.b16 %v3651
    %v3716 = vunpack.c.l.b16 %v3652
    %v3717 = vunpack.c.l.b16 %v3653
    %v3718 = vunpack.c.l.b16 %v3654
    %v3719 = vunpack.c.l.b16 %v3655
    %v3720 = vunpack.c.l.b16 %v3656
    %v3721 = vunpack.c.l.b16 %v3657
    %v3722 = vunpack.c.l.b16 %v3658
    %v3723 = vunpack.c.l.b16 %v3659
    %v3724 = vunpack.c.l.b16 %v3660
    %v3725 = vunpack.c.l.b16 %v3661
    %v3726 = vunpack.c.l.b16 %v3662
    %v3727 = vpack.c.b16 %v3696, %v3695
    %v3728 = vpack.c.b16 %v3698, %v3697
    %v3729 = vpack.c.b16 %v3700, %v3699
    %v3730 = vpack.c.b16 %v3702, %v3701
    %v3731 = vpack.c.b16 %v3704, %v3703
    %v3732 = vpack.c.b16 %v3706, %v3705
    %v3733 = vpack.c.b16 %v3708, %v3707
    %v3734 = vpack.c.b16 %v3710, %v3709
    %v3735 = vpack.c.b16 %v3712, %v3711
    %v3736 = vpack.c.b16 %v3714, %v3713
    %v3737 = vpack.c.b16 %v3716, %v3715
    %v3738 = vpack.c.b16 %v3718, %v3717
    %v3739 = vpack.c.b16 %v3720, %v3719
    %v3740 = vpack.c.b16 %v3722, %v3721
    %v3741 = vpack.c.b16 %v3724, %v3723
    %v3742 = vpack.c.b16 %v3726, %v3725
    %3759 = vmatprep.subr.bf16.mxu0 0
    %3760 = vmatpush1.bf16.msra.mxu0 %v3727
    %3761 = vmatprep.subr.bf16.mxu0 0
    %3762 = vmatpush1.bf16.msra.mxu0 %v3728
    %3763 = vmatprep.subr.bf16.mxu0 0
    %3764 = vmatpush1.bf16.msra.mxu0 %v3729
    %3765 = vmatprep.subr.bf16.mxu0 0
    %3766 = vmatpush1.bf16.msra.mxu0 %v3730
    %3767 = vmatprep.subr.bf16.mxu0 0
    %3768 = vmatpush1.bf16.msra.mxu0 %v3731
    %3769 = vmatprep.subr.bf16.mxu0 0
    %3770 = vmatpush1.bf16.msra.mxu0 %v3732
    %3771 = vmatprep.subr.bf16.mxu0 0
    %3772 = vmatpush1.bf16.msra.mxu0 %v3733
    %3773 = vmatprep.subr.bf16.mxu0 0
    %3774 = vmatpush1.bf16.msra.mxu0 %v3734
    %3775 = vmatprep.subr.bf16.mxu0 0
    %3776 = vmatpush1.bf16.msra.mxu0 %v3735
    %3777 = vmatprep.subr.bf16.mxu0 0
    %3778 = vmatpush1.bf16.msra.mxu0 %v3736
    %3779 = vmatprep.subr.bf16.mxu0 0
    %3780 = vmatpush1.bf16.msra.mxu0 %v3737
    %3781 = vmatprep.subr.bf16.mxu0 0
    %3782 = vmatpush1.bf16.msra.mxu0 %v3738
    %3783 = vmatprep.subr.bf16.mxu0 0
    %3784 = vmatpush1.bf16.msra.mxu0 %v3739
    %3785 = vmatprep.subr.bf16.mxu0 0
    %3786 = vmatpush1.bf16.msra.mxu0 %v3740
    %3787 = vmatprep.subr.bf16.mxu0 0
    %3788 = vmatpush1.bf16.msra.mxu0 %v3741
    %3789 = vmatprep.subr.bf16.mxu0 0
    %3790 = vmatpush1.bf16.msra.mxu0 %v3742
    %3791 = vmatprep.mubr.bf16.mxu0 %v3630
    %3792 = vmatmul.mubr.bf16.gmra.mrb[0].mxu0 %v3629
    %v3793 = vpop.f32.mrb[0].mxu0
    %v3794 = vadd.f32 0.0, %v3793
    %v3795 = vpop.f32.mrb[0].mxu0
    %v3796 = vpop.f32.mrb[0].mxu0
    %v3797 = vpop.f32.mrb[0].mxu0
    %3798 = vdwg.mxu0
    %v3799 = vld [vmem:[#allocation9 + $0x6] ss:$0 sm:$0xff]
    %v3800 = vld [vmem:[#allocation9 + $0x7] ss:$0 sm:$0xff]
    %v3801 = vrot.slane %v3794, 4
    %v3802 = vadd.f32 %v3794, %v3801
    %v3803 = vrot.slane %v3802, 2
    %v3804 = vadd.f32 %v3802, %v3803
    %v3805 = vrot.slane %v3804, 1
    %v3806 = vadd.f32 %v3804, %v3805
    %v3807 = vmul.f32 %v3806, 0.125
    %v3808 = vsub.f32 %v3794, %v3807
    %v3809 = vmul.f32 %v3808, %v3808
    %v3810 = vrot.slane %v3809, 4
    %v3811 = vadd.f32 %v3809, %v3810
    %v3812 = vrot.slane %v3811, 2
    %v3813 = vadd.f32 %v3811, %v3812
    %v3814 = vrot.slane %v3813, 1
    %v3815 = vadd.f32 %v3813, %v3814
    %v3816 = vmul.f32 %v3815, 0.125
    %v3817 = vadd.f32 %v3816, 1e-05
    %v3818 = vrsqrt.pop %v3817
    %v3819 = vmul.f32 %v3799, %v3818
    %v3820 = vmul.f32 %v3808, %v3819
    %v3821 = vadd.f32 %v3820, %v3800
    %v3822 = vmax.f32 %v3821, 0.0
    %v3823 = vpack.c.bf16 %v3822, %v3822
    %v3824 = vld [vmem:[%s6] sm:$0xf]
    %v3825 = vld [vmem:[%s6 + $0x4] sm:$0xf]
    %v3826 = vld [vmem:[%s6 + $0x8] sm:$0xf]
    %v3827 = vld [vmem:[%s6 + $0xc] sm:$0xf]
    %v3828 = vld [vmem:[%s6 + $0x10] sm:$0xf]
    %v3829 = vld [vmem:[%s6 + $0x14] sm:$0xf]
    %v3830 = vld [vmem:[%s6 + $0x18] sm:$0xf]
    %v3831 = vld [vmem:[%s6 + $0x1c] sm:$0xf]
    %v3832 = vld [vmem:[%s6 + $0x20] sm:$0xf]
    %v3833 = vld [vmem:[%s6 + $0x24] sm:$0xf]
    %v3834 = vld [vmem:[%s6 + $0x28] sm:$0xf]
    %v3835 = vld [vmem:[%s6 + $0x2c] sm:$0xf]
    %v3836 = vld [vmem:[%s6 + $0x30] sm:$0xf]
    %v3837 = vld [vmem:[%s6 + $0x34] sm:$0xf]
    %v3838 = vld [vmem:[%s6 + $0x38] sm:$0xf]
    %v3839 = vld [vmem:[%s6 + $0x3c] sm:$0xf]
    %v3856 = vunpack.c.l.b16 %v3824
    %v3857 = vunpack.c.l.b16 %v3825
    %v3858 = vunpack.c.l.b16 %v3826
    %v3859 = vunpack.c.l.b16 %v3827
    %v3860 = vunpack.c.l.b16 %v3828
    %v3861 = vunpack.c.l.b16 %v3829
    %v3862 = vunpack.c.l.b16 %v3830
    %v3863 = vunpack.c.l.b16 %v3831
    %v3864 = vunpack.c.l.b16 %v3832
    %v3865 = vunpack.c.l.b16 %v3833
    %v3866 = vunpack.c.l.b16 %v3834
    %v3867 = vunpack.c.l.b16 %v3835
    %v3868 = vunpack.c.l.b16 %v3836
    %v3869 = vunpack.c.l.b16 %v3837
    %v3870 = vunpack.c.l.b16 %v3838
    %v3871 = vunpack.c.l.b16 %v3839
    %v3872 = vpack.c.b16 %v3857, %v3856
    %v3873 = vpack.c.b16 %v3859, %v3858
    %v3874 = vpack.c.b16 %v3861, %v3860
    %v3875 = vpack.c.b16 %v3863, %v3862
    %v3876 = vpack.c.b16 %v3865, %v3864
    %v3877 = vpack.c.b16 %v3867, %v3866
    %v3878 = vpack.c.b16 %v3869, %v3868
    %v3879 = vpack.c.b16 %v3871, %v3870
    %3888 = vmatprep.subr.bf16.mxu0 0
    %3889 = vmatpush1.bf16.msra.mxu0 %v3872
    %3890 = vmatprep.subr.bf16.mxu0 0
    %3891 = vmatpush1.bf16.msra.mxu0 %v3873
    %3892 = vmatprep.subr.bf16.mxu0 0
    %3893 = vmatpush1.bf16.msra.mxu0 %v3874
    %3894 = vmatprep.subr.bf16.mxu0 0
    %3895 = vmatpush1.bf16.msra.mxu0 %v3875
    %3896 = vmatprep.subr.bf16.mxu0 0
    %3897 = vmatpush1.bf16.msra.mxu0 %v3876
    %3898 = vmatprep.subr.bf16.mxu0 0
    %3899 = vmatpush1.bf16.msra.mxu0 %v3877
    %3900 = vmatprep.subr.bf16.mxu0 0
    %3901 = vmatpush1.bf16.msra.mxu0 %v3878
    %3902 = vmatprep.subr.bf16.mxu0 0
    %3903 = vmatpush1.bf16.msra.mxu0 %v3879
    %3904 = vmatprep.subr.bf16.mxu0 0
    %3905 = vmatpush1.bf16.msra.mxu0 0
    %3906 = vmatprep.subr.bf16.mxu0 0
    %3907 = vmatpush1.bf16.msra.mxu0 0
    %3908 = vmatprep.subr.bf16.mxu0 0
    %3909 = vmatpush1.bf16.msra.mxu0 0
    %3910 = vmatprep.subr.bf16.mxu0 0
    %3911 = vmatpush1.bf16.msra.mxu0 0
    %3912 = vmatprep.subr.bf16.mxu0 0
    %3913 = vmatpush1.bf16.msra.mxu0 0
    %3914 = vmatprep.subr.bf16.mxu0 0
    %3915 = vmatpush1.bf16.msra.mxu0 0
    %3916 = vmatprep.subr.bf16.mxu0 0
    %3917 = vmatpush1.bf16.msra.mxu0 0
    %3918 = vmatprep.subr.bf16.mxu0 0
    %3919 = vmatpush1.bf16.msra.mxu0 0
    %3920 = vmatprep.mubr.bf16.mxu0 0
    %3921 = vmatmul.mubr.bf16.gmra.mrb[0].mxu0 %v3823
    %v3922 = vpop.f32.mrb[0].mxu0
    %v3923 = vadd.f32 0.0, %v3922
    %v3924 = vpop.f32.mrb[0].mxu0
    %v3925 = vpop.f32.mrb[0].mxu0
    %v3926 = vpop.f32.mrb[0].mxu0
    %3927 = vdwg.mxu0
    %v3928 = vld [vmem:[#allocation9 + $0x40] ss:$0 sm:$0xff]
    %v3929 = vld [vmem:[#allocation9 + $0x41] ss:$0 sm:$0xff]
    %v3930 = vsel %vm308, %v3923, 0.0
    %v3931 = vrot.slane %v3930, 4
    %v3932 = vadd.f32 %v3930, %v3931
    %v3933 = vrot.slane %v3932, 2
    %v3934 = vadd.f32 %v3932, %v3933
    %v3935 = vrot.slane %v3934, 1
    %v3936 = vadd.f32 %v3934, %v3935
    %v3937 = vmul.f32 %v3936, 0.125
    %v3938 = vsub.f32 %v3923, %v3937
    %v3939 = vmul.f32 %v3938, %v3938
    %v3940 = vsel %vm308, %v3939, 0.0
    %v3941 = vrot.slane %v3940, 4
    %v3942 = vadd.f32 %v3940, %v3941
    %v3943 = vrot.slane %v3942, 2
    %v3944 = vadd.f32 %v3942, %v3943
    %v3945 = vrot.slane %v3944, 1
    %v3946 = vadd.f32 %v3944, %v3945
    %v3947 = vmul.f32 %v3946, 0.125
    %v3948 = vadd.f32 %v3947, 1e-05
    %v3949 = vrsqrt.pop %v3948
    %v3950 = vmul.f32 %v3928, %v3949
    %v3951 = vmul.f32 %v3938, %v3950
    %v3952 = vadd.f32 %v3951, %v3929
    %v3953 = vmax.f32 %v3952, 0.0
    %v3954 = vpack.c.bf16 %v3953, %v3953
    %v3955 = vld [vmem:[#allocation9 + $0x42] ss:$0 sm:$0xff]
    %v3956 = vld [vmem:[#allocation9 + $0x43] ss:$0 sm:$0xff]
    %v3957 = vunpack.c.l.bf16 %v3954
    %v3958 = vmul.f32 %v3957, %v3955
    %v3959 = vsel %vm308, %v3958, 0.0
    %3960 = vadd.xlane.f32.xlu0 %v3959
    %v3961 = vpop.xlane.xlu0 %3960
    %v3962 = vadd.f32 %v3961, %v3956
    %v3963 = vxor.u32 %v3962, 2147483648
    %v3964 = vmul.f32 %v3963, 1.442695
    %v3965 = vpow.pop %v3964
    %v3966 = vadd.f32 %v3965, 1.0
    %v3967 = vrcp.pop %v3966
    %v3968 = vmul.f32 1.0, %v3967
    %vm3969 = vcmask 7168
    %3970 = vst.msk [vmem:[%s8] sm:$0xff] %vm3969, %v3968
    // Predicated region
    $region54: #{simple_nn_forward.1} parent=1 // pred_check
      _
    $region55: #{simple_nn_forward.1} parent=1 // pred_check_branch
      %3972 = sbr.rel (0) target = $region57
    $region56: #{simple_nn_forward.1} parent=1 // pred_region
      _
    $region57: #{simple_nn_forward.1} parent=1 // pred_fallthru
      _
    // Predicated region
    $region58: #{simple_nn_forward.1} parent=1 // pred_check
      _
    $region59: #{simple_nn_forward.1} parent=1 // pred_check_branch
      %3974 = sbr.rel (0) target = $region61
    $region60: #{simple_nn_forward.1} parent=1 // pred_region
      _
    $region61: #{simple_nn_forward.1} parent=1 // pred_fallthru
      _
    %3975 = vsyncpa [#allocation3], 1
    %3976 = vsyncpa [#allocation5], 1
    %3977 = vsyncpa [#allocation8], 1

</llo_original>
